<compile_context>
chip_gen: v7x
topology: tpu7x:2x2x1
jax: 0.10.0
libtpu: 0.0.40
codegen_flags: <defaults>
</compile_context>

<pallas_src>
import functools
import math

import numpy as np
import jax
import jax.numpy as jnp
from jax.experimental import pallas as pl
from jax.experimental.pallas import tpu as pltpu

# ----------------------------- model dims (small, synthetic) ----------------
VOCAB = 64
HIDDEN = 32
NUM_HEADS = 2
HEAD_DIM = HIDDEN // NUM_HEADS
INTERMEDIATE = 64
NUM_LAYERS = 2
MAX_POS = 16
SENT_OUT_DIM = 3          # sent_out_dim
LANG_OUT_DIM = 4          # lang_out_dim
LN_EPS = 1e-12
INV_SQRT2 = 0.7071067811865476   # 1/sqrt(2), hoisted out of the GELU body


# ----------------------------- fused Pallas kernel ---------------------------
def _fused_bert_kernel(
    # inputs ------------------------------------------------------------------
    emb_ref,                         # (B*S, H)  word+pos+type embeddings (pre-LN)
    mask_ref,                        # (B, 1, S) additive attention mask
    embg_ref, embb_ref,              # (1, H)    embedding LayerNorm gamma/beta
    wqkv_ref, bqkv_ref,              # (L, H, 3H), (L, 1, 3H)  (1/sqrt(DH) folded into Q)
    wo_ref, bo_ref,                  # (L, H, H), (L, 1, H)
    ln1g_ref, ln1b_ref,              # (L, 1, H)
    wi_ref, bi_ref,                  # (L, H, I), (L, 1, I)
    wo2_ref, bo2_ref,                # (L, I, H), (L, 1, H)
    ln2g_ref, ln2b_ref,              # (L, 1, H)
    clssel_ref,                      # (B, B*S)  selects the [CLS] row of each sentence
    poolw_ref, poolb_ref,            # (H, H), (1, H)
    clsw_ref, clsb_ref,              # (H, SENT), (1, SENT)
    lidw_ref, lidb_ref,              # (H, LANG), (1, LANG)
    merge_ref,                       # (B*W, B*S) block-diagonal subword->word average
    # outputs -----------------------------------------------------------------
    sa_ref,                          # (B, SENT)
    lid_ref,                         # (B*W, LANG)
    # scratch -----------------------------------------------------------------
    attn_ref,                        # (B*S, H) VMEM scratch for the attention output
    *, B, S,
):
    f32 = jnp.float32

    def layernorm(x, g, b):
        mu = jnp.mean(x, axis=-1, keepdims=True)
        var = jnp.mean((x - mu) ** 2, axis=-1, keepdims=True)
        return (x - mu) * jax.lax.rsqrt(var + LN_EPS) * g + b

    # --- embeddings -> LayerNorm (no fake zero residual) ----------------------
    h = layernorm(emb_ref[...], embg_ref[...], embb_ref[...])

    # TODO(synk): embedding/attention/hidden dropouts omitted (eval-mode identity)
    for l in range(NUM_LAYERS):
        # fused QKV projection: one (B*S, H) x (H, 3H) matmul
        qkv = jnp.dot(h, wqkv_ref[l], preferred_element_type=f32) + bqkv_ref[l]
        wo_l = wo_ref[l]
        bo_l = bo_ref[l]

        # self-attention, statically unrolled over (batch, head).
        # 1/sqrt(HEAD_DIM) is already folded into the Q projection weights; the
        # output projection is folded into the head loop (split-wo), so the
        # per-head contexts never need to be re-assembled along the lane dim.
        for b in range(B):
            rs = b * S
            m = mask_ref[b]                                   # (1, S) additive
            acc = None
            for hd in range(NUM_HEADS):
                cq = hd * HEAD_DIM
                q = qkv[rs:rs + S, cq:cq + HEAD_DIM]
                k = qkv[rs:rs + S, HIDDEN + cq:HIDDEN + cq + HEAD_DIM]
                v = qkv[rs:rs + S, 2 * HIDDEN + cq:2 * HIDDEN + cq + HEAD_DIM]
                s = jax.lax.dot_general(q, k, (((1,), (1,)), ((), ())),
                                        preferred_element_type=f32)   # (S, S)
                s = s + m
                s = s - jnp.max(s, axis=-1, keepdims=True)
                p = jnp.exp(s)
                p = p * pl.reciprocal(jnp.sum(p, axis=-1, keepdims=True), approx=True)
                ctx = jnp.dot(p, v, preferred_element_type=f32)       # (S, DH)
                part = jnp.dot(ctx, wo_l[cq:cq + HEAD_DIM, :],
                               preferred_element_type=f32)            # (S, H)
                acc = part if acc is None else acc + part
            attn_ref[rs:rs + S, :] = acc + bo_l

        h1 = layernorm(attn_ref[...] + h, ln1g_ref[l], ln1b_ref[l])

        inter = jnp.dot(h1, wi_ref[l], preferred_element_type=f32) + bi_ref[l]
        inter = 0.5 * inter * (1.0 + jax.lax.erf(inter * INV_SQRT2))   # exact (erf) GELU
        ffn = jnp.dot(inter, wo2_ref[l], preferred_element_type=f32) + bo2_ref[l]
        h = layernorm(ffn + h1, ln2g_ref[l], ln2b_ref[l])

    # --- sentence classification head (BERT pooler + classifier) --------------
    cls_tok = jnp.dot(clssel_ref[...], h, preferred_element_type=f32)   # (B, H)
    pooled = jnp.tanh(jnp.dot(cls_tok, poolw_ref[...], preferred_element_type=f32)
                      + poolb_ref[...])
    sa_ref[...] = jnp.dot(pooled, clsw_ref[...], preferred_element_type=f32) + clsb_ref[...]

    # --- whole-word LID head: block-diag subword average fused with LID linear
    merged = jnp.dot(merge_ref[...], h, preferred_element_type=f32)     # (B*W, H)
    lid_ref[...] = jnp.dot(merged, lidw_ref[...], preferred_element_type=f32) + lidb_ref[...]


# ----------------------------- parameters ------------------------------------
def init_params(key):
    def nrm(k, shape, scale=0.02):
        return scale * jax.random.normal(k, shape, dtype=jnp.float32)

    keys = jax.random.split(key, 8 + NUM_LAYERS)
    p = {
        "word_emb": nrm(keys[0], (VOCAB, HIDDEN)),
        "pos_emb": nrm(keys[1], (MAX_POS, HIDDEN)),
        "type_emb": nrm(keys[2], (2, HIDDEN)),
        "emb_ln_g": jnp.ones((HIDDEN,), jnp.float32),
        "emb_ln_b": jnp.zeros((HIDDEN,), jnp.float32),
        "pool_w": nrm(keys[3], (HIDDEN, HIDDEN)),
        "pool_b": jnp.zeros((HIDDEN,), jnp.float32),
        "cls_w": nrm(keys[4], (HIDDEN, SENT_OUT_DIM)),
        "cls_b": jnp.zeros((SENT_OUT_DIM,), jnp.float32),
        "lid_w": nrm(keys[5], (HIDDEN, LANG_OUT_DIM)),
        "lid_b": jnp.zeros((LANG_OUT_DIM,), jnp.float32),
        "layers": [],
    }
    for l in range(NUM_LAYERS):
        lk = jax.random.split(keys[8 + l], 6)
        p["layers"].append({
            "wq": nrm(lk[0], (HIDDEN, HIDDEN)), "bq": jnp.zeros((HIDDEN,), jnp.float32),
            "wk": nrm(lk[1], (HIDDEN, HIDDEN)), "bk": jnp.zeros((HIDDEN,), jnp.float32),
            "wv": nrm(lk[2], (HIDDEN, HIDDEN)), "bv": jnp.zeros((HIDDEN,), jnp.float32),
            "wo": nrm(lk[3], (HIDDEN, HIDDEN)), "bo": jnp.zeros((HIDDEN,), jnp.float32),
            "ln1_g": jnp.ones((HIDDEN,), jnp.float32), "ln1_b": jnp.zeros((HIDDEN,), jnp.float32),
            "wi": nrm(lk[4], (HIDDEN, INTERMEDIATE)), "bi": jnp.zeros((INTERMEDIATE,), jnp.float32),
            "wo2": nrm(lk[5], (INTERMEDIATE, HIDDEN)), "bo2": jnp.zeros((HIDDEN,), jnp.float32),
            "ln2_g": jnp.ones((HIDDEN,), jnp.float32), "ln2_b": jnp.zeros((HIDDEN,), jnp.float32),
        })
    return p


def pack_params(p):
    """Stack per-layer weights along a leading layer axis, fuse QKV, fold the
    1/sqrt(HEAD_DIM) attention scale into the Q projection, reshape biases 2-D."""
    scale = 1.0 / math.sqrt(HEAD_DIM)

    def stack(name):
        return jnp.stack([lp[name] for lp in p["layers"]])

    wqkv = jnp.concatenate([stack("wq") * scale, stack("wk"), stack("wv")], axis=-1)
    bqkv = jnp.concatenate([stack("bq") * scale, stack("bk"), stack("bv")], axis=-1)[:, None, :]
    return {
        "wqkv": wqkv, "bqkv": bqkv,
        "wo": stack("wo"), "bo": stack("bo")[:, None, :],
        "ln1_g": stack("ln1_g")[:, None, :], "ln1_b": stack("ln1_b")[:, None, :],
        "wi": stack("wi"), "bi": stack("bi")[:, None, :],
        "wo2": stack("wo2"), "bo2": stack("bo2")[:, None, :],
        "ln2_g": stack("ln2_g")[:, None, :], "ln2_b": stack("ln2_b")[:, None, :],
        "emb_ln_g": p["emb_ln_g"].reshape(1, HIDDEN),
        "emb_ln_b": p["emb_ln_b"].reshape(1, HIDDEN),
        "pool_w": p["pool_w"], "pool_b": p["pool_b"].reshape(1, HIDDEN),
        "cls_w": p["cls_w"], "cls_b": p["cls_b"].reshape(1, SENT_OUT_DIM),
        "lid_w": p["lid_w"], "lid_b": p["lid_b"].reshape(1, LANG_OUT_DIM),
    }


# ----------------------------- host-built index matrices ---------------------
def build_merge_and_cls(batch_splits, B, S, W):
    """merge[b*W+w, b*S+t] = 1/len(word w) over that word's subword tokens
    (offset by 1 to skip [CLS]); zero rows for padded words (pad_sequence(0)).
    cls_sel[b, b*S] = 1 selects each sentence's [CLS] row from the (B*S, H) slab."""
    merge = np.zeros((B * W, B * S), dtype=np.float32)
    cls_sel = np.zeros((B, B * S), dtype=np.float32)
    for b, splits in enumerate(batch_splits):
        cls_sel[b, b * S] = 1.0
        pos = 1
        for w, n in enumerate(splits):
            merge[b * W + w, b * S + pos:b * S + pos + n] = 1.0 / n
            pos += n
    return jnp.asarray(merge), jnp.asarray(cls_sel)


# ----------------------------- forward pass -----------------------------------
def whole_word_bert_forward(params, input_ids, attention_mask, batch_splits):
    """Returns output_dict analogue: {'sa_logits', 'lid_logits'} (no targets)."""
    B, S = input_ids.shape
    W = max(len(s) for s in batch_splits)

    # embedding lookup (gather) stays in plain JAX; token_type_id fixed to 0.
    emb = (params["word_emb"][input_ids]
           + params["pos_emb"][None, :S, :]
           + params["type_emb"][0][None, None, :]).reshape(B * S, HIDDEN)
    mask_add = ((1.0 - attention_mask.astype(jnp.float32)) * -1e9).reshape(B, 1, S)

    # TODO(synk): host-side NumPy merge/CLS-selector build (python batch_splits)
    # is not jit-traceable -- same limitation as the torch reference's loops.
    merge_mat, cls_sel = build_merge_and_cls(batch_splits, B, S, W)

    pp = pack_params(params)
    inputs = (emb, mask_add,
              pp["emb_ln_g"], pp["emb_ln_b"],
              pp["wqkv"], pp["bqkv"], pp["wo"], pp["bo"], pp["ln1_g"], pp["ln1_b"],
              pp["wi"], pp["bi"], pp["wo2"], pp["bo2"], pp["ln2_g"], pp["ln2_b"],
              cls_sel, pp["pool_w"], pp["pool_b"], pp["cls_w"], pp["cls_b"],
              pp["lid_w"], pp["lid_b"], merge_mat)

    out_shapes = (jax.ShapeDtypeStruct((B, SENT_OUT_DIM), jnp.float32),
                  jax.ShapeDtypeStruct((B * W, LANG_OUT_DIM), jnp.float32))

    def full_spec(shape):
        nd = len(shape)
        return pl.BlockSpec(shape, lambda i, _nd=nd: (0,) * _nd)

    sa_logits, lid_flat = pl.pallas_call(
        functools.partial(_fused_bert_kernel, B=B, S=S),
        out_shape=out_shapes,
        grid=(1,),
        in_specs=[full_spec(a.shape) for a in inputs],
        out_specs=tuple(full_spec(o.shape) for o in out_shapes),
        scratch_shapes=[pltpu.VMEM((B * S, HIDDEN), jnp.float32)],
        compiler_params=pltpu.CompilerParams(dimension_semantics=("arbitrary",)),
    )(*inputs)

    # bert_dropout / dropout -> identity (deterministic / eval)
    # TODO(synk): CrossEntropy losses (sa_loss / lid_loss) only when targets are
    # supplied; omitted in this target-free synthetic run.
    return {"sa_logits": sa_logits,
            "lid_logits": lid_flat.reshape(B, W, LANG_OUT_DIM),
            "loss": 0.0}


# ----------------------------- main ------------------------------------------
if __name__ == "__main__":
    key = jax.random.PRNGKey(0)
    pkey, dkey = jax.random.split(key)
    params = init_params(pkey)

    B, S = 2, 8
    # synthetic "subword tokenization": word->subword split counts per sentence
    batch_splits = [[2, 1, 3], [1, 1, 1, 1]]           # 6 and 4 subwords (+CLS/SEP)
    input_ids = jax.random.randint(dkey, (B, S), 0, VOCAB, dtype=jnp.int32)
    attention_mask = jnp.array(
        [[1, 1, 1, 1, 1, 1, 1, 1],                     # 6 subwords + CLS + SEP
         [1, 1, 1, 1, 1, 1, 0, 0]], dtype=jnp.int32)   # 4 subwords + CLS + SEP, 2 pad

    out = whole_word_bert_forward(params, input_ids, attention_mask, batch_splits)
    jax.block_until_ready(out["sa_logits"])
    jax.block_until_ready(out["lid_logits"])

    W = max(len(s) for s in batch_splits)
    assert out["sa_logits"].shape == (B, SENT_OUT_DIM)
    assert out["lid_logits"].shape == (B, W, LANG_OUT_DIM)
    assert jnp.all(jnp.isfinite(out["sa_logits"])) and jnp.all(jnp.isfinite(out["lid_logits"]))
    print("KERNEL_OK")
</pallas_src>

<mosaic_0001>
module attributes {stable_mosaic.version = 11 : i64} {
  func.func @_fused_bert_kernel(%arg0: i32, %arg1: memref<16x32xf32, #tpu.memory_space<vmem>>, %arg2: memref<2x1x8xf32, #tpu.memory_space<vmem>>, %arg3: memref<1x32xf32, #tpu.memory_space<vmem>>, %arg4: memref<1x32xf32, #tpu.memory_space<vmem>>, %arg5: memref<2x32x96xf32, #tpu.memory_space<vmem>>, %arg6: memref<2x1x96xf32, #tpu.memory_space<vmem>>, %arg7: memref<2x32x32xf32, #tpu.memory_space<vmem>>, %arg8: memref<2x1x32xf32, #tpu.memory_space<vmem>>, %arg9: memref<2x1x32xf32, #tpu.memory_space<vmem>>, %arg10: memref<2x1x32xf32, #tpu.memory_space<vmem>>, %arg11: memref<2x32x64xf32, #tpu.memory_space<vmem>>, %arg12: memref<2x1x64xf32, #tpu.memory_space<vmem>>, %arg13: memref<2x64x32xf32, #tpu.memory_space<vmem>>, %arg14: memref<2x1x32xf32, #tpu.memory_space<vmem>>, %arg15: memref<2x1x32xf32, #tpu.memory_space<vmem>>, %arg16: memref<2x1x32xf32, #tpu.memory_space<vmem>>, %arg17: memref<2x16xf32, #tpu.memory_space<vmem>>, %arg18: memref<32x32xf32, #tpu.memory_space<vmem>>, %arg19: memref<1x32xf32, #tpu.memory_space<vmem>>, %arg20: memref<32x3xf32, #tpu.memory_space<vmem>>, %arg21: memref<1x3xf32, #tpu.memory_space<vmem>>, %arg22: memref<32x4xf32, #tpu.memory_space<vmem>>, %arg23: memref<1x4xf32, #tpu.memory_space<vmem>>, %arg24: memref<8x16xf32, #tpu.memory_space<vmem>>, %arg25: memref<2x3xf32, #tpu.memory_space<vmem>>, %arg26: memref<8x4xf32, #tpu.memory_space<vmem>>, %arg27: memref<16x32xf32, #tpu.memory_space<vmem>>) attributes {dimension_semantics = [#tpu.dimension_semantics<arbitrary>], iteration_bounds = array<i64: 1>, scalar_prefetch = 0 : i64, scratch_operands = 1 : i64, tpu.core_type = #tpu.core_type<tc>, window_params = [{pipeline_mode = #tpu.pipeline_mode<synchronous>, transform_indices = @transform_0, window_bounds = array<i64: 16, 32>}, {pipeline_mode = #tpu.pipeline_mode<synchronous>, transform_indices = @transform_1, window_bounds = array<i64: 2, 1, 8>}, {pipeline_mode = #tpu.pipeline_mode<synchronous>, transform_indices = @transform_2, window_bounds = array<i64: 1, 32>}, {pipeline_mode = #tpu.pipeline_mode<synchronous>, transform_indices = @transform_3, window_bounds = array<i64: 1, 32>}, {pipeline_mode = #tpu.pipeline_mode<synchronous>, transform_indices = @transform_4, window_bounds = array<i64: 2, 32, 96>}, {pipeline_mode = #tpu.pipeline_mode<synchronous>, transform_indices = @transform_5, window_bounds = array<i64: 2, 1, 96>}, {pipeline_mode = #tpu.pipeline_mode<synchronous>, transform_indices = @transform_6, window_bounds = array<i64: 2, 32, 32>}, {pipeline_mode = #tpu.pipeline_mode<synchronous>, transform_indices = @transform_7, window_bounds = array<i64: 2, 1, 32>}, {pipeline_mode = #tpu.pipeline_mode<synchronous>, transform_indices = @transform_8, window_bounds = array<i64: 2, 1, 32>}, {pipeline_mode = #tpu.pipeline_mode<synchronous>, transform_indices = @transform_9, window_bounds = array<i64: 2, 1, 32>}, {pipeline_mode = #tpu.pipeline_mode<synchronous>, transform_indices = @transform_10, window_bounds = array<i64: 2, 32, 64>}, {pipeline_mode = #tpu.pipeline_mode<synchronous>, transform_indices = @transform_11, window_bounds = array<i64: 2, 1, 64>}, {pipeline_mode = #tpu.pipeline_mode<synchronous>, transform_indices = @transform_12, window_bounds = array<i64: 2, 64, 32>}, {pipeline_mode = #tpu.pipeline_mode<synchronous>, transform_indices = @transform_13, window_bounds = array<i64: 2, 1, 32>}, {pipeline_mode = #tpu.pipeline_mode<synchronous>, transform_indices = @transform_14, window_bounds = array<i64: 2, 1, 32>}, {pipeline_mode = #tpu.pipeline_mode<synchronous>, transform_indices = @transform_15, window_bounds = array<i64: 2, 1, 32>}, {pipeline_mode = #tpu.pipeline_mode<synchronous>, transform_indices = @transform_16, window_bounds = array<i64: 2, 16>}, {pipeline_mode = #tpu.pipeline_mode<synchronous>, transform_indices = @transform_17, window_bounds = array<i64: 32, 32>}, {pipeline_mode = #tpu.pipeline_mode<synchronous>, transform_indices = @transform_18, window_bounds = array<i64: 1, 32>}, {pipeline_mode = #tpu.pipeline_mode<synchronous>, transform_indices = @transform_19, window_bounds = array<i64: 32, 3>}, {pipeline_mode = #tpu.pipeline_mode<synchronous>, transform_indices = @transform_20, window_bounds = array<i64: 1, 3>}, {pipeline_mode = #tpu.pipeline_mode<synchronous>, transform_indices = @transform_21, window_bounds = array<i64: 32, 4>}, {pipeline_mode = #tpu.pipeline_mode<synchronous>, transform_indices = @transform_22, window_bounds = array<i64: 1, 4>}, {pipeline_mode = #tpu.pipeline_mode<synchronous>, transform_indices = @transform_23, window_bounds = array<i64: 8, 16>}, {pipeline_mode = #tpu.pipeline_mode<synchronous>, transform_indices = @transform_24, window_bounds = array<i64: 2, 3>}, {pipeline_mode = #tpu.pipeline_mode<synchronous>, transform_indices = @transform_25, window_bounds = array<i64: 8, 4>}]} {
    %c0 = arith.constant 0 : index
    %c0_0 = arith.constant 0 : index
    %0 = vector.load %arg1[%c0, %c0_0] : memref<16x32xf32, #tpu.memory_space<vmem>>, vector<16x32xf32>
    %c0_1 = arith.constant 0 : index
    %c0_2 = arith.constant 0 : index
    %1 = vector.load %arg3[%c0_1, %c0_2] : memref<1x32xf32, #tpu.memory_space<vmem>>, vector<1x32xf32>
    %c0_3 = arith.constant 0 : index
    %c0_4 = arith.constant 0 : index
    %2 = vector.load %arg4[%c0_3, %c0_4] : memref<1x32xf32, #tpu.memory_space<vmem>>, vector<1x32xf32>
    %cst = arith.constant dense<0.000000e+00> : vector<16xf32>
    %3 = vector.multi_reduction <add>, %0, %cst [1] : vector<16x32xf32> to vector<16xf32>
    %4 = vector.shape_cast %3 : vector<16xf32> to vector<16x1xf32>
    %cst_5 = arith.constant 3.200000e+01 : f32
    %5 = vector.broadcast %cst_5 : f32 to vector<16x1xf32>
    %6 = arith.divf %4, %5 : vector<16x1xf32>
    %7 = vector.broadcast %6 : vector<16x1xf32> to vector<16x32xf32>
    %8 = arith.subf %0, %7 : vector<16x32xf32>
    %9 = arith.mulf %8, %8 : vector<16x32xf32>
    %cst_6 = arith.constant dense<0.000000e+00> : vector<16xf32>
    %10 = vector.multi_reduction <add>, %9, %cst_6 [1] : vector<16x32xf32> to vector<16xf32>
    %11 = vector.shape_cast %10 : vector<16xf32> to vector<16x1xf32>
    %cst_7 = arith.constant 3.200000e+01 : f32
    %12 = vector.broadcast %cst_7 : f32 to vector<16x1xf32>
    %13 = arith.divf %11, %12 : vector<16x1xf32>
    %14 = vector.broadcast %6 : vector<16x1xf32> to vector<16x32xf32>
    %15 = arith.subf %0, %14 : vector<16x32xf32>
    %cst_8 = arith.constant 9.99999996E-13 : f32
    %16 = vector.broadcast %cst_8 : f32 to vector<16x1xf32>
    %17 = arith.addf %13, %16 : vector<16x1xf32>
    %18 = math.rsqrt %17 : vector<16x1xf32>
    %19 = vector.broadcast %18 : vector<16x1xf32> to vector<16x32xf32>
    %20 = arith.mulf %15, %19 : vector<16x32xf32>
    %21 = vector.broadcast %1 : vector<1x32xf32> to vector<16x32xf32>
    %22 = arith.mulf %20, %21 : vector<16x32xf32>
    %23 = vector.broadcast %2 : vector<1x32xf32> to vector<16x32xf32>
    %24 = arith.addf %22, %23 : vector<16x32xf32>
    %c0_9 = arith.constant 0 : index
    %c0_10 = arith.constant 0 : index
    %c0_11 = arith.constant 0 : index
    %25 = vector.load %arg5[%c0_9, %c0_10, %c0_11] : memref<2x32x96xf32, #tpu.memory_space<vmem>>, vector<1x32x96xf32>
    %26 = vector.shape_cast %25 : vector<1x32x96xf32> to vector<32x96xf32>
    %cst_12 = arith.constant dense<0.000000e+00> : vector<16x96xf32>
    %27 = tpu.matmul %24, %26, %cst_12 {dimension_numbers = #tpu.dot_dimension_numbers<[1], [0], [0], [1], [0, 0, 1, 1], [], []>} : vector<16x32xf32>, vector<32x96xf32>, vector<16x96xf32> -> vector<16x96xf32>
    %c0_13 = arith.constant 0 : index
    %c0_14 = arith.constant 0 : index
    %c0_15 = arith.constant 0 : index
    %28 = vector.load %arg6[%c0_13, %c0_14, %c0_15] : memref<2x1x96xf32, #tpu.memory_space<vmem>>, vector<1x1x96xf32>
    %29 = vector.shape_cast %28 : vector<1x1x96xf32> to vector<1x96xf32>
    %30 = vector.broadcast %29 : vector<1x96xf32> to vector<16x96xf32>
    %31 = arith.addf %27, %30 : vector<16x96xf32>
    %c0_16 = arith.constant 0 : index
    %c0_17 = arith.constant 0 : index
    %c0_18 = arith.constant 0 : index
    %32 = vector.load %arg7[%c0_16, %c0_17, %c0_18] : memref<2x32x32xf32, #tpu.memory_space<vmem>>, vector<1x32x32xf32>
    %33 = vector.shape_cast %32 : vector<1x32x32xf32> to vector<32x32xf32>
    %c0_19 = arith.constant 0 : index
    %c0_20 = arith.constant 0 : index
    %c0_21 = arith.constant 0 : index
    %34 = vector.load %arg8[%c0_19, %c0_20, %c0_21] : memref<2x1x32xf32, #tpu.memory_space<vmem>>, vector<1x1x32xf32>
    %35 = vector.shape_cast %34 : vector<1x1x32xf32> to vector<1x32xf32>
    %c0_22 = arith.constant 0 : index
    %c0_23 = arith.constant 0 : index
    %c0_24 = arith.constant 0 : index
    %36 = vector.load %arg2[%c0_22, %c0_23, %c0_24] : memref<2x1x8xf32, #tpu.memory_space<vmem>>, vector<1x1x8xf32>
    %37 = vector.shape_cast %36 : vector<1x1x8xf32> to vector<1x8xf32>
    %38 = vector.extract_strided_slice %31 {offsets = [0, 0], sizes = [8, 16], strides = [1, 1]} : vector<16x96xf32> to vector<8x16xf32>
    %39 = vector.extract_strided_slice %31 {offsets = [0, 32], sizes = [8, 16], strides = [1, 1]} : vector<16x96xf32> to vector<8x16xf32>
    %40 = vector.extract_strided_slice %31 {offsets = [0, 64], sizes = [8, 16], strides = [1, 1]} : vector<16x96xf32> to vector<8x16xf32>
    %cst_25 = arith.constant dense<0.000000e+00> : vector<8x8xf32>
    %41 = tpu.matmul %38, %39, %cst_25 {dimension_numbers = #tpu.dot_dimension_numbers<[1], [1], [0], [0], [0, 0, 1, 0], [], []>} : vector<8x16xf32>, vector<8x16xf32>, vector<8x8xf32> -> vector<8x8xf32>
    %42 = vector.broadcast %37 : vector<1x8xf32> to vector<8x8xf32>
    %43 = arith.addf %41, %42 : vector<8x8xf32>
    %cst_26 = arith.constant dense<0xFF800000> : vector<8xf32>
    %44 = vector.multi_reduction <maximumf>, %43, %cst_26 [1] : vector<8x8xf32> to vector<8xf32>
    %45 = vector.shape_cast %44 : vector<8xf32> to vector<8x1xf32>
    %46 = vector.broadcast %45 : vector<8x1xf32> to vector<8x8xf32>
    %47 = arith.subf %43, %46 : vector<8x8xf32>
    %48 = math.exp %47 : vector<8x8xf32>
    %cst_27 = arith.constant dense<0.000000e+00> : vector<8xf32>
    %49 = vector.multi_reduction <add>, %48, %cst_27 [1] : vector<8x8xf32> to vector<8xf32>
    %50 = vector.shape_cast %49 : vector<8xf32> to vector<8x1xf32>
    %51 = tpu.reciprocal %50 {approx = true} : vector<8x1xf32> -> vector<8x1xf32>
    %52 = vector.broadcast %51 : vector<8x1xf32> to vector<8x8xf32>
    %53 = arith.mulf %48, %52 : vector<8x8xf32>
    %cst_28 = arith.constant dense<0.000000e+00> : vector<8x16xf32>
    %54 = tpu.matmul %53, %40, %cst_28 {dimension_numbers = #tpu.dot_dimension_numbers<[1], [0], [0], [1], [0, 0, 1, 1], [], []>} : vector<8x8xf32>, vector<8x16xf32>, vector<8x16xf32> -> vector<8x16xf32>
    %55 = vector.extract_strided_slice %33 {offsets = [0, 0], sizes = [16, 32], strides = [1, 1]} : vector<32x32xf32> to vector<16x32xf32>
    %cst_29 = arith.constant dense<0.000000e+00> : vector<8x32xf32>
    %56 = tpu.matmul %54, %55, %cst_29 {dimension_numbers = #tpu.dot_dimension_numbers<[1], [0], [0], [1], [0, 0, 1, 1], [], []>} : vector<8x16xf32>, vector<16x32xf32>, vector<8x32xf32> -> vector<8x32xf32>
    %57 = vector.extract_strided_slice %31 {offsets = [0, 16], sizes = [8, 16], strides = [1, 1]} : vector<16x96xf32> to vector<8x16xf32>
    %58 = vector.extract_strided_slice %31 {offsets = [0, 48], sizes = [8, 16], strides = [1, 1]} : vector<16x96xf32> to vector<8x16xf32>
    %59 = vector.extract_strided_slice %31 {offsets = [0, 80], sizes = [8, 16], strides = [1, 1]} : vector<16x96xf32> to vector<8x16xf32>
    %cst_30 = arith.constant dense<0.000000e+00> : vector<8x8xf32>
    %60 = tpu.matmul %57, %58, %cst_30 {dimension_numbers = #tpu.dot_dimension_numbers<[1], [1], [0], [0], [0, 0, 1, 0], [], []>} : vector<8x16xf32>, vector<8x16xf32>, vector<8x8xf32> -> vector<8x8xf32>
    %61 = vector.broadcast %37 : vector<1x8xf32> to vector<8x8xf32>
    %62 = arith.addf %60, %61 : vector<8x8xf32>
    %cst_31 = arith.constant dense<0xFF800000> : vector<8xf32>
    %63 = vector.multi_reduction <maximumf>, %62, %cst_31 [1] : vector<8x8xf32> to vector<8xf32>
    %64 = vector.shape_cast %63 : vector<8xf32> to vector<8x1xf32>
    %65 = vector.broadcast %64 : vector<8x1xf32> to vector<8x8xf32>
    %66 = arith.subf %62, %65 : vector<8x8xf32>
    %67 = math.exp %66 : vector<8x8xf32>
    %cst_32 = arith.constant dense<0.000000e+00> : vector<8xf32>
    %68 = vector.multi_reduction <add>, %67, %cst_32 [1] : vector<8x8xf32> to vector<8xf32>
    %69 = vector.shape_cast %68 : vector<8xf32> to vector<8x1xf32>
    %70 = tpu.reciprocal %69 {approx = true} : vector<8x1xf32> -> vector<8x1xf32>
    %71 = vector.broadcast %70 : vector<8x1xf32> to vector<8x8xf32>
    %72 = arith.mulf %67, %71 : vector<8x8xf32>
    %cst_33 = arith.constant dense<0.000000e+00> : vector<8x16xf32>
    %73 = tpu.matmul %72, %59, %cst_33 {dimension_numbers = #tpu.dot_dimension_numbers<[1], [0], [0], [1], [0, 0, 1, 1], [], []>} : vector<8x8xf32>, vector<8x16xf32>, vector<8x16xf32> -> vector<8x16xf32>
    %74 = vector.extract_strided_slice %33 {offsets = [16, 0], sizes = [16, 32], strides = [1, 1]} : vector<32x32xf32> to vector<16x32xf32>
    %cst_34 = arith.constant dense<0.000000e+00> : vector<8x32xf32>
    %75 = tpu.matmul %73, %74, %cst_34 {dimension_numbers = #tpu.dot_dimension_numbers<[1], [0], [0], [1], [0, 0, 1, 1], [], []>} : vector<8x16xf32>, vector<16x32xf32>, vector<8x32xf32> -> vector<8x32xf32>
    %76 = arith.addf %56, %75 : vector<8x32xf32>
    %77 = vector.broadcast %35 : vector<1x32xf32> to vector<8x32xf32>
    %78 = arith.addf %76, %77 : vector<8x32xf32>
    %c0_35 = arith.constant 0 : index
    %c0_36 = arith.constant 0 : index
    %79 = vector.load %arg27[%c0_35, %c0_36] : memref<16x32xf32, #tpu.memory_space<vmem>>, vector<8x32xf32>
    tpu.vector_store %arg27[%c0_35, %c0_36], %78 {strides = array<i32>} : memref<16x32xf32, #tpu.memory_space<vmem>>, vector<8x32xf32>,
    %c1 = arith.constant 1 : index
    %c0_37 = arith.constant 0 : index
    %c0_38 = arith.constant 0 : index
    %80 = vector.load %arg2[%c1, %c0_37, %c0_38] : memref<2x1x8xf32, #tpu.memory_space<vmem>>, vector<1x1x8xf32>
    %81 = vector.shape_cast %80 : vector<1x1x8xf32> to vector<1x8xf32>
    %82 = vector.extract_strided_slice %31 {offsets = [8, 0], sizes = [8, 16], strides = [1, 1]} : vector<16x96xf32> to vector<8x16xf32>
    %83 = vector.extract_strided_slice %31 {offsets = [8, 32], sizes = [8, 16], strides = [1, 1]} : vector<16x96xf32> to vector<8x16xf32>
    %84 = vector.extract_strided_slice %31 {offsets = [8, 64], sizes = [8, 16], strides = [1, 1]} : vector<16x96xf32> to vector<8x16xf32>
    %cst_39 = arith.constant dense<0.000000e+00> : vector<8x8xf32>
    %85 = tpu.matmul %82, %83, %cst_39 {dimension_numbers = #tpu.dot_dimension_numbers<[1], [1], [0], [0], [0, 0, 1, 0], [], []>} : vector<8x16xf32>, vector<8x16xf32>, vector<8x8xf32> -> vector<8x8xf32>
    %86 = vector.broadcast %81 : vector<1x8xf32> to vector<8x8xf32>
    %87 = arith.addf %85, %86 : vector<8x8xf32>
    %cst_40 = arith.constant dense<0xFF800000> : vector<8xf32>
    %88 = vector.multi_reduction <maximumf>, %87, %cst_40 [1] : vector<8x8xf32> to vector<8xf32>
    %89 = vector.shape_cast %88 : vector<8xf32> to vector<8x1xf32>
    %90 = vector.broadcast %89 : vector<8x1xf32> to vector<8x8xf32>
    %91 = arith.subf %87, %90 : vector<8x8xf32>
    %92 = math.exp %91 : vector<8x8xf32>
    %cst_41 = arith.constant dense<0.000000e+00> : vector<8xf32>
    %93 = vector.multi_reduction <add>, %92, %cst_41 [1] : vector<8x8xf32> to vector<8xf32>
    %94 = vector.shape_cast %93 : vector<8xf32> to vector<8x1xf32>
    %95 = tpu.reciprocal %94 {approx = true} : vector<8x1xf32> -> vector<8x1xf32>
    %96 = vector.broadcast %95 : vector<8x1xf32> to vector<8x8xf32>
    %97 = arith.mulf %92, %96 : vector<8x8xf32>
    %cst_42 = arith.constant dense<0.000000e+00> : vector<8x16xf32>
    %98 = tpu.matmul %97, %84, %cst_42 {dimension_numbers = #tpu.dot_dimension_numbers<[1], [0], [0], [1], [0, 0, 1, 1], [], []>} : vector<8x8xf32>, vector<8x16xf32>, vector<8x16xf32> -> vector<8x16xf32>
    %99 = vector.extract_strided_slice %33 {offsets = [0, 0], sizes = [16, 32], strides = [1, 1]} : vector<32x32xf32> to vector<16x32xf32>
    %cst_43 = arith.constant dense<0.000000e+00> : vector<8x32xf32>
    %100 = tpu.matmul %98, %99, %cst_43 {dimension_numbers = #tpu.dot_dimension_numbers<[1], [0], [0], [1], [0, 0, 1, 1], [], []>} : vector<8x16xf32>, vector<16x32xf32>, vector<8x32xf32> -> vector<8x32xf32>
    %101 = vector.extract_strided_slice %31 {offsets = [8, 16], sizes = [8, 16], strides = [1, 1]} : vector<16x96xf32> to vector<8x16xf32>
    %102 = vector.extract_strided_slice %31 {offsets = [8, 48], sizes = [8, 16], strides = [1, 1]} : vector<16x96xf32> to vector<8x16xf32>
    %103 = vector.extract_strided_slice %31 {offsets = [8, 80], sizes = [8, 16], strides = [1, 1]} : vector<16x96xf32> to vector<8x16xf32>
    %cst_44 = arith.constant dense<0.000000e+00> : vector<8x8xf32>
    %104 = tpu.matmul %101, %102, %cst_44 {dimension_numbers = #tpu.dot_dimension_numbers<[1], [1], [0], [0], [0, 0, 1, 0], [], []>} : vector<8x16xf32>, vector<8x16xf32>, vector<8x8xf32> -> vector<8x8xf32>
    %105 = vector.broadcast %81 : vector<1x8xf32> to vector<8x8xf32>
    %106 = arith.addf %104, %105 : vector<8x8xf32>
    %cst_45 = arith.constant dense<0xFF800000> : vector<8xf32>
    %107 = vector.multi_reduction <maximumf>, %106, %cst_45 [1] : vector<8x8xf32> to vector<8xf32>
    %108 = vector.shape_cast %107 : vector<8xf32> to vector<8x1xf32>
    %109 = vector.broadcast %108 : vector<8x1xf32> to vector<8x8xf32>
    %110 = arith.subf %106, %109 : vector<8x8xf32>
    %111 = math.exp %110 : vector<8x8xf32>
    %cst_46 = arith.constant dense<0.000000e+00> : vector<8xf32>
    %112 = vector.multi_reduction <add>, %111, %cst_46 [1] : vector<8x8xf32> to vector<8xf32>
    %113 = vector.shape_cast %112 : vector<8xf32> to vector<8x1xf32>
    %114 = tpu.reciprocal %113 {approx = true} : vector<8x1xf32> -> vector<8x1xf32>
    %115 = vector.broadcast %114 : vector<8x1xf32> to vector<8x8xf32>
    %116 = arith.mulf %111, %115 : vector<8x8xf32>
    %cst_47 = arith.constant dense<0.000000e+00> : vector<8x16xf32>
    %117 = tpu.matmul %116, %103, %cst_47 {dimension_numbers = #tpu.dot_dimension_numbers<[1], [0], [0], [1], [0, 0, 1, 1], [], []>} : vector<8x8xf32>, vector<8x16xf32>, vector<8x16xf32> -> vector<8x16xf32>
    %118 = vector.extract_strided_slice %33 {offsets = [16, 0], sizes = [16, 32], strides = [1, 1]} : vector<32x32xf32> to vector<16x32xf32>
    %cst_48 = arith.constant dense<0.000000e+00> : vector<8x32xf32>
    %119 = tpu.matmul %117, %118, %cst_48 {dimension_numbers = #tpu.dot_dimension_numbers<[1], [0], [0], [1], [0, 0, 1, 1], [], []>} : vector<8x16xf32>, vector<16x32xf32>, vector<8x32xf32> -> vector<8x32xf32>
    %120 = arith.addf %100, %119 : vector<8x32xf32>
    %121 = vector.broadcast %35 : vector<1x32xf32> to vector<8x32xf32>
    %122 = arith.addf %120, %121 : vector<8x32xf32>
    %c8 = arith.constant 8 : index
    %c0_49 = arith.constant 0 : index
    %123 = vector.load %arg27[%c8, %c0_49] : memref<16x32xf32, #tpu.memory_space<vmem>>, vector<8x32xf32>
    tpu.vector_store %arg27[%c8, %c0_49], %122 {strides = array<i32>} : memref<16x32xf32, #tpu.memory_space<vmem>>, vector<8x32xf32>,
    %c0_50 = arith.constant 0 : index
    %c0_51 = arith.constant 0 : index
    %124 = vector.load %arg27[%c0_50, %c0_51] : memref<16x32xf32, #tpu.memory_space<vmem>>, vector<16x32xf32>
    %125 = arith.addf %124, %24 : vector<16x32xf32>
    %c0_52 = arith.constant 0 : index
    %c0_53 = arith.constant 0 : index
    %c0_54 = arith.constant 0 : index
    %126 = vector.load %arg9[%c0_52, %c0_53, %c0_54] : memref<2x1x32xf32, #tpu.memory_space<vmem>>, vector<1x1x32xf32>
    %127 = vector.shape_cast %126 : vector<1x1x32xf32> to vector<1x32xf32>
    %c0_55 = arith.constant 0 : index
    %c0_56 = arith.constant 0 : index
    %c0_57 = arith.constant 0 : index
    %128 = vector.load %arg10[%c0_55, %c0_56, %c0_57] : memref<2x1x32xf32, #tpu.memory_space<vmem>>, vector<1x1x32xf32>
    %129 = vector.shape_cast %128 : vector<1x1x32xf32> to vector<1x32xf32>
    %cst_58 = arith.constant dense<0.000000e+00> : vector<16xf32>
    %130 = vector.multi_reduction <add>, %125, %cst_58 [1] : vector<16x32xf32> to vector<16xf32>
    %131 = vector.shape_cast %130 : vector<16xf32> to vector<16x1xf32>
    %cst_59 = arith.constant 3.200000e+01 : f32
    %132 = vector.broadcast %cst_59 : f32 to vector<16x1xf32>
    %133 = arith.divf %131, %132 : vector<16x1xf32>
    %134 = vector.broadcast %133 : vector<16x1xf32> to vector<16x32xf32>
    %135 = arith.subf %125, %134 : vector<16x32xf32>
    %136 = arith.mulf %135, %135 : vector<16x32xf32>
    %cst_60 = arith.constant dense<0.000000e+00> : vector<16xf32>
    %137 = vector.multi_reduction <add>, %136, %cst_60 [1] : vector<16x32xf32> to vector<16xf32>
    %138 = vector.shape_cast %137 : vector<16xf32> to vector<16x1xf32>
    %cst_61 = arith.constant 3.200000e+01 : f32
    %139 = vector.broadcast %cst_61 : f32 to vector<16x1xf32>
    %140 = arith.divf %138, %139 : vector<16x1xf32>
    %141 = vector.broadcast %133 : vector<16x1xf32> to vector<16x32xf32>
    %142 = arith.subf %125, %141 : vector<16x32xf32>
    %cst_62 = arith.constant 9.99999996E-13 : f32
    %143 = vector.broadcast %cst_62 : f32 to vector<16x1xf32>
    %144 = arith.addf %140, %143 : vector<16x1xf32>
    %145 = math.rsqrt %144 : vector<16x1xf32>
    %146 = vector.broadcast %145 : vector<16x1xf32> to vector<16x32xf32>
    %147 = arith.mulf %142, %146 : vector<16x32xf32>
    %148 = vector.broadcast %127 : vector<1x32xf32> to vector<16x32xf32>
    %149 = arith.mulf %147, %148 : vector<16x32xf32>
    %150 = vector.broadcast %129 : vector<1x32xf32> to vector<16x32xf32>
    %151 = arith.addf %149, %150 : vector<16x32xf32>
    %c0_63 = arith.constant 0 : index
    %c0_64 = arith.constant 0 : index
    %c0_65 = arith.constant 0 : index
    %152 = vector.load %arg11[%c0_63, %c0_64, %c0_65] : memref<2x32x64xf32, #tpu.memory_space<vmem>>, vector<1x32x64xf32>
    %153 = vector.shape_cast %152 : vector<1x32x64xf32> to vector<32x64xf32>
    %cst_66 = arith.constant dense<0.000000e+00> : vector<16x64xf32>
    %154 = tpu.matmul %151, %153, %cst_66 {dimension_numbers = #tpu.dot_dimension_numbers<[1], [0], [0], [1], [0, 0, 1, 1], [], []>} : vector<16x32xf32>, vector<32x64xf32>, vector<16x64xf32> -> vector<16x64xf32>
    %c0_67 = arith.constant 0 : index
    %c0_68 = arith.constant 0 : index
    %c0_69 = arith.constant 0 : index
    %155 = vector.load %arg12[%c0_67, %c0_68, %c0_69] : memref<2x1x64xf32, #tpu.memory_space<vmem>>, vector<1x1x64xf32>
    %156 = vector.shape_cast %155 : vector<1x1x64xf32> to vector<1x64xf32>
    %157 = vector.broadcast %156 : vector<1x64xf32> to vector<16x64xf32>
    %158 = arith.addf %154, %157 : vector<16x64xf32>
    %cst_70 = arith.constant 5.000000e-01 : f32
    %159 = vector.broadcast %cst_70 : f32 to vector<16x64xf32>
    %160 = arith.mulf %159, %158 : vector<16x64xf32>
    %cst_71 = arith.constant 0.707106769 : f32
    %161 = vector.broadcast %cst_71 : f32 to vector<16x64xf32>
    %162 = arith.mulf %158, %161 : vector<16x64xf32>
    %163 = math.erf %162 : vector<16x64xf32>
    %cst_72 = arith.constant 1.000000e+00 : f32
    %164 = vector.broadcast %cst_72 : f32 to vector<16x64xf32>
    %165 = arith.addf %164, %163 : vector<16x64xf32>
    %166 = arith.mulf %160, %165 : vector<16x64xf32>
    %c0_73 = arith.constant 0 : index
    %c0_74 = arith.constant 0 : index
    %c0_75 = arith.constant 0 : index
    %167 = vector.load %arg13[%c0_73, %c0_74, %c0_75] : memref<2x64x32xf32, #tpu.memory_space<vmem>>, vector<1x64x32xf32>
    %168 = vector.shape_cast %167 : vector<1x64x32xf32> to vector<64x32xf32>
    %cst_76 = arith.constant dense<0.000000e+00> : vector<16x32xf32>
    %169 = tpu.matmul %166, %168, %cst_76 {dimension_numbers = #tpu.dot_dimension_numbers<[1], [0], [0], [1], [0, 0, 1, 1], [], []>} : vector<16x64xf32>, vector<64x32xf32>, vector<16x32xf32> -> vector<16x32xf32>
    %c0_77 = arith.constant 0 : index
    %c0_78 = arith.constant 0 : index
    %c0_79 = arith.constant 0 : index
    %170 = vector.load %arg14[%c0_77, %c0_78, %c0_79] : memref<2x1x32xf32, #tpu.memory_space<vmem>>, vector<1x1x32xf32>
    %171 = vector.shape_cast %170 : vector<1x1x32xf32> to vector<1x32xf32>
    %172 = vector.broadcast %171 : vector<1x32xf32> to vector<16x32xf32>
    %173 = arith.addf %169, %172 : vector<16x32xf32>
    %174 = arith.addf %173, %151 : vector<16x32xf32>
    %c0_80 = arith.constant 0 : index
    %c0_81 = arith.constant 0 : index
    %c0_82 = arith.constant 0 : index
    %175 = vector.load %arg15[%c0_80, %c0_81, %c0_82] : memref<2x1x32xf32, #tpu.memory_space<vmem>>, vector<1x1x32xf32>
    %176 = vector.shape_cast %175 : vector<1x1x32xf32> to vector<1x32xf32>
    %c0_83 = arith.constant 0 : index
    %c0_84 = arith.constant 0 : index
    %c0_85 = arith.constant 0 : index
    %177 = vector.load %arg16[%c0_83, %c0_84, %c0_85] : memref<2x1x32xf32, #tpu.memory_space<vmem>>, vector<1x1x32xf32>
    %178 = vector.shape_cast %177 : vector<1x1x32xf32> to vector<1x32xf32>
    %cst_86 = arith.constant dense<0.000000e+00> : vector<16xf32>
    %179 = vector.multi_reduction <add>, %174, %cst_86 [1] : vector<16x32xf32> to vector<16xf32>
    %180 = vector.shape_cast %179 : vector<16xf32> to vector<16x1xf32>
    %cst_87 = arith.constant 3.200000e+01 : f32
    %181 = vector.broadcast %cst_87 : f32 to vector<16x1xf32>
    %182 = arith.divf %180, %181 : vector<16x1xf32>
    %183 = vector.broadcast %182 : vector<16x1xf32> to vector<16x32xf32>
    %184 = arith.subf %174, %183 : vector<16x32xf32>
    %185 = arith.mulf %184, %184 : vector<16x32xf32>
    %cst_88 = arith.constant dense<0.000000e+00> : vector<16xf32>
    %186 = vector.multi_reduction <add>, %185, %cst_88 [1] : vector<16x32xf32> to vector<16xf32>
    %187 = vector.shape_cast %186 : vector<16xf32> to vector<16x1xf32>
    %cst_89 = arith.constant 3.200000e+01 : f32
    %188 = vector.broadcast %cst_89 : f32 to vector<16x1xf32>
    %189 = arith.divf %187, %188 : vector<16x1xf32>
    %190 = vector.broadcast %182 : vector<16x1xf32> to vector<16x32xf32>
    %191 = arith.subf %174, %190 : vector<16x32xf32>
    %cst_90 = arith.constant 9.99999996E-13 : f32
    %192 = vector.broadcast %cst_90 : f32 to vector<16x1xf32>
    %193 = arith.addf %189, %192 : vector<16x1xf32>
    %194 = math.rsqrt %193 : vector<16x1xf32>
    %195 = vector.broadcast %194 : vector<16x1xf32> to vector<16x32xf32>
    %196 = arith.mulf %191, %195 : vector<16x32xf32>
    %197 = vector.broadcast %176 : vector<1x32xf32> to vector<16x32xf32>
    %198 = arith.mulf %196, %197 : vector<16x32xf32>
    %199 = vector.broadcast %178 : vector<1x32xf32> to vector<16x32xf32>
    %200 = arith.addf %198, %199 : vector<16x32xf32>
    %c1_91 = arith.constant 1 : index
    %c0_92 = arith.constant 0 : index
    %c0_93 = arith.constant 0 : index
    %201 = vector.load %arg5[%c1_91, %c0_92, %c0_93] : memref<2x32x96xf32, #tpu.memory_space<vmem>>, vector<1x32x96xf32>
    %202 = vector.shape_cast %201 : vector<1x32x96xf32> to vector<32x96xf32>
    %cst_94 = arith.constant dense<0.000000e+00> : vector<16x96xf32>
    %203 = tpu.matmul %200, %202, %cst_94 {dimension_numbers = #tpu.dot_dimension_numbers<[1], [0], [0], [1], [0, 0, 1, 1], [], []>} : vector<16x32xf32>, vector<32x96xf32>, vector<16x96xf32> -> vector<16x96xf32>
    %c1_95 = arith.constant 1 : index
    %c0_96 = arith.constant 0 : index
    %c0_97 = arith.constant 0 : index
    %204 = vector.load %arg6[%c1_95, %c0_96, %c0_97] : memref<2x1x96xf32, #tpu.memory_space<vmem>>, vector<1x1x96xf32>
    %205 = vector.shape_cast %204 : vector<1x1x96xf32> to vector<1x96xf32>
    %206 = vector.broadcast %205 : vector<1x96xf32> to vector<16x96xf32>
    %207 = arith.addf %203, %206 : vector<16x96xf32>
    %c1_98 = arith.constant 1 : index
    %c0_99 = arith.constant 0 : index
    %c0_100 = arith.constant 0 : index
    %208 = vector.load %arg7[%c1_98, %c0_99, %c0_100] : memref<2x32x32xf32, #tpu.memory_space<vmem>>, vector<1x32x32xf32>
    %209 = vector.shape_cast %208 : vector<1x32x32xf32> to vector<32x32xf32>
    %c1_101 = arith.constant 1 : index
    %c0_102 = arith.constant 0 : index
    %c0_103 = arith.constant 0 : index
    %210 = vector.load %arg8[%c1_101, %c0_102, %c0_103] : memref<2x1x32xf32, #tpu.memory_space<vmem>>, vector<1x1x32xf32>
    %211 = vector.shape_cast %210 : vector<1x1x32xf32> to vector<1x32xf32>
    %c0_104 = arith.constant 0 : index
    %c0_105 = arith.constant 0 : index
    %c0_106 = arith.constant 0 : index
    %212 = vector.load %arg2[%c0_104, %c0_105, %c0_106] : memref<2x1x8xf32, #tpu.memory_space<vmem>>, vector<1x1x8xf32>
    %213 = vector.shape_cast %212 : vector<1x1x8xf32> to vector<1x8xf32>
    %214 = vector.extract_strided_slice %207 {offsets = [0, 0], sizes = [8, 16], strides = [1, 1]} : vector<16x96xf32> to vector<8x16xf32>
    %215 = vector.extract_strided_slice %207 {offsets = [0, 32], sizes = [8, 16], strides = [1, 1]} : vector<16x96xf32> to vector<8x16xf32>
    %216 = vector.extract_strided_slice %207 {offsets = [0, 64], sizes = [8, 16], strides = [1, 1]} : vector<16x96xf32> to vector<8x16xf32>
    %cst_107 = arith.constant dense<0.000000e+00> : vector<8x8xf32>
    %217 = tpu.matmul %214, %215, %cst_107 {dimension_numbers = #tpu.dot_dimension_numbers<[1], [1], [0], [0], [0, 0, 1, 0], [], []>} : vector<8x16xf32>, vector<8x16xf32>, vector<8x8xf32> -> vector<8x8xf32>
    %218 = vector.broadcast %213 : vector<1x8xf32> to vector<8x8xf32>
    %219 = arith.addf %217, %218 : vector<8x8xf32>
    %cst_108 = arith.constant dense<0xFF800000> : vector<8xf32>
    %220 = vector.multi_reduction <maximumf>, %219, %cst_108 [1] : vector<8x8xf32> to vector<8xf32>
    %221 = vector.shape_cast %220 : vector<8xf32> to vector<8x1xf32>
    %222 = vector.broadcast %221 : vector<8x1xf32> to vector<8x8xf32>
    %223 = arith.subf %219, %222 : vector<8x8xf32>
    %224 = math.exp %223 : vector<8x8xf32>
    %cst_109 = arith.constant dense<0.000000e+00> : vector<8xf32>
    %225 = vector.multi_reduction <add>, %224, %cst_109 [1] : vector<8x8xf32> to vector<8xf32>
    %226 = vector.shape_cast %225 : vector<8xf32> to vector<8x1xf32>
    %227 = tpu.reciprocal %226 {approx = true} : vector<8x1xf32> -> vector<8x1xf32>
    %228 = vector.broadcast %227 : vector<8x1xf32> to vector<8x8xf32>
    %229 = arith.mulf %224, %228 : vector<8x8xf32>
    %cst_110 = arith.constant dense<0.000000e+00> : vector<8x16xf32>
    %230 = tpu.matmul %229, %216, %cst_110 {dimension_numbers = #tpu.dot_dimension_numbers<[1], [0], [0], [1], [0, 0, 1, 1], [], []>} : vector<8x8xf32>, vector<8x16xf32>, vector<8x16xf32> -> vector<8x16xf32>
    %231 = vector.extract_strided_slice %209 {offsets = [0, 0], sizes = [16, 32], strides = [1, 1]} : vector<32x32xf32> to vector<16x32xf32>
    %cst_111 = arith.constant dense<0.000000e+00> : vector<8x32xf32>
    %232 = tpu.matmul %230, %231, %cst_111 {dimension_numbers = #tpu.dot_dimension_numbers<[1], [0], [0], [1], [0, 0, 1, 1], [], []>} : vector<8x16xf32>, vector<16x32xf32>, vector<8x32xf32> -> vector<8x32xf32>
    %233 = vector.extract_strided_slice %207 {offsets = [0, 16], sizes = [8, 16], strides = [1, 1]} : vector<16x96xf32> to vector<8x16xf32>
    %234 = vector.extract_strided_slice %207 {offsets = [0, 48], sizes = [8, 16], strides = [1, 1]} : vector<16x96xf32> to vector<8x16xf32>
    %235 = vector.extract_strided_slice %207 {offsets = [0, 80], sizes = [8, 16], strides = [1, 1]} : vector<16x96xf32> to vector<8x16xf32>
    %cst_112 = arith.constant dense<0.000000e+00> : vector<8x8xf32>
    %236 = tpu.matmul %233, %234, %cst_112 {dimension_numbers = #tpu.dot_dimension_numbers<[1], [1], [0], [0], [0, 0, 1, 0], [], []>} : vector<8x16xf32>, vector<8x16xf32>, vector<8x8xf32> -> vector<8x8xf32>
    %237 = vector.broadcast %213 : vector<1x8xf32> to vector<8x8xf32>
    %238 = arith.addf %236, %237 : vector<8x8xf32>
    %cst_113 = arith.constant dense<0xFF800000> : vector<8xf32>
    %239 = vector.multi_reduction <maximumf>, %238, %cst_113 [1] : vector<8x8xf32> to vector<8xf32>
    %240 = vector.shape_cast %239 : vector<8xf32> to vector<8x1xf32>
    %241 = vector.broadcast %240 : vector<8x1xf32> to vector<8x8xf32>
    %242 = arith.subf %238, %241 : vector<8x8xf32>
    %243 = math.exp %242 : vector<8x8xf32>
    %cst_114 = arith.constant dense<0.000000e+00> : vector<8xf32>
    %244 = vector.multi_reduction <add>, %243, %cst_114 [1] : vector<8x8xf32> to vector<8xf32>
    %245 = vector.shape_cast %244 : vector<8xf32> to vector<8x1xf32>
    %246 = tpu.reciprocal %245 {approx = true} : vector<8x1xf32> -> vector<8x1xf32>
    %247 = vector.broadcast %246 : vector<8x1xf32> to vector<8x8xf32>
    %248 = arith.mulf %243, %247 : vector<8x8xf32>
    %cst_115 = arith.constant dense<0.000000e+00> : vector<8x16xf32>
    %249 = tpu.matmul %248, %235, %cst_115 {dimension_numbers = #tpu.dot_dimension_numbers<[1], [0], [0], [1], [0, 0, 1, 1], [], []>} : vector<8x8xf32>, vector<8x16xf32>, vector<8x16xf32> -> vector<8x16xf32>
    %250 = vector.extract_strided_slice %209 {offsets = [16, 0], sizes = [16, 32], strides = [1, 1]} : vector<32x32xf32> to vector<16x32xf32>
    %cst_116 = arith.constant dense<0.000000e+00> : vector<8x32xf32>
    %251 = tpu.matmul %249, %250, %cst_116 {dimension_numbers = #tpu.dot_dimension_numbers<[1], [0], [0], [1], [0, 0, 1, 1], [], []>} : vector<8x16xf32>, vector<16x32xf32>, vector<8x32xf32> -> vector<8x32xf32>
    %252 = arith.addf %232, %251 : vector<8x32xf32>
    %253 = vector.broadcast %211 : vector<1x32xf32> to vector<8x32xf32>
    %254 = arith.addf %252, %253 : vector<8x32xf32>
    %c0_117 = arith.constant 0 : index
    %c0_118 = arith.constant 0 : index
    %255 = vector.load %arg27[%c0_117, %c0_118] : memref<16x32xf32, #tpu.memory_space<vmem>>, vector<8x32xf32>
    tpu.vector_store %arg27[%c0_117, %c0_118], %254 {strides = array<i32>} : memref<16x32xf32, #tpu.memory_space<vmem>>, vector<8x32xf32>,
    %c1_119 = arith.constant 1 : index
    %c0_120 = arith.constant 0 : index
    %c0_121 = arith.constant 0 : index
    %256 = vector.load %arg2[%c1_119, %c0_120, %c0_121] : memref<2x1x8xf32, #tpu.memory_space<vmem>>, vector<1x1x8xf32>
    %257 = vector.shape_cast %256 : vector<1x1x8xf32> to vector<1x8xf32>
    %258 = vector.extract_strided_slice %207 {offsets = [8, 0], sizes = [8, 16], strides = [1, 1]} : vector<16x96xf32> to vector<8x16xf32>
    %259 = vector.extract_strided_slice %207 {offsets = [8, 32], sizes = [8, 16], strides = [1, 1]} : vector<16x96xf32> to vector<8x16xf32>
    %260 = vector.extract_strided_slice %207 {offsets = [8, 64], sizes = [8, 16], strides = [1, 1]} : vector<16x96xf32> to vector<8x16xf32>
    %cst_122 = arith.constant dense<0.000000e+00> : vector<8x8xf32>
    %261 = tpu.matmul %258, %259, %cst_122 {dimension_numbers = #tpu.dot_dimension_numbers<[1], [1], [0], [0], [0, 0, 1, 0], [], []>} : vector<8x16xf32>, vector<8x16xf32>, vector<8x8xf32> -> vector<8x8xf32>
    %262 = vector.broadcast %257 : vector<1x8xf32> to vector<8x8xf32>
    %263 = arith.addf %261, %262 : vector<8x8xf32>
    %cst_123 = arith.constant dense<0xFF800000> : vector<8xf32>
    %264 = vector.multi_reduction <maximumf>, %263, %cst_123 [1] : vector<8x8xf32> to vector<8xf32>
    %265 = vector.shape_cast %264 : vector<8xf32> to vector<8x1xf32>
    %266 = vector.broadcast %265 : vector<8x1xf32> to vector<8x8xf32>
    %267 = arith.subf %263, %266 : vector<8x8xf32>
    %268 = math.exp %267 : vector<8x8xf32>
    %cst_124 = arith.constant dense<0.000000e+00> : vector<8xf32>
    %269 = vector.multi_reduction <add>, %268, %cst_124 [1] : vector<8x8xf32> to vector<8xf32>
    %270 = vector.shape_cast %269 : vector<8xf32> to vector<8x1xf32>
    %271 = tpu.reciprocal %270 {approx = true} : vector<8x1xf32> -> vector<8x1xf32>
    %272 = vector.broadcast %271 : vector<8x1xf32> to vector<8x8xf32>
    %273 = arith.mulf %268, %272 : vector<8x8xf32>
    %cst_125 = arith.constant dense<0.000000e+00> : vector<8x16xf32>
    %274 = tpu.matmul %273, %260, %cst_125 {dimension_numbers = #tpu.dot_dimension_numbers<[1], [0], [0], [1], [0, 0, 1, 1], [], []>} : vector<8x8xf32>, vector<8x16xf32>, vector<8x16xf32> -> vector<8x16xf32>
    %275 = vector.extract_strided_slice %209 {offsets = [0, 0], sizes = [16, 32], strides = [1, 1]} : vector<32x32xf32> to vector<16x32xf32>
    %cst_126 = arith.constant dense<0.000000e+00> : vector<8x32xf32>
    %276 = tpu.matmul %274, %275, %cst_126 {dimension_numbers = #tpu.dot_dimension_numbers<[1], [0], [0], [1], [0, 0, 1, 1], [], []>} : vector<8x16xf32>, vector<16x32xf32>, vector<8x32xf32> -> vector<8x32xf32>
    %277 = vector.extract_strided_slice %207 {offsets = [8, 16], sizes = [8, 16], strides = [1, 1]} : vector<16x96xf32> to vector<8x16xf32>
    %278 = vector.extract_strided_slice %207 {offsets = [8, 48], sizes = [8, 16], strides = [1, 1]} : vector<16x96xf32> to vector<8x16xf32>
    %279 = vector.extract_strided_slice %207 {offsets = [8, 80], sizes = [8, 16], strides = [1, 1]} : vector<16x96xf32> to vector<8x16xf32>
    %cst_127 = arith.constant dense<0.000000e+00> : vector<8x8xf32>
    %280 = tpu.matmul %277, %278, %cst_127 {dimension_numbers = #tpu.dot_dimension_numbers<[1], [1], [0], [0], [0, 0, 1, 0], [], []>} : vector<8x16xf32>, vector<8x16xf32>, vector<8x8xf32> -> vector<8x8xf32>
    %281 = vector.broadcast %257 : vector<1x8xf32> to vector<8x8xf32>
    %282 = arith.addf %280, %281 : vector<8x8xf32>
    %cst_128 = arith.constant dense<0xFF800000> : vector<8xf32>
    %283 = vector.multi_reduction <maximumf>, %282, %cst_128 [1] : vector<8x8xf32> to vector<8xf32>
    %284 = vector.shape_cast %283 : vector<8xf32> to vector<8x1xf32>
    %285 = vector.broadcast %284 : vector<8x1xf32> to vector<8x8xf32>
    %286 = arith.subf %282, %285 : vector<8x8xf32>
    %287 = math.exp %286 : vector<8x8xf32>
    %cst_129 = arith.constant dense<0.000000e+00> : vector<8xf32>
    %288 = vector.multi_reduction <add>, %287, %cst_129 [1] : vector<8x8xf32> to vector<8xf32>
    %289 = vector.shape_cast %288 : vector<8xf32> to vector<8x1xf32>
    %290 = tpu.reciprocal %289 {approx = true} : vector<8x1xf32> -> vector<8x1xf32>
    %291 = vector.broadcast %290 : vector<8x1xf32> to vector<8x8xf32>
    %292 = arith.mulf %287, %291 : vector<8x8xf32>
    %cst_130 = arith.constant dense<0.000000e+00> : vector<8x16xf32>
    %293 = tpu.matmul %292, %279, %cst_130 {dimension_numbers = #tpu.dot_dimension_numbers<[1], [0], [0], [1], [0, 0, 1, 1], [], []>} : vector<8x8xf32>, vector<8x16xf32>, vector<8x16xf32> -> vector<8x16xf32>
    %294 = vector.extract_strided_slice %209 {offsets = [16, 0], sizes = [16, 32], strides = [1, 1]} : vector<32x32xf32> to vector<16x32xf32>
    %cst_131 = arith.constant dense<0.000000e+00> : vector<8x32xf32>
    %295 = tpu.matmul %293, %294, %cst_131 {dimension_numbers = #tpu.dot_dimension_numbers<[1], [0], [0], [1], [0, 0, 1, 1], [], []>} : vector<8x16xf32>, vector<16x32xf32>, vector<8x32xf32> -> vector<8x32xf32>
    %296 = arith.addf %276, %295 : vector<8x32xf32>
    %297 = vector.broadcast %211 : vector<1x32xf32> to vector<8x32xf32>
    %298 = arith.addf %296, %297 : vector<8x32xf32>
    %c8_132 = arith.constant 8 : index
    %c0_133 = arith.constant 0 : index
    %299 = vector.load %arg27[%c8_132, %c0_133] : memref<16x32xf32, #tpu.memory_space<vmem>>, vector<8x32xf32>
    tpu.vector_store %arg27[%c8_132, %c0_133], %298 {strides = array<i32>} : memref<16x32xf32, #tpu.memory_space<vmem>>, vector<8x32xf32>,
    %c0_134 = arith.constant 0 : index
    %c0_135 = arith.constant 0 : index
    %300 = vector.load %arg27[%c0_134, %c0_135] : memref<16x32xf32, #tpu.memory_space<vmem>>, vector<16x32xf32>
    %301 = arith.addf %300, %200 : vector<16x32xf32>
    %c1_136 = arith.constant 1 : index
    %c0_137 = arith.constant 0 : index
    %c0_138 = arith.constant 0 : index
    %302 = vector.load %arg9[%c1_136, %c0_137, %c0_138] : memref<2x1x32xf32, #tpu.memory_space<vmem>>, vector<1x1x32xf32>
    %303 = vector.shape_cast %302 : vector<1x1x32xf32> to vector<1x32xf32>
    %c1_139 = arith.constant 1 : index
    %c0_140 = arith.constant 0 : index
    %c0_141 = arith.constant 0 : index
    %304 = vector.load %arg10[%c1_139, %c0_140, %c0_141] : memref<2x1x32xf32, #tpu.memory_space<vmem>>, vector<1x1x32xf32>
    %305 = vector.shape_cast %304 : vector<1x1x32xf32> to vector<1x32xf32>
    %cst_142 = arith.constant dense<0.000000e+00> : vector<16xf32>
    %306 = vector.multi_reduction <add>, %301, %cst_142 [1] : vector<16x32xf32> to vector<16xf32>
    %307 = vector.shape_cast %306 : vector<16xf32> to vector<16x1xf32>
    %cst_143 = arith.constant 3.200000e+01 : f32
    %308 = vector.broadcast %cst_143 : f32 to vector<16x1xf32>
    %309 = arith.divf %307, %308 : vector<16x1xf32>
    %310 = vector.broadcast %309 : vector<16x1xf32> to vector<16x32xf32>
    %311 = arith.subf %301, %310 : vector<16x32xf32>
    %312 = arith.mulf %311, %311 : vector<16x32xf32>
    %cst_144 = arith.constant dense<0.000000e+00> : vector<16xf32>
    %313 = vector.multi_reduction <add>, %312, %cst_144 [1] : vector<16x32xf32> to vector<16xf32>
    %314 = vector.shape_cast %313 : vector<16xf32> to vector<16x1xf32>
    %cst_145 = arith.constant 3.200000e+01 : f32
    %315 = vector.broadcast %cst_145 : f32 to vector<16x1xf32>
    %316 = arith.divf %314, %315 : vector<16x1xf32>
    %317 = vector.broadcast %309 : vector<16x1xf32> to vector<16x32xf32>
    %318 = arith.subf %301, %317 : vector<16x32xf32>
    %cst_146 = arith.constant 9.99999996E-13 : f32
    %319 = vector.broadcast %cst_146 : f32 to vector<16x1xf32>
    %320 = arith.addf %316, %319 : vector<16x1xf32>
    %321 = math.rsqrt %320 : vector<16x1xf32>
    %322 = vector.broadcast %321 : vector<16x1xf32> to vector<16x32xf32>
    %323 = arith.mulf %318, %322 : vector<16x32xf32>
    %324 = vector.broadcast %303 : vector<1x32xf32> to vector<16x32xf32>
    %325 = arith.mulf %323, %324 : vector<16x32xf32>
    %326 = vector.broadcast %305 : vector<1x32xf32> to vector<16x32xf32>
    %327 = arith.addf %325, %326 : vector<16x32xf32>
    %c1_147 = arith.constant 1 : index
    %c0_148 = arith.constant 0 : index
    %c0_149 = arith.constant 0 : index
    %328 = vector.load %arg11[%c1_147, %c0_148, %c0_149] : memref<2x32x64xf32, #tpu.memory_space<vmem>>, vector<1x32x64xf32>
    %329 = vector.shape_cast %328 : vector<1x32x64xf32> to vector<32x64xf32>
    %cst_150 = arith.constant dense<0.000000e+00> : vector<16x64xf32>
    %330 = tpu.matmul %327, %329, %cst_150 {dimension_numbers = #tpu.dot_dimension_numbers<[1], [0], [0], [1], [0, 0, 1, 1], [], []>} : vector<16x32xf32>, vector<32x64xf32>, vector<16x64xf32> -> vector<16x64xf32>
    %c1_151 = arith.constant 1 : index
    %c0_152 = arith.constant 0 : index
    %c0_153 = arith.constant 0 : index
    %331 = vector.load %arg12[%c1_151, %c0_152, %c0_153] : memref<2x1x64xf32, #tpu.memory_space<vmem>>, vector<1x1x64xf32>
    %332 = vector.shape_cast %331 : vector<1x1x64xf32> to vector<1x64xf32>
    %333 = vector.broadcast %332 : vector<1x64xf32> to vector<16x64xf32>
    %334 = arith.addf %330, %333 : vector<16x64xf32>
    %cst_154 = arith.constant 5.000000e-01 : f32
    %335 = vector.broadcast %cst_154 : f32 to vector<16x64xf32>
    %336 = arith.mulf %335, %334 : vector<16x64xf32>
    %cst_155 = arith.constant 0.707106769 : f32
    %337 = vector.broadcast %cst_155 : f32 to vector<16x64xf32>
    %338 = arith.mulf %334, %337 : vector<16x64xf32>
    %339 = math.erf %338 : vector<16x64xf32>
    %cst_156 = arith.constant 1.000000e+00 : f32
    %340 = vector.broadcast %cst_156 : f32 to vector<16x64xf32>
    %341 = arith.addf %340, %339 : vector<16x64xf32>
    %342 = arith.mulf %336, %341 : vector<16x64xf32>
    %c1_157 = arith.constant 1 : index
    %c0_158 = arith.constant 0 : index
    %c0_159 = arith.constant 0 : index
    %343 = vector.load %arg13[%c1_157, %c0_158, %c0_159] : memref<2x64x32xf32, #tpu.memory_space<vmem>>, vector<1x64x32xf32>
    %344 = vector.shape_cast %343 : vector<1x64x32xf32> to vector<64x32xf32>
    %cst_160 = arith.constant dense<0.000000e+00> : vector<16x32xf32>
    %345 = tpu.matmul %342, %344, %cst_160 {dimension_numbers = #tpu.dot_dimension_numbers<[1], [0], [0], [1], [0, 0, 1, 1], [], []>} : vector<16x64xf32>, vector<64x32xf32>, vector<16x32xf32> -> vector<16x32xf32>
    %c1_161 = arith.constant 1 : index
    %c0_162 = arith.constant 0 : index
    %c0_163 = arith.constant 0 : index
    %346 = vector.load %arg14[%c1_161, %c0_162, %c0_163] : memref<2x1x32xf32, #tpu.memory_space<vmem>>, vector<1x1x32xf32>
    %347 = vector.shape_cast %346 : vector<1x1x32xf32> to vector<1x32xf32>
    %348 = vector.broadcast %347 : vector<1x32xf32> to vector<16x32xf32>
    %349 = arith.addf %345, %348 : vector<16x32xf32>
    %350 = arith.addf %349, %327 : vector<16x32xf32>
    %c1_164 = arith.constant 1 : index
    %c0_165 = arith.constant 0 : index
    %c0_166 = arith.constant 0 : index
    %351 = vector.load %arg15[%c1_164, %c0_165, %c0_166] : memref<2x1x32xf32, #tpu.memory_space<vmem>>, vector<1x1x32xf32>
    %352 = vector.shape_cast %351 : vector<1x1x32xf32> to vector<1x32xf32>
    %c1_167 = arith.constant 1 : index
    %c0_168 = arith.constant 0 : index
    %c0_169 = arith.constant 0 : index
    %353 = vector.load %arg16[%c1_167, %c0_168, %c0_169] : memref<2x1x32xf32, #tpu.memory_space<vmem>>, vector<1x1x32xf32>
    %354 = vector.shape_cast %353 : vector<1x1x32xf32> to vector<1x32xf32>
    %cst_170 = arith.constant dense<0.000000e+00> : vector<16xf32>
    %355 = vector.multi_reduction <add>, %350, %cst_170 [1] : vector<16x32xf32> to vector<16xf32>
    %356 = vector.shape_cast %355 : vector<16xf32> to vector<16x1xf32>
    %cst_171 = arith.constant 3.200000e+01 : f32
    %357 = vector.broadcast %cst_171 : f32 to vector<16x1xf32>
    %358 = arith.divf %356, %357 : vector<16x1xf32>
    %359 = vector.broadcast %358 : vector<16x1xf32> to vector<16x32xf32>
    %360 = arith.subf %350, %359 : vector<16x32xf32>
    %361 = arith.mulf %360, %360 : vector<16x32xf32>
    %cst_172 = arith.constant dense<0.000000e+00> : vector<16xf32>
    %362 = vector.multi_reduction <add>, %361, %cst_172 [1] : vector<16x32xf32> to vector<16xf32>
    %363 = vector.shape_cast %362 : vector<16xf32> to vector<16x1xf32>
    %cst_173 = arith.constant 3.200000e+01 : f32
    %364 = vector.broadcast %cst_173 : f32 to vector<16x1xf32>
    %365 = arith.divf %363, %364 : vector<16x1xf32>
    %366 = vector.broadcast %358 : vector<16x1xf32> to vector<16x32xf32>
    %367 = arith.subf %350, %366 : vector<16x32xf32>
    %cst_174 = arith.constant 9.99999996E-13 : f32
    %368 = vector.broadcast %cst_174 : f32 to vector<16x1xf32>
    %369 = arith.addf %365, %368 : vector<16x1xf32>
    %370 = math.rsqrt %369 : vector<16x1xf32>
    %371 = vector.broadcast %370 : vector<16x1xf32> to vector<16x32xf32>
    %372 = arith.mulf %367, %371 : vector<16x32xf32>
    %373 = vector.broadcast %352 : vector<1x32xf32> to vector<16x32xf32>
    %374 = arith.mulf %372, %373 : vector<16x32xf32>
    %375 = vector.broadcast %354 : vector<1x32xf32> to vector<16x32xf32>
    %376 = arith.addf %374, %375 : vector<16x32xf32>
    %c0_175 = arith.constant 0 : index
    %c0_176 = arith.constant 0 : index
    %377 = vector.load %arg17[%c0_175, %c0_176] : memref<2x16xf32, #tpu.memory_space<vmem>>, vector<2x16xf32>
    %cst_177 = arith.constant dense<0.000000e+00> : vector<2x32xf32>
    %378 = tpu.matmul %377, %376, %cst_177 {dimension_numbers = #tpu.dot_dimension_numbers<[1], [0], [0], [1], [0, 0, 1, 1], [], []>} : vector<2x16xf32>, vector<16x32xf32>, vector<2x32xf32> -> vector<2x32xf32>
    %c0_178 = arith.constant 0 : index
    %c0_179 = arith.constant 0 : index
    %379 = vector.load %arg18[%c0_178, %c0_179] : memref<32x32xf32, #tpu.memory_space<vmem>>, vector<32x32xf32>
    %cst_180 = arith.constant dense<0.000000e+00> : vector<2x32xf32>
    %380 = tpu.matmul %378, %379, %cst_180 {dimension_numbers = #tpu.dot_dimension_numbers<[1], [0], [0], [1], [0, 0, 1, 1], [], []>} : vector<2x32xf32>, vector<32x32xf32>, vector<2x32xf32> -> vector<2x32xf32>
    %c0_181 = arith.constant 0 : index
    %c0_182 = arith.constant 0 : index
    %381 = vector.load %arg19[%c0_181, %c0_182] : memref<1x32xf32, #tpu.memory_space<vmem>>, vector<1x32xf32>
    %382 = vector.broadcast %381 : vector<1x32xf32> to vector<2x32xf32>
    %383 = arith.addf %380, %382 : vector<2x32xf32>
    %384 = math.tanh %383 : vector<2x32xf32>
    %c0_183 = arith.constant 0 : index
    %c0_184 = arith.constant 0 : index
    %385 = vector.load %arg20[%c0_183, %c0_184] : memref<32x3xf32, #tpu.memory_space<vmem>>, vector<32x3xf32>
    %cst_185 = arith.constant dense<0.000000e+00> : vector<2x3xf32>
    %386 = tpu.matmul %384, %385, %cst_185 {dimension_numbers = #tpu.dot_dimension_numbers<[1], [0], [0], [1], [0, 0, 1, 1], [], []>} : vector<2x32xf32>, vector<32x3xf32>, vector<2x3xf32> -> vector<2x3xf32>
    %c0_186 = arith.constant 0 : index
    %c0_187 = arith.constant 0 : index
    %387 = vector.load %arg21[%c0_186, %c0_187] : memref<1x3xf32, #tpu.memory_space<vmem>>, vector<1x3xf32>
    %388 = vector.broadcast %387 : vector<1x3xf32> to vector<2x3xf32>
    %389 = arith.addf %386, %388 : vector<2x3xf32>
    %c0_188 = arith.constant 0 : index
    %c0_189 = arith.constant 0 : index
    %390 = vector.load %arg25[%c0_188, %c0_189] : memref<2x3xf32, #tpu.memory_space<vmem>>, vector<2x3xf32>
    tpu.vector_store %arg25[%c0_188, %c0_189], %389 {strides = array<i32>} : memref<2x3xf32, #tpu.memory_space<vmem>>, vector<2x3xf32>,
    %c0_190 = arith.constant 0 : index
    %c0_191 = arith.constant 0 : index
    %391 = vector.load %arg24[%c0_190, %c0_191] : memref<8x16xf32, #tpu.memory_space<vmem>>, vector<8x16xf32>
    %cst_192 = arith.constant dense<0.000000e+00> : vector<8x32xf32>
    %392 = tpu.matmul %391, %376, %cst_192 {dimension_numbers = #tpu.dot_dimension_numbers<[1], [0], [0], [1], [0, 0, 1, 1], [], []>} : vector<8x16xf32>, vector<16x32xf32>, vector<8x32xf32> -> vector<8x32xf32>
    %c0_193 = arith.constant 0 : index
    %c0_194 = arith.constant 0 : index
    %393 = vector.load %arg22[%c0_193, %c0_194] : memref<32x4xf32, #tpu.memory_space<vmem>>, vector<32x4xf32>
    %cst_195 = arith.constant dense<0.000000e+00> : vector<8x4xf32>
    %394 = tpu.matmul %392, %393, %cst_195 {dimension_numbers = #tpu.dot_dimension_numbers<[1], [0], [0], [1], [0, 0, 1, 1], [], []>} : vector<8x32xf32>, vector<32x4xf32>, vector<8x4xf32> -> vector<8x4xf32>
    %c0_196 = arith.constant 0 : index
    %c0_197 = arith.constant 0 : index
    %395 = vector.load %arg23[%c0_196, %c0_197] : memref<1x4xf32, #tpu.memory_space<vmem>>, vector<1x4xf32>
    %396 = vector.broadcast %395 : vector<1x4xf32> to vector<8x4xf32>
    %397 = arith.addf %394, %396 : vector<8x4xf32>
    %c0_198 = arith.constant 0 : index
    %c0_199 = arith.constant 0 : index
    %398 = vector.load %arg26[%c0_198, %c0_199] : memref<8x4xf32, #tpu.memory_space<vmem>>, vector<8x4xf32>
    tpu.vector_store %arg26[%c0_198, %c0_199], %397 {strides = array<i32>} : memref<8x4xf32, #tpu.memory_space<vmem>>, vector<8x4xf32>,
    return
  }
  func.func @transform_0(%arg0: i32) -> (i32, i32) {
    %c0_i32 = arith.constant 0 : i32
    %c0_i32_0 = arith.constant 0 : i32
    %c0_i32_1 = arith.constant 0 : i32
    return %c0_i32, %c0_i32_0 : i32, i32
  }
  func.func @transform_1(%arg0: i32) -> (i32, i32, i32) {
    %c0_i32 = arith.constant 0 : i32
    %c0_i32_0 = arith.constant 0 : i32
    %c0_i32_1 = arith.constant 0 : i32
    %c0_i32_2 = arith.constant 0 : i32
    return %c0_i32, %c0_i32_0, %c0_i32_1 : i32, i32, i32
  }
  func.func @transform_2(%arg0: i32) -> (i32, i32) {
    %c0_i32 = arith.constant 0 : i32
    %c0_i32_0 = arith.constant 0 : i32
    %c0_i32_1 = arith.constant 0 : i32
    return %c0_i32, %c0_i32_0 : i32, i32
  }
  func.func @transform_3(%arg0: i32) -> (i32, i32) {
    %c0_i32 = arith.constant 0 : i32
    %c0_i32_0 = arith.constant 0 : i32
    %c0_i32_1 = arith.constant 0 : i32
    return %c0_i32, %c0_i32_0 : i32, i32
  }
  func.func @transform_4(%arg0: i32) -> (i32, i32, i32) {
    %c0_i32 = arith.constant 0 : i32
    %c0_i32_0 = arith.constant 0 : i32
    %c0_i32_1 = arith.constant 0 : i32
    %c0_i32_2 = arith.constant 0 : i32
    return %c0_i32, %c0_i32_0, %c0_i32_1 : i32, i32, i32
  }
  func.func @transform_5(%arg0: i32) -> (i32, i32, i32) {
    %c0_i32 = arith.constant 0 : i32
    %c0_i32_0 = arith.constant 0 : i32
    %c0_i32_1 = arith.constant 0 : i32
    %c0_i32_2 = arith.constant 0 : i32
    return %c0_i32, %c0_i32_0, %c0_i32_1 : i32, i32, i32
  }
  func.func @transform_6(%arg0: i32) -> (i32, i32, i32) {
    %c0_i32 = arith.constant 0 : i32
    %c0_i32_0 = arith.constant 0 : i32
    %c0_i32_1 = arith.constant 0 : i32
    %c0_i32_2 = arith.constant 0 : i32
    return %c0_i32, %c0_i32_0, %c0_i32_1 : i32, i32, i32
  }
  func.func @transform_7(%arg0: i32) -> (i32, i32, i32) {
    %c0_i32 = arith.constant 0 : i32
    %c0_i32_0 = arith.constant 0 : i32
    %c0_i32_1 = arith.constant 0 : i32
    %c0_i32_2 = arith.constant 0 : i32
    return %c0_i32, %c0_i32_0, %c0_i32_1 : i32, i32, i32
  }
  func.func @transform_8(%arg0: i32) -> (i32, i32, i32) {
    %c0_i32 = arith.constant 0 : i32
    %c0_i32_0 = arith.constant 0 : i32
    %c0_i32_1 = arith.constant 0 : i32
    %c0_i32_2 = arith.constant 0 : i32
    return %c0_i32, %c0_i32_0, %c0_i32_1 : i32, i32, i32
  }
  func.func @transform_9(%arg0: i32) -> (i32, i32, i32) {
    %c0_i32 = arith.constant 0 : i32
    %c0_i32_0 = arith.constant 0 : i32
    %c0_i32_1 = arith.constant 0 : i32
    %c0_i32_2 = arith.constant 0 : i32
    return %c0_i32, %c0_i32_0, %c0_i32_1 : i32, i32, i32
  }
  func.func @transform_10(%arg0: i32) -> (i32, i32, i32) {
    %c0_i32 = arith.constant 0 : i32
    %c0_i32_0 = arith.constant 0 : i32
    %c0_i32_1 = arith.constant 0 : i32
    %c0_i32_2 = arith.constant 0 : i32
    return %c0_i32, %c0_i32_0, %c0_i32_1 : i32, i32, i32
  }
  func.func @transform_11(%arg0: i32) -> (i32, i32, i32) {
    %c0_i32 = arith.constant 0 : i32
    %c0_i32_0 = arith.constant 0 : i32
    %c0_i32_1 = arith.constant 0 : i32
    %c0_i32_2 = arith.constant 0 : i32
    return %c0_i32, %c0_i32_0, %c0_i32_1 : i32, i32, i32
  }
  func.func @transform_12(%arg0: i32) -> (i32, i32, i32) {
    %c0_i32 = arith.constant 0 : i32
    %c0_i32_0 = arith.constant 0 : i32
    %c0_i32_1 = arith.constant 0 : i32
    %c0_i32_2 = arith.constant 0 : i32
    return %c0_i32, %c0_i32_0, %c0_i32_1 : i32, i32, i32
  }
  func.func @transform_13(%arg0: i32) -> (i32, i32, i32) {
    %c0_i32 = arith.constant 0 : i32
    %c0_i32_0 = arith.constant 0 : i32
    %c0_i32_1 = arith.constant 0 : i32
    %c0_i32_2 = arith.constant 0 : i32
    return %c0_i32, %c0_i32_0, %c0_i32_1 : i32, i32, i32
  }
  func.func @transform_14(%arg0: i32) -> (i32, i32, i32) {
    %c0_i32 = arith.constant 0 : i32
    %c0_i32_0 = arith.constant 0 : i32
    %c0_i32_1 = arith.constant 0 : i32
    %c0_i32_2 = arith.constant 0 : i32
    return %c0_i32, %c0_i32_0, %c0_i32_1 : i32, i32, i32
  }
  func.func @transform_15(%arg0: i32) -> (i32, i32, i32) {
    %c0_i32 = arith.constant 0 : i32
    %c0_i32_0 = arith.constant 0 : i32
    %c0_i32_1 = arith.constant 0 : i32
    %c0_i32_2 = arith.constant 0 : i32
    return %c0_i32, %c0_i32_0, %c0_i32_1 : i32, i32, i32
  }
  func.func @transform_16(%arg0: i32) -> (i32, i32) {
    %c0_i32 = arith.constant 0 : i32
    %c0_i32_0 = arith.constant 0 : i32
    %c0_i32_1 = arith.constant 0 : i32
    return %c0_i32, %c0_i32_0 : i32, i32
  }
  func.func @transform_17(%arg0: i32) -> (i32, i32) {
    %c0_i32 = arith.constant 0 : i32
    %c0_i32_0 = arith.constant 0 : i32
    %c0_i32_1 = arith.constant 0 : i32
    return %c0_i32, %c0_i32_0 : i32, i32
  }
  func.func @transform_18(%arg0: i32) -> (i32, i32) {
    %c0_i32 = arith.constant 0 : i32
    %c0_i32_0 = arith.constant 0 : i32
    %c0_i32_1 = arith.constant 0 : i32
    return %c0_i32, %c0_i32_0 : i32, i32
  }
  func.func @transform_19(%arg0: i32) -> (i32, i32) {
    %c0_i32 = arith.constant 0 : i32
    %c0_i32_0 = arith.constant 0 : i32
    %c0_i32_1 = arith.constant 0 : i32
    return %c0_i32, %c0_i32_0 : i32, i32
  }
  func.func @transform_20(%arg0: i32) -> (i32, i32) {
    %c0_i32 = arith.constant 0 : i32
    %c0_i32_0 = arith.constant 0 : i32
    %c0_i32_1 = arith.constant 0 : i32
    return %c0_i32, %c0_i32_0 : i32, i32
  }
  func.func @transform_21(%arg0: i32) -> (i32, i32) {
    %c0_i32 = arith.constant 0 : i32
    %c0_i32_0 = arith.constant 0 : i32
    %c0_i32_1 = arith.constant 0 : i32
    return %c0_i32, %c0_i32_0 : i32, i32
  }
  func.func @transform_22(%arg0: i32) -> (i32, i32) {
    %c0_i32 = arith.constant 0 : i32
    %c0_i32_0 = arith.constant 0 : i32
    %c0_i32_1 = arith.constant 0 : i32
    return %c0_i32, %c0_i32_0 : i32, i32
  }
  func.func @transform_23(%arg0: i32) -> (i32, i32) {
    %c0_i32 = arith.constant 0 : i32
    %c0_i32_0 = arith.constant 0 : i32
    %c0_i32_1 = arith.constant 0 : i32
    return %c0_i32, %c0_i32_0 : i32, i32
  }
  func.func @transform_24(%arg0: i32) -> (i32, i32) {
    %c0_i32 = arith.constant 0 : i32
    %c0_i32_0 = arith.constant 0 : i32
    %c0_i32_1 = arith.constant 0 : i32
    return %c0_i32, %c0_i32_0 : i32, i32
  }
  func.func @transform_25(%arg0: i32) -> (i32, i32) {
    %c0_i32 = arith.constant 0 : i32
    %c0_i32_0 = arith.constant 0 : i32
    %c0_i32_1 = arith.constant 0 : i32
    return %c0_i32, %c0_i32_0 : i32, i32
  }
}

</mosaic_0001>

<llo_original>
// kernel: tpu_custom_call.1
$region0: #{tpu_custom_call.1}
  #allocation0 [shape = 'u32[]', space=smem, size = 0x4, offset = 0x4, fixed_abs, tag = 'smem constant byte address 0x4 - core index']
  #allocation1 [shape = 'u32[144,128]{1,0:T(1,128)}', space=vmem, size = 0x12000, scoped, tag = 'internal scratch']
  #allocation2 [shape = 'f32[16,32]{1,0:T(8,128)}', space=vmem, size = 0x2000, scoped, tag = 'scratch operand']
  %s0 = inlined_call_operand.vmem [shape: f32[16,32], index: 0, kind: input, shape index: {}]
  %s1 = inlined_call_operand.hbm [shape: f32[2,1,8], index: 1, kind: input, shape index: {}]
  %s2 = inlined_call_operand.hbm [shape: f32[1,32], index: 2, kind: input, shape index: {}]
  %s3 = inlined_call_operand.hbm [shape: f32[1,32], index: 3, kind: input, shape index: {}]
  %s4 = inlined_call_operand.vmem [shape: f32[2,32,96], index: 4, kind: input, shape index: {}]
  %s5 = inlined_call_operand.hbm [shape: f32[2,1,96], index: 5, kind: input, shape index: {}]
  %s6 = inlined_call_operand.vmem [shape: f32[2,32,32], index: 6, kind: input, shape index: {}]
  %s7 = inlined_call_operand.hbm [shape: f32[2,1,32], index: 7, kind: input, shape index: {}]
  %s8 = inlined_call_operand.hbm [shape: f32[2,1,32], index: 8, kind: input, shape index: {}]
  %s9 = inlined_call_operand.hbm [shape: f32[2,1,32], index: 9, kind: input, shape index: {}]
  %s10 = inlined_call_operand.vmem [shape: f32[2,32,64], index: 10, kind: input, shape index: {}]
  %s11 = inlined_call_operand.hbm [shape: f32[2,1,64], index: 11, kind: input, shape index: {}]
  %s12 = inlined_call_operand.vmem [shape: f32[2,64,32], index: 12, kind: input, shape index: {}]
  %s13 = inlined_call_operand.hbm [shape: f32[2,1,32], index: 13, kind: input, shape index: {}]
  %s14 = inlined_call_operand.hbm [shape: f32[2,1,32], index: 14, kind: input, shape index: {}]
  %s15 = inlined_call_operand.hbm [shape: f32[2,1,32], index: 15, kind: input, shape index: {}]
  %s16 = inlined_call_operand.vmem [shape: f32[2,16], index: 16, kind: input, shape index: {}]
  %s17 = inlined_call_operand.vmem [shape: f32[32,32], index: 17, kind: input, shape index: {}]
  %s18 = inlined_call_operand.vmem [shape: f32[1,32], index: 18, kind: input, shape index: {}]
  %s19 = inlined_call_operand.vmem [shape: f32[32,3], index: 19, kind: input, shape index: {}]
  %s20 = inlined_call_operand.vmem [shape: f32[1,3], index: 20, kind: input, shape index: {}]
  %s21 = inlined_call_operand.vmem [shape: f32[32,4], index: 21, kind: input, shape index: {}]
  %s22 = inlined_call_operand.vmem [shape: f32[1,4], index: 22, kind: input, shape index: {}]
  %s23 = inlined_call_operand.vmem [shape: f32[8,16], index: 23, kind: input, shape index: {}]
  %s24 = inlined_call_operand.hbm [shape: f32[2,3], index: 24, kind: output, shape index: {0}]
  %s25 = inlined_call_operand.vmem [shape: f32[8,4], index: 25, kind: output, shape index: {1}]
  %26 = xla_tuple %s24, %s25
  %s27 = sld [smem:[#allocation0]]
  $region158: #{tpu_custom_call.1} parent=0
    _
  %s29 = ssub.s32 1, %s27
  %s30 = scalar_select 0, %s29, %s27
  $region1: #{tpu_custom_call.1} parent=0
    #allocation3 [shape = 'u8[1024]{0}', space=vmem, size = 0x400, scoped, tag = 'input window, operand 1, single buffered']
    #allocation4 [shape = 's32[1]{0}', space=sflag, size = 0x4, scoped, tag = 'scoped memory for tpu_custom_call.1']
    #allocation5 [shape = 's32[1]{0}', space=sflag, size = 0x4, scoped, tag = 'scoped memory for tpu_custom_call.1']
    #allocation6 [shape = 'u8[512]{0}', space=vmem, size = 0x400, scoped, tag = 'input window, operand 2, single buffered']
    #allocation7 [shape = 's32[1]{0}', space=sflag, size = 0x4, scoped, tag = 'scoped memory for tpu_custom_call.1']
    #allocation8 [shape = 'u8[512]{0}', space=vmem, size = 0x400, scoped, tag = 'input window, operand 3, single buffered']
    #allocation9 [shape = 'u8[1024]{0}', space=vmem, size = 0x400, scoped, tag = 'input window, operand 5, single buffered']
    #allocation10 [shape = 's32[1]{0}', space=sflag, size = 0x4, scoped, tag = 'scoped memory for tpu_custom_call.1']
    #allocation11 [shape = 'u8[1024]{0}', space=vmem, size = 0x400, scoped, tag = 'input window, operand 7, single buffered']
    #allocation12 [shape = 'u8[1024]{0}', space=vmem, size = 0x400, scoped, tag = 'input window, operand 8, single buffered']
    #allocation13 [shape = 's32[1]{0}', space=sflag, size = 0x4, scoped, tag = 'scoped memory for tpu_custom_call.1']
    #allocation14 [shape = 'u8[1024]{0}', space=vmem, size = 0x400, scoped, tag = 'input window, operand 9, single buffered']
    #allocation15 [shape = 'u8[1024]{0}', space=vmem, size = 0x400, scoped, tag = 'input window, operand 11, single buffered']
    #allocation16 [shape = 's32[1]{0}', space=sflag, size = 0x4, scoped, tag = 'scoped memory for tpu_custom_call.1']
    #allocation17 [shape = 'u8[1024]{0}', space=vmem, size = 0x400, scoped, tag = 'input window, operand 13, single buffered']
    #allocation18 [shape = 'u8[1024]{0}', space=vmem, size = 0x400, scoped, tag = 'input window, operand 14, single buffered']
    #allocation19 [shape = 's32[1]{0}', space=sflag, size = 0x4, scoped, tag = 'scoped memory for tpu_custom_call.1']
    #allocation20 [shape = 'u8[1024]{0}', space=vmem, size = 0x400, scoped, tag = 'input window, operand 15, single buffered']
    #allocation21 [shape = 'u8[1024]{0}', space=vmem, size = 0x400, scoped, tag = 'output window, operand 0, single buffered']
    %31 = vsyncpa [#allocation4], 0
    %32 = vsyncpa [#allocation7], 0
    %33 = vsyncpa [#allocation10], 0
    %34 = vsyncpa [#allocation13], 0
    %35 = vsyncpa [#allocation16], 0
    %36 = vsyncpa [#allocation19], 0
    %37 = vsyncpa [#allocation5], 0
    // Predicated region
    $region2: #{tpu_custom_call.1} parent=1 // pred_check
      _
    $region3: #{tpu_custom_call.1} parent=1 // pred_check_branch
      %39 = sbr.rel (0) target = $region5
    $region4: #{tpu_custom_call.1} parent=1 // pred_region
      _
    $region5: #{tpu_custom_call.1} parent=1 // pred_fallthru
      _
    // Predicated region
    $region6: #{tpu_custom_call.1} parent=1 // pred_check
      _
    $region7: #{tpu_custom_call.1} parent=1 // pred_check_branch
      %41 = sbr.rel (0) target = $region9
    $region8: #{tpu_custom_call.1} parent=1 // pred_region
      %s43 = ssub.s32 32, 32
      %44 = vsyncadd [#allocation4], %s43
      %s45 = sshll.u32 [#allocation3], 4
      %s46 = int_to_ptr.vmem [resolvable:$true] %s45
      %51 = dma.hbm_to_vmem [thread:$0]  %s1, 32, %s46, [#allocation4], 16, 16, 1
    $region9: #{tpu_custom_call.1} parent=1 // pred_fallthru
      _
    // Predicated region
    $region10: #{tpu_custom_call.1} parent=1 // pred_check
      _
    $region11: #{tpu_custom_call.1} parent=1 // pred_check_branch
      %53 = sbr.rel (0) target = $region13
    $region12: #{tpu_custom_call.1} parent=1 // pred_region
      %s55 = ssub.s32 16, 16
      %56 = vsyncadd [#allocation7], %s55
      %s58 = sshll.u32 [#allocation6], 4
      %s59 = int_to_ptr.vmem [resolvable:$true] %s58
      %61 = dma.hbm_to_vmem [thread:$0]  %s2, 16, %s59, [#allocation7]
    $region13: #{tpu_custom_call.1} parent=1 // pred_fallthru
      _
    // Predicated region
    $region14: #{tpu_custom_call.1} parent=1 // pred_check
      _
    $region15: #{tpu_custom_call.1} parent=1 // pred_check_branch
      %63 = sbr.rel (0) target = $region17
    $region16: #{tpu_custom_call.1} parent=1 // pred_region
      %s65 = ssub.s32 16, 16
      %66 = vsyncadd [#allocation7], %s65
      %s68 = sshll.u32 [#allocation8], 4
      %s69 = int_to_ptr.vmem [resolvable:$true] %s68
      %71 = dma.hbm_to_vmem [thread:$0]  %s3, 16, %s69, [#allocation7]
    $region17: #{tpu_custom_call.1} parent=1 // pred_fallthru
      _
    // Predicated region
    $region18: #{tpu_custom_call.1} parent=1 // pred_check
      _
    $region19: #{tpu_custom_call.1} parent=1 // pred_check_branch
      %73 = sbr.rel (0) target = $region21
    $region20: #{tpu_custom_call.1} parent=1 // pred_region
      _
    $region21: #{tpu_custom_call.1} parent=1 // pred_fallthru
      _
    // Predicated region
    $region22: #{tpu_custom_call.1} parent=1 // pred_check
      _
    $region23: #{tpu_custom_call.1} parent=1 // pred_check_branch
      %75 = sbr.rel (0) target = $region25
    $region24: #{tpu_custom_call.1} parent=1 // pred_region
      %s77 = ssub.s32 32, 32
      %78 = vsyncadd [#allocation10], %s77
      %s79 = sshll.u32 [#allocation9], 4
      %s80 = int_to_ptr.vmem [resolvable:$true] %s79
      %85 = dma.hbm_to_vmem [thread:$0]  %s5, 32, %s80, [#allocation10], 16, 16, 1
    $region25: #{tpu_custom_call.1} parent=1 // pred_fallthru
      _
    // Predicated region
    $region26: #{tpu_custom_call.1} parent=1 // pred_check
      _
    $region27: #{tpu_custom_call.1} parent=1 // pred_check_branch
      %87 = sbr.rel (0) target = $region29
    $region28: #{tpu_custom_call.1} parent=1 // pred_region
      _
    $region29: #{tpu_custom_call.1} parent=1 // pred_fallthru
      _
    // Predicated region
    $region30: #{tpu_custom_call.1} parent=1 // pred_check
      _
    $region31: #{tpu_custom_call.1} parent=1 // pred_check_branch
      %89 = sbr.rel (0) target = $region33
    $region32: #{tpu_custom_call.1} parent=1 // pred_region
      %s91 = ssub.s32 32, 32
      %92 = vsyncadd [#allocation10], %s91
      %s93 = sshll.u32 [#allocation11], 4
      %s94 = int_to_ptr.vmem [resolvable:$true] %s93
      %99 = dma.hbm_to_vmem [thread:$0]  %s7, 32, %s94, [#allocation10], 16, 16, 1
    $region33: #{tpu_custom_call.1} parent=1 // pred_fallthru
      _
    // Predicated region
    $region34: #{tpu_custom_call.1} parent=1 // pred_check
      _
    $region35: #{tpu_custom_call.1} parent=1 // pred_check_branch
      %101 = sbr.rel (0) target = $region37
    $region36: #{tpu_custom_call.1} parent=1 // pred_region
      %s103 = ssub.s32 32, 32
      %104 = vsyncadd [#allocation13], %s103
      %s105 = sshll.u32 [#allocation12], 4
      %s106 = int_to_ptr.vmem [resolvable:$true] %s105
      %111 = dma.hbm_to_vmem [thread:$0]  %s8, 32, %s106, [#allocation13], 16, 16, 1
    $region37: #{tpu_custom_call.1} parent=1 // pred_fallthru
      _
    // Predicated region
    $region38: #{tpu_custom_call.1} parent=1 // pred_check
      _
    $region39: #{tpu_custom_call.1} parent=1 // pred_check_branch
      %113 = sbr.rel (0) target = $region41
    $region40: #{tpu_custom_call.1} parent=1 // pred_region
      %s115 = ssub.s32 32, 32
      %116 = vsyncadd [#allocation13], %s115
      %s117 = sshll.u32 [#allocation14], 4
      %s118 = int_to_ptr.vmem [resolvable:$true] %s117
      %123 = dma.hbm_to_vmem [thread:$0]  %s9, 32, %s118, [#allocation13], 16, 16, 1
    $region41: #{tpu_custom_call.1} parent=1 // pred_fallthru
      _
    // Predicated region
    $region42: #{tpu_custom_call.1} parent=1 // pred_check
      _
    $region43: #{tpu_custom_call.1} parent=1 // pred_check_branch
      %125 = sbr.rel (0) target = $region45
    $region44: #{tpu_custom_call.1} parent=1 // pred_region
      _
    $region45: #{tpu_custom_call.1} parent=1 // pred_fallthru
      _
    // Predicated region
    $region46: #{tpu_custom_call.1} parent=1 // pred_check
      _
    $region47: #{tpu_custom_call.1} parent=1 // pred_check_branch
      %127 = sbr.rel (0) target = $region49
    $region48: #{tpu_custom_call.1} parent=1 // pred_region
      %s129 = ssub.s32 32, 32
      %130 = vsyncadd [#allocation16], %s129
      %s131 = sshll.u32 [#allocation15], 4
      %s132 = int_to_ptr.vmem [resolvable:$true] %s131
      %137 = dma.hbm_to_vmem [thread:$0]  %s11, 32, %s132, [#allocation16], 16, 16, 1
    $region49: #{tpu_custom_call.1} parent=1 // pred_fallthru
      _
    // Predicated region
    $region50: #{tpu_custom_call.1} parent=1 // pred_check
      _
    $region51: #{tpu_custom_call.1} parent=1 // pred_check_branch
      %139 = sbr.rel (0) target = $region53
    $region52: #{tpu_custom_call.1} parent=1 // pred_region
      _
    $region53: #{tpu_custom_call.1} parent=1 // pred_fallthru
      _
    // Predicated region
    $region54: #{tpu_custom_call.1} parent=1 // pred_check
      _
    $region55: #{tpu_custom_call.1} parent=1 // pred_check_branch
      %141 = sbr.rel (0) target = $region57
    $region56: #{tpu_custom_call.1} parent=1 // pred_region
      %s143 = ssub.s32 32, 32
      %144 = vsyncadd [#allocation16], %s143
      %s145 = sshll.u32 [#allocation17], 4
      %s146 = int_to_ptr.vmem [resolvable:$true] %s145
      %151 = dma.hbm_to_vmem [thread:$0]  %s13, 32, %s146, [#allocation16], 16, 16, 1
    $region57: #{tpu_custom_call.1} parent=1 // pred_fallthru
      _
    // Predicated region
    $region58: #{tpu_custom_call.1} parent=1 // pred_check
      _
    $region59: #{tpu_custom_call.1} parent=1 // pred_check_branch
      %153 = sbr.rel (0) target = $region61
    $region60: #{tpu_custom_call.1} parent=1 // pred_region
      %s155 = ssub.s32 32, 32
      %156 = vsyncadd [#allocation19], %s155
      %s157 = sshll.u32 [#allocation18], 4
      %s158 = int_to_ptr.vmem [resolvable:$true] %s157
      %163 = dma.hbm_to_vmem [thread:$0]  %s14, 32, %s158, [#allocation19], 16, 16, 1
    $region61: #{tpu_custom_call.1} parent=1 // pred_fallthru
      _
    // Predicated region
    $region62: #{tpu_custom_call.1} parent=1 // pred_check
      _
    $region63: #{tpu_custom_call.1} parent=1 // pred_check_branch
      %165 = sbr.rel (0) target = $region65
    $region64: #{tpu_custom_call.1} parent=1 // pred_region
      %s167 = ssub.s32 32, 32
      %168 = vsyncadd [#allocation19], %s167
      %s169 = sshll.u32 [#allocation20], 4
      %s170 = int_to_ptr.vmem [resolvable:$true] %s169
      %175 = dma.hbm_to_vmem [thread:$0]  %s15, 32, %s170, [#allocation19], 16, 16, 1
    $region65: #{tpu_custom_call.1} parent=1 // pred_fallthru
      _
    // Predicated region
    $region66: #{tpu_custom_call.1} parent=1 // pred_check
      _
    $region67: #{tpu_custom_call.1} parent=1 // pred_check_branch
      %177 = sbr.rel (0) target = $region69
    $region68: #{tpu_custom_call.1} parent=1 // pred_region
      _
    $region69: #{tpu_custom_call.1} parent=1 // pred_fallthru
      _
    // Predicated region
    $region70: #{tpu_custom_call.1} parent=1 // pred_check
      _
    $region71: #{tpu_custom_call.1} parent=1 // pred_check_branch
      %179 = sbr.rel (0) target = $region73
    $region72: #{tpu_custom_call.1} parent=1 // pred_region
      _
    $region73: #{tpu_custom_call.1} parent=1 // pred_fallthru
      _
    // Predicated region
    $region74: #{tpu_custom_call.1} parent=1 // pred_check
      _
    $region75: #{tpu_custom_call.1} parent=1 // pred_check_branch
      %181 = sbr.rel (0) target = $region77
    $region76: #{tpu_custom_call.1} parent=1 // pred_region
      _
    $region77: #{tpu_custom_call.1} parent=1 // pred_fallthru
      _
    // Predicated region
    $region78: #{tpu_custom_call.1} parent=1 // pred_check
      _
    $region79: #{tpu_custom_call.1} parent=1 // pred_check_branch
      %183 = sbr.rel (0) target = $region81
    $region80: #{tpu_custom_call.1} parent=1 // pred_region
      _
    $region81: #{tpu_custom_call.1} parent=1 // pred_fallthru
      _
    // Predicated region
    $region82: #{tpu_custom_call.1} parent=1 // pred_check
      _
    $region83: #{tpu_custom_call.1} parent=1 // pred_check_branch
      %185 = sbr.rel (0) target = $region85
    $region84: #{tpu_custom_call.1} parent=1 // pred_region
      _
    $region85: #{tpu_custom_call.1} parent=1 // pred_fallthru
      _
    // Predicated region
    $region86: #{tpu_custom_call.1} parent=1 // pred_check
      _
    $region87: #{tpu_custom_call.1} parent=1 // pred_check_branch
      %187 = sbr.rel (0) target = $region89
    $region88: #{tpu_custom_call.1} parent=1 // pred_region
      _
    $region89: #{tpu_custom_call.1} parent=1 // pred_fallthru
      _
    // Predicated region
    $region90: #{tpu_custom_call.1} parent=1 // pred_check
      _
    $region91: #{tpu_custom_call.1} parent=1 // pred_check_branch
      %189 = sbr.rel (0) target = $region93
    $region92: #{tpu_custom_call.1} parent=1 // pred_region
      _
    $region93: #{tpu_custom_call.1} parent=1 // pred_fallthru
      _
    // Predicated region
    $region94: #{tpu_custom_call.1} parent=1 // pred_check
      _
    $region95: #{tpu_custom_call.1} parent=1 // pred_check_branch
      %191 = sbr.rel (0) target = $region97
    $region96: #{tpu_custom_call.1} parent=1 // pred_region
      _
    $region97: #{tpu_custom_call.1} parent=1 // pred_fallthru
      _
    // Predicated region
    $region98: #{tpu_custom_call.1} parent=1 // pred_check
      _
    $region99: #{tpu_custom_call.1} parent=1 // pred_check_branch
      %193 = sbr.rel (0) target = $region101
    $region100: #{tpu_custom_call.1} parent=1 // pred_region
      %194 = dma.done [#allocation4], 32
    $region101: #{tpu_custom_call.1} parent=1 // pred_fallthru
      _
    // Predicated region
    $region102: #{tpu_custom_call.1} parent=1 // pred_check
      _
    $region103: #{tpu_custom_call.1} parent=1 // pred_check_branch
      %196 = sbr.rel (0) target = $region105
    $region104: #{tpu_custom_call.1} parent=1 // pred_region
      %197 = dma.done [#allocation7], 16
    $region105: #{tpu_custom_call.1} parent=1 // pred_fallthru
      _
    // Predicated region
    $region106: #{tpu_custom_call.1} parent=1 // pred_check
      _
    $region107: #{tpu_custom_call.1} parent=1 // pred_check_branch
      %199 = sbr.rel (0) target = $region109
    $region108: #{tpu_custom_call.1} parent=1 // pred_region
      %200 = dma.done [#allocation7], 16
    $region109: #{tpu_custom_call.1} parent=1 // pred_fallthru
      _
    // Predicated region
    $region110: #{tpu_custom_call.1} parent=1 // pred_check
      _
    $region111: #{tpu_custom_call.1} parent=1 // pred_check_branch
      %202 = sbr.rel (0) target = $region113
    $region112: #{tpu_custom_call.1} parent=1 // pred_region
      %203 = dma.done [#allocation10], 32
    $region113: #{tpu_custom_call.1} parent=1 // pred_fallthru
      _
    // Predicated region
    $region114: #{tpu_custom_call.1} parent=1 // pred_check
      _
    $region115: #{tpu_custom_call.1} parent=1 // pred_check_branch
      %205 = sbr.rel (0) target = $region117
    $region116: #{tpu_custom_call.1} parent=1 // pred_region
      %206 = dma.done [#allocation10], 32
    $region117: #{tpu_custom_call.1} parent=1 // pred_fallthru
      _
    // Predicated region
    $region118: #{tpu_custom_call.1} parent=1 // pred_check
      _
    $region119: #{tpu_custom_call.1} parent=1 // pred_check_branch
      %208 = sbr.rel (0) target = $region121
    $region120: #{tpu_custom_call.1} parent=1 // pred_region
      %209 = dma.done [#allocation13], 32
    $region121: #{tpu_custom_call.1} parent=1 // pred_fallthru
      _
    // Predicated region
    $region122: #{tpu_custom_call.1} parent=1 // pred_check
      _
    $region123: #{tpu_custom_call.1} parent=1 // pred_check_branch
      %211 = sbr.rel (0) target = $region125
    $region124: #{tpu_custom_call.1} parent=1 // pred_region
      %212 = dma.done [#allocation13], 32
    $region125: #{tpu_custom_call.1} parent=1 // pred_fallthru
      _
    // Predicated region
    $region126: #{tpu_custom_call.1} parent=1 // pred_check
      _
    $region127: #{tpu_custom_call.1} parent=1 // pred_check_branch
      %214 = sbr.rel (0) target = $region129
    $region128: #{tpu_custom_call.1} parent=1 // pred_region
      %215 = dma.done [#allocation16], 32
    $region129: #{tpu_custom_call.1} parent=1 // pred_fallthru
      _
    // Predicated region
    $region130: #{tpu_custom_call.1} parent=1 // pred_check
      _
    $region131: #{tpu_custom_call.1} parent=1 // pred_check_branch
      %217 = sbr.rel (0) target = $region133
    $region132: #{tpu_custom_call.1} parent=1 // pred_region
      %218 = dma.done [#allocation16], 32
    $region133: #{tpu_custom_call.1} parent=1 // pred_fallthru
      _
    // Predicated region
    $region134: #{tpu_custom_call.1} parent=1 // pred_check
      _
    $region135: #{tpu_custom_call.1} parent=1 // pred_check_branch
      %220 = sbr.rel (0) target = $region137
    $region136: #{tpu_custom_call.1} parent=1 // pred_region
      %221 = dma.done [#allocation19], 32
    $region137: #{tpu_custom_call.1} parent=1 // pred_fallthru
      _
    // Predicated region
    $region138: #{tpu_custom_call.1} parent=1 // pred_check
      _
    $region139: #{tpu_custom_call.1} parent=1 // pred_check_branch
      %223 = sbr.rel (0) target = $region141
    $region140: #{tpu_custom_call.1} parent=1 // pred_region
      %224 = dma.done [#allocation19], 32
    $region141: #{tpu_custom_call.1} parent=1 // pred_fallthru
      _
    %v225 = vld [vmem:[%s0] sm:$0xff]
    %v226 = vld [vmem:[%s0 + $0x8] sm:$0xff]
    %v227 = vld [vmem:[#allocation6] sm:$0x1]
    %v228 = vld [vmem:[#allocation8] sm:$0x1]
    %vm229 = vcmask 261120
    %v230 = vsel %vm229, %v225, 0.0
    %231 = vadd.xlane.f32.xlu0 %v230
    %v232 = vpop.xlane.xlu0 %231
    %v233 = vsel %vm229, %v226, 0.0
    %234 = vadd.xlane.f32.xlu0 %v233
    %v235 = vpop.xlane.xlu0 %234
    %v236 = vrcp.pop 32.0
    %v237 = vmul.f32 %v232, %v236
    %v238 = vmul.f32 %v235, %v236
    %v239 = vsub.f32 %v225, %v237
    %v240 = vsub.f32 %v226, %v238
    %v241 = vmul.f32 %v239, %v239
    %v242 = vmul.f32 %v240, %v240
    %v243 = vsel %vm229, %v241, 0.0
    %244 = vadd.xlane.f32.xlu0 %v243
    %v245 = vpop.xlane.xlu0 %244
    %v246 = vsel %vm229, %v242, 0.0
    %247 = vadd.xlane.f32.xlu0 %v246
    %v248 = vpop.xlane.xlu0 %247
    %v249 = vmul.f32 %v245, %v236
    %v250 = vmul.f32 %v248, %v236
    %v251 = vadd.f32 %v249, 1e-12
    %v252 = vadd.f32 %v250, 1e-12
    %v253 = vrsqrt.pop %v251
    %v254 = vrsqrt.pop %v252
    %v255 = vmul.f32 %v239, %v253
    %v256 = vmul.f32 %v240, %v254
    %v258 = vlaneseq
    %v259 = vshrl.u32 %v258, 7
    %v260 = vsub.s32 0, %v259
    %v261 = vrot.slane %v227, %v260
    %v263 = vmul.f32 %v255, %v261
    %v264 = vmul.f32 %v256, %v261
    %v266 = vlaneseq
    %v267 = vshrl.u32 %v266, 7
    %v268 = vsub.s32 0, %v267
    %v269 = vrot.slane %v228, %v268
    %v271 = vadd.f32 %v263, %v269
    %v272 = vadd.f32 %v264, %v269
    %v273 = vld [vmem:[%s4] sm:$0xff]
    %v274 = vld [vmem:[%s4 + $0x8] sm:$0xff]
    %v275 = vld [vmem:[%s4 + $0x10] sm:$0xff]
    %v276 = vld [vmem:[%s4 + $0x18] sm:$0xff]
    %v277 = vld [vmem:[#allocation9] sm:$0x1]
    %v279 = vlaneseq
    %v280 = vshrl.u32 %v279, 7
    %v281 = vsub.s32 0, %v280
    %v282 = vrot.slane %v277, %v281
    %v285 = vsel %vm229, %v271, 0
    %v288 = vsel %vm229, %v272, 0
    %290 = vmatprep.subr.mxu0 0.0
    %291 = vmatpush1.msra.mxu0 %v273
    %292 = vmatprep.subr.mxu0 0.0
    %293 = vmatpush1.msra.mxu0 %v274
    %294 = vmatprep.subr.mxu0 0.0
    %295 = vmatpush1.msra.mxu0 %v275
    %296 = vmatprep.subr.mxu0 0.0
    %297 = vmatpush1.msra.mxu0 %v276
    %298 = vmatprep.subr.mxu0 0.0
    %299 = vmatpush1.msra.mxu0 0.0
    %300 = vmatprep.subr.mxu0 0.0
    %301 = vmatpush1.msra.mxu0 0.0
    %302 = vmatprep.subr.mxu0 0.0
    %303 = vmatpush1.msra.mxu0 0.0
    %304 = vmatprep.subr.mxu0 0.0
    %305 = vmatpush1.msra.mxu0 0.0
    %306 = vmatprep.subr.mxu0 0.0
    %307 = vmatpush1.msra.mxu0 0.0
    %308 = vmatprep.subr.mxu0 0.0
    %309 = vmatpush1.msra.mxu0 0.0
    %310 = vmatprep.subr.mxu0 0.0
    %311 = vmatpush1.msra.mxu0 0.0
    %312 = vmatprep.subr.mxu0 0.0
    %313 = vmatpush1.msra.mxu0 0.0
    %314 = vmatprep.subr.mxu0 0.0
    %315 = vmatpush1.msra.mxu0 0.0
    %316 = vmatprep.subr.mxu0 0.0
    %317 = vmatpush1.msra.mxu0 0.0
    %318 = vmatprep.subr.mxu0 0.0
    %319 = vmatpush1.msra.mxu0 0.0
    %320 = vmatprep.subr.mxu0 0.0
    %321 = vmatpush1.msra.mxu0 0.0
    %322 = vmatprep.subr.mxu0 0.0
    %323 = vmatpush1.msra.mxu0 0.0
    %324 = vmatprep.subr.mxu0 0.0
    %325 = vmatpush1.msra.mxu0 0.0
    %326 = vmatprep.subr.mxu0 0.0
    %327 = vmatpush1.msra.mxu0 0.0
    %328 = vmatprep.subr.mxu0 0.0
    %329 = vmatpush1.msra.mxu0 0.0
    %330 = vmatprep.subr.mxu0 0.0
    %331 = vmatpush1.msra.mxu0 0.0
    %332 = vmatprep.subr.mxu0 0.0
    %333 = vmatpush1.msra.mxu0 0.0
    %334 = vmatprep.subr.mxu0 0.0
    %335 = vmatpush1.msra.mxu0 0.0
    %336 = vmatprep.subr.mxu0 0.0
    %337 = vmatpush1.msra.mxu0 0.0
    %338 = vmatprep.subr.mxu0 0.0
    %339 = vmatpush1.msra.mxu0 0.0
    %340 = vmatprep.subr.mxu0 0.0
    %341 = vmatpush1.msra.mxu0 0.0
    %342 = vmatprep.subr.mxu0 0.0
    %343 = vmatpush1.msra.mxu0 0.0
    %344 = vmatprep.subr.mxu0 0.0
    %345 = vmatpush1.msra.mxu0 0.0
    %346 = vmatprep.subr.mxu0 0.0
    %347 = vmatpush1.msra.mxu0 0.0
    %348 = vmatprep.subr.mxu0 0.0
    %349 = vmatpush1.msra.mxu0 0.0
    %350 = vmatprep.subr.mxu0 0.0
    %351 = vmatpush1.msra.mxu0 0.0
    %352 = vmatprep.subr.mxu0 0.0
    %353 = vmatpush1.msra.mxu0 0.0
    %354 = vmatprep.mubr.f32.mxu0 0.0
    %355 = vmatmul.mubr.f32.gmra.mrb[0].mxu0 %v285
    %v356 = vpop.f32.mrb[0].mxu0
    %v357 = vadd.f32 %v282, %v356
    %v358 = vpop.f32.mrb[0].mxu0
    %359 = vmatprep.mubr.f32.mxu0 0.0
    %360 = vmatmul.mubr.f32.gmra.mrb[0].mxu0 %v288
    %v361 = vpop.f32.mrb[0].mxu0
    %v362 = vadd.f32 %v282, %v361
    %v363 = vpop.f32.mrb[0].mxu0
    %364 = vdwg.mxu0
    %v365 = vld [vmem:[%s6] sm:$0xff]
    %v366 = vld [vmem:[%s6 + $0x8] sm:$0xff]
    %v367 = vld [vmem:[%s6 + $0x10] sm:$0xff]
    %v368 = vld [vmem:[%s6 + $0x18] sm:$0xff]
    %v369 = vld [vmem:[#allocation11] sm:$0x1]
    %v370 = vld [vmem:[#allocation3] sm:$0x1]
    %v372 = vlaneseq
    %v373 = vshrl.u32 %v372, 7
    %v374 = vsub.s32 0, %v373
    %v375 = vrot.slane %v370, %v374
    %378 = vrot.lane.b32.xlu0 %v357, 96
    %v379 = vpop.permute.xlu0 %378
    %vm380 = vcmask 130048
    %v381 = vsel %vm380, %v357, 0
    %v383 = vsel %vm380, %v379, 0
    %385 = vmatprep.subr.mxu0 0.0
    %386 = vmatpush1.xpose.msra.mxu0 %v383
    %387 = vmatprep.subr.mxu0 0.0
    %388 = vmatpush1.xpose.msra.mxu0 0.0
    %389 = vmatprep.subr.mxu0 0.0
    %390 = vmatpush1.xpose.msra.mxu0 0.0
    %391 = vmatprep.subr.mxu0 0.0
    %392 = vmatpush1.xpose.msra.mxu0 0.0
    %393 = vmatprep.subr.mxu0 0.0
    %394 = vmatpush1.xpose.msra.mxu0 0.0
    %395 = vmatprep.subr.mxu0 0.0
    %396 = vmatpush1.xpose.msra.mxu0 0.0
    %397 = vmatprep.subr.mxu0 0.0
    %398 = vmatpush1.xpose.msra.mxu0 0.0
    %399 = vmatprep.subr.mxu0 0.0
    %400 = vmatpush1.xpose.msra.mxu0 0.0
    %401 = vmatprep.subr.mxu0 0.0
    %402 = vmatpush1.xpose.msra.mxu0 0.0
    %403 = vmatprep.subr.mxu0 0.0
    %404 = vmatpush1.xpose.msra.mxu0 0.0
    %405 = vmatprep.subr.mxu0 0.0
    %406 = vmatpush1.xpose.msra.mxu0 0.0
    %407 = vmatprep.subr.mxu0 0.0
    %408 = vmatpush1.xpose.msra.mxu0 0.0
    %409 = vmatprep.subr.mxu0 0.0
    %410 = vmatpush1.xpose.msra.mxu0 0.0
    %411 = vmatprep.subr.mxu0 0.0
    %412 = vmatpush1.xpose.msra.mxu0 0.0
    %413 = vmatprep.subr.mxu0 0.0
    %414 = vmatpush1.xpose.msra.mxu0 0.0
    %415 = vmatprep.subr.mxu0 0.0
    %416 = vmatpush1.xpose.msra.mxu0 0.0
    %417 = vmatprep.subr.mxu0 0.0
    %418 = vmatpush1.xpose.msra.mxu0 0.0
    %419 = vmatprep.subr.mxu0 0.0
    %420 = vmatpush1.xpose.msra.mxu0 0.0
    %421 = vmatprep.subr.mxu0 0.0
    %422 = vmatpush1.xpose.msra.mxu0 0.0
    %423 = vmatprep.subr.mxu0 0.0
    %424 = vmatpush1.xpose.msra.mxu0 0.0
    %425 = vmatprep.subr.mxu0 0.0
    %426 = vmatpush1.xpose.msra.mxu0 0.0
    %427 = vmatprep.subr.mxu0 0.0
    %428 = vmatpush1.xpose.msra.mxu0 0.0
    %429 = vmatprep.subr.mxu0 0.0
    %430 = vmatpush1.xpose.msra.mxu0 0.0
    %431 = vmatprep.subr.mxu0 0.0
    %432 = vmatpush1.xpose.msra.mxu0 0.0
    %433 = vmatprep.subr.mxu0 0.0
    %434 = vmatpush1.xpose.msra.mxu0 0.0
    %435 = vmatprep.subr.mxu0 0.0
    %436 = vmatpush1.xpose.msra.mxu0 0.0
    %437 = vmatprep.subr.mxu0 0.0
    %438 = vmatpush1.xpose.msra.mxu0 0.0
    %439 = vmatprep.subr.mxu0 0.0
    %440 = vmatpush1.xpose.msra.mxu0 0.0
    %441 = vmatprep.subr.mxu0 0.0
    %442 = vmatpush1.xpose.msra.mxu0 0.0
    %443 = vmatprep.subr.mxu0 0.0
    %444 = vmatpush1.xpose.msra.mxu0 0.0
    %445 = vmatprep.subr.mxu0 0.0
    %446 = vmatpush1.xpose.msra.mxu0 0.0
    %447 = vmatprep.subr.mxu0 0.0
    %448 = vmatpush1.xpose.msra.mxu0 0.0
    %449 = vmatprep.mubr.f32.mxu0 0.0
    %450 = vmatmul.mubr.f32.gmra.mrb[0].mxu0 %v381
    %v451 = vpop.f32.mrb[0].mxu0
    %v452 = vadd.f32 %v375, %v451
    %v453 = vpop.f32.mrb[0].mxu0
    %454 = vdwg.mxu0
    %vm455 = vcmask 64512
    %v456 = vsel %vm455, %v452, -inf
    %457 = vmax.xlane.f32.xlu0 %v456
    %v458 = vpop.xlane.xlu0 %457
    %v459 = vsub.f32 %v452, %v458
    %v460 = vmul.f32 %v459, 1.442695
    %v461 = vpow.pop %v460
    %v462 = vsel %vm455, %v461, 0.0
    %463 = vadd.xlane.f32.xlu0 %v462
    %v464 = vpop.xlane.xlu0 %463
    %v465 = vrcp.pop %v464
    %v466 = vmul.f32 %v461, %v465
    %467 = vrot.lane.b32.xlu0 %v357, 64
    %v468 = vpop.permute.xlu0 %467
    %v471 = vsel %vm455, %v466, 0
    %473 = vmatprep.subr.mxu0 0.0
    %474 = vmatpush1.msra.mxu0 %v468
    %475 = vmatprep.subr.mxu0 0.0
    %476 = vmatpush1.msra.mxu0 0.0
    %477 = vmatprep.subr.mxu0 0.0
    %478 = vmatpush1.msra.mxu0 0.0
    %479 = vmatprep.subr.mxu0 0.0
    %480 = vmatpush1.msra.mxu0 0.0
    %481 = vmatprep.subr.mxu0 0.0
    %482 = vmatpush1.msra.mxu0 0.0
    %483 = vmatprep.subr.mxu0 0.0
    %484 = vmatpush1.msra.mxu0 0.0
    %485 = vmatprep.subr.mxu0 0.0
    %486 = vmatpush1.msra.mxu0 0.0
    %487 = vmatprep.subr.mxu0 0.0
    %488 = vmatpush1.msra.mxu0 0.0
    %489 = vmatprep.subr.mxu0 0.0
    %490 = vmatpush1.msra.mxu0 0.0
    %491 = vmatprep.subr.mxu0 0.0
    %492 = vmatpush1.msra.mxu0 0.0
    %493 = vmatprep.subr.mxu0 0.0
    %494 = vmatpush1.msra.mxu0 0.0
    %495 = vmatprep.subr.mxu0 0.0
    %496 = vmatpush1.msra.mxu0 0.0
    %497 = vmatprep.subr.mxu0 0.0
    %498 = vmatpush1.msra.mxu0 0.0
    %499 = vmatprep.subr.mxu0 0.0
    %500 = vmatpush1.msra.mxu0 0.0
    %501 = vmatprep.subr.mxu0 0.0
    %502 = vmatpush1.msra.mxu0 0.0
    %503 = vmatprep.subr.mxu0 0.0
    %504 = vmatpush1.msra.mxu0 0.0
    %505 = vmatprep.subr.mxu0 0.0
    %506 = vmatpush1.msra.mxu0 0.0
    %507 = vmatprep.subr.mxu0 0.0
    %508 = vmatpush1.msra.mxu0 0.0
    %509 = vmatprep.subr.mxu0 0.0
    %510 = vmatpush1.msra.mxu0 0.0
    %511 = vmatprep.subr.mxu0 0.0
    %512 = vmatpush1.msra.mxu0 0.0
    %513 = vmatprep.subr.mxu0 0.0
    %514 = vmatpush1.msra.mxu0 0.0
    %515 = vmatprep.subr.mxu0 0.0
    %516 = vmatpush1.msra.mxu0 0.0
    %517 = vmatprep.subr.mxu0 0.0
    %518 = vmatpush1.msra.mxu0 0.0
    %519 = vmatprep.subr.mxu0 0.0
    %520 = vmatpush1.msra.mxu0 0.0
    %521 = vmatprep.subr.mxu0 0.0
    %522 = vmatpush1.msra.mxu0 0.0
    %523 = vmatprep.subr.mxu0 0.0
    %524 = vmatpush1.msra.mxu0 0.0
    %525 = vmatprep.subr.mxu0 0.0
    %526 = vmatpush1.msra.mxu0 0.0
    %527 = vmatprep.subr.mxu0 0.0
    %528 = vmatpush1.msra.mxu0 0.0
    %529 = vmatprep.subr.mxu0 0.0
    %530 = vmatpush1.msra.mxu0 0.0
    %531 = vmatprep.subr.mxu0 0.0
    %532 = vmatpush1.msra.mxu0 0.0
    %533 = vmatprep.subr.mxu0 0.0
    %534 = vmatpush1.msra.mxu0 0.0
    %535 = vmatprep.subr.mxu0 0.0
    %536 = vmatpush1.msra.mxu0 0.0
    %537 = vmatprep.mubr.f32.mxu0 0.0
    %538 = vmatmul.mubr.f32.gmra.mrb[0].mxu0 %v471
    %v539 = vpop.f32.mrb[0].mxu0
    %v540 = vadd.f32 0.0, %v539
    %v541 = vpop.f32.mrb[0].mxu0
    %542 = vdwg.mxu0
    %543 = vrot.lane.b32.xlu0 %v357, 112
    %v544 = vpop.permute.xlu0 %543
    %545 = vrot.lane.b32.xlu0 %v357, 80
    %v546 = vpop.permute.xlu0 %545
    %v547 = vsel %vm380, %v544, 0
    %v549 = vsel %vm380, %v546, 0
    %551 = vmatprep.subr.mxu0 0.0
    %552 = vmatpush1.xpose.msra.mxu0 %v549
    %553 = vmatprep.subr.mxu0 0.0
    %554 = vmatpush1.xpose.msra.mxu0 0.0
    %555 = vmatprep.subr.mxu0 0.0
    %556 = vmatpush1.xpose.msra.mxu0 0.0
    %557 = vmatprep.subr.mxu0 0.0
    %558 = vmatpush1.xpose.msra.mxu0 0.0
    %559 = vmatprep.subr.mxu0 0.0
    %560 = vmatpush1.xpose.msra.mxu0 0.0
    %561 = vmatprep.subr.mxu0 0.0
    %562 = vmatpush1.xpose.msra.mxu0 0.0
    %563 = vmatprep.subr.mxu0 0.0
    %564 = vmatpush1.xpose.msra.mxu0 0.0
    %565 = vmatprep.subr.mxu0 0.0
    %566 = vmatpush1.xpose.msra.mxu0 0.0
    %567 = vmatprep.subr.mxu0 0.0
    %568 = vmatpush1.xpose.msra.mxu0 0.0
    %569 = vmatprep.subr.mxu0 0.0
    %570 = vmatpush1.xpose.msra.mxu0 0.0
    %571 = vmatprep.subr.mxu0 0.0
    %572 = vmatpush1.xpose.msra.mxu0 0.0
    %573 = vmatprep.subr.mxu0 0.0
    %574 = vmatpush1.xpose.msra.mxu0 0.0
    %575 = vmatprep.subr.mxu0 0.0
    %576 = vmatpush1.xpose.msra.mxu0 0.0
    %577 = vmatprep.subr.mxu0 0.0
    %578 = vmatpush1.xpose.msra.mxu0 0.0
    %579 = vmatprep.subr.mxu0 0.0
    %580 = vmatpush1.xpose.msra.mxu0 0.0
    %581 = vmatprep.subr.mxu0 0.0
    %582 = vmatpush1.xpose.msra.mxu0 0.0
    %583 = vmatprep.subr.mxu0 0.0
    %584 = vmatpush1.xpose.msra.mxu0 0.0
    %585 = vmatprep.subr.mxu0 0.0
    %586 = vmatpush1.xpose.msra.mxu0 0.0
    %587 = vmatprep.subr.mxu0 0.0
    %588 = vmatpush1.xpose.msra.mxu0 0.0
    %589 = vmatprep.subr.mxu0 0.0
    %590 = vmatpush1.xpose.msra.mxu0 0.0
    %591 = vmatprep.subr.mxu0 0.0
    %592 = vmatpush1.xpose.msra.mxu0 0.0
    %593 = vmatprep.subr.mxu0 0.0
    %594 = vmatpush1.xpose.msra.mxu0 0.0
    %595 = vmatprep.subr.mxu0 0.0
    %596 = vmatpush1.xpose.msra.mxu0 0.0
    %597 = vmatprep.subr.mxu0 0.0
    %598 = vmatpush1.xpose.msra.mxu0 0.0
    %599 = vmatprep.subr.mxu0 0.0
    %600 = vmatpush1.xpose.msra.mxu0 0.0
    %601 = vmatprep.subr.mxu0 0.0
    %602 = vmatpush1.xpose.msra.mxu0 0.0
    %603 = vmatprep.subr.mxu0 0.0
    %604 = vmatpush1.xpose.msra.mxu0 0.0
    %605 = vmatprep.subr.mxu0 0.0
    %606 = vmatpush1.xpose.msra.mxu0 0.0
    %607 = vmatprep.subr.mxu0 0.0
    %608 = vmatpush1.xpose.msra.mxu0 0.0
    %609 = vmatprep.subr.mxu0 0.0
    %610 = vmatpush1.xpose.msra.mxu0 0.0
    %611 = vmatprep.subr.mxu0 0.0
    %612 = vmatpush1.xpose.msra.mxu0 0.0
    %613 = vmatprep.subr.mxu0 0.0
    %614 = vmatpush1.xpose.msra.mxu0 0.0
    %615 = vmatprep.mubr.f32.mxu0 0.0
    %616 = vmatmul.mubr.f32.gmra.mrb[0].mxu0 %v547
    %v617 = vpop.f32.mrb[0].mxu0
    %v618 = vadd.f32 %v375, %v617
    %v619 = vpop.f32.mrb[0].mxu0
    %620 = vdwg.mxu0
    %v621 = vsel %vm455, %v618, -inf
    %622 = vmax.xlane.f32.xlu0 %v621
    %v623 = vpop.xlane.xlu0 %622
    %v624 = vsub.f32 %v618, %v623
    %v625 = vmul.f32 %v624, 1.442695
    %v626 = vpow.pop %v625
    %v627 = vsel %vm455, %v626, 0.0
    %628 = vadd.xlane.f32.xlu0 %v627
    %v629 = vpop.xlane.xlu0 %628
    %v630 = vrcp.pop %v629
    %v631 = vmul.f32 %v626, %v630
    %632 = vrot.lane.b32.xlu0 %v357, 48
    %v633 = vpop.permute.xlu0 %632
    %v636 = vsel %vm455, %v631, 0
    %638 = vmatprep.subr.mxu0 0.0
    %639 = vmatpush1.msra.mxu0 %v633
    %640 = vmatprep.subr.mxu0 0.0
    %641 = vmatpush1.msra.mxu0 0.0
    %642 = vmatprep.subr.mxu0 0.0
    %643 = vmatpush1.msra.mxu0 0.0
    %644 = vmatprep.subr.mxu0 0.0
    %645 = vmatpush1.msra.mxu0 0.0
    %646 = vmatprep.subr.mxu0 0.0
    %647 = vmatpush1.msra.mxu0 0.0
    %648 = vmatprep.subr.mxu0 0.0
    %649 = vmatpush1.msra.mxu0 0.0
    %650 = vmatprep.subr.mxu0 0.0
    %651 = vmatpush1.msra.mxu0 0.0
    %652 = vmatprep.subr.mxu0 0.0
    %653 = vmatpush1.msra.mxu0 0.0
    %654 = vmatprep.subr.mxu0 0.0
    %655 = vmatpush1.msra.mxu0 0.0
    %656 = vmatprep.subr.mxu0 0.0
    %657 = vmatpush1.msra.mxu0 0.0
    %658 = vmatprep.subr.mxu0 0.0
    %659 = vmatpush1.msra.mxu0 0.0
    %660 = vmatprep.subr.mxu0 0.0
    %661 = vmatpush1.msra.mxu0 0.0
    %662 = vmatprep.subr.mxu0 0.0
    %663 = vmatpush1.msra.mxu0 0.0
    %664 = vmatprep.subr.mxu0 0.0
    %665 = vmatpush1.msra.mxu0 0.0
    %666 = vmatprep.subr.mxu0 0.0
    %667 = vmatpush1.msra.mxu0 0.0
    %668 = vmatprep.subr.mxu0 0.0
    %669 = vmatpush1.msra.mxu0 0.0
    %670 = vmatprep.subr.mxu0 0.0
    %671 = vmatpush1.msra.mxu0 0.0
    %672 = vmatprep.subr.mxu0 0.0
    %673 = vmatpush1.msra.mxu0 0.0
    %674 = vmatprep.subr.mxu0 0.0
    %675 = vmatpush1.msra.mxu0 0.0
    %676 = vmatprep.subr.mxu0 0.0
    %677 = vmatpush1.msra.mxu0 0.0
    %678 = vmatprep.subr.mxu0 0.0
    %679 = vmatpush1.msra.mxu0 0.0
    %680 = vmatprep.subr.mxu0 0.0
    %681 = vmatpush1.msra.mxu0 0.0
    %682 = vmatprep.subr.mxu0 0.0
    %683 = vmatpush1.msra.mxu0 0.0
    %684 = vmatprep.subr.mxu0 0.0
    %685 = vmatpush1.msra.mxu0 0.0
    %686 = vmatprep.subr.mxu0 0.0
    %687 = vmatpush1.msra.mxu0 0.0
    %688 = vmatprep.subr.mxu0 0.0
    %689 = vmatpush1.msra.mxu0 0.0
    %690 = vmatprep.subr.mxu0 0.0
    %691 = vmatpush1.msra.mxu0 0.0
    %692 = vmatprep.subr.mxu0 0.0
    %693 = vmatpush1.msra.mxu0 0.0
    %694 = vmatprep.subr.mxu0 0.0
    %695 = vmatpush1.msra.mxu0 0.0
    %696 = vmatprep.subr.mxu0 0.0
    %697 = vmatpush1.msra.mxu0 0.0
    %698 = vmatprep.subr.mxu0 0.0
    %699 = vmatpush1.msra.mxu0 0.0
    %700 = vmatprep.subr.mxu0 0.0
    %701 = vmatpush1.msra.mxu0 0.0
    %702 = vmatprep.mubr.f32.mxu0 0.0
    %703 = vmatmul.mubr.f32.gmra.mrb[0].mxu0 %v636
    %v704 = vpop.f32.mrb[0].mxu0
    %v705 = vadd.f32 0.0, %v704
    %v706 = vpop.f32.mrb[0].mxu0
    %707 = vdwg.mxu0
    %v709 = vsel %vm380, %v705, 0
    %711 = vmatprep.subr.mxu0 0.0
    %712 = vmatpush1.msra.mxu0 %v367
    %713 = vmatprep.subr.mxu0 0.0
    %714 = vmatpush1.msra.mxu0 %v368
    %715 = vmatprep.subr.mxu0 0.0
    %716 = vmatpush1.msra.mxu0 0.0
    %717 = vmatprep.subr.mxu0 0.0
    %718 = vmatpush1.msra.mxu0 0.0
    %719 = vmatprep.subr.mxu0 0.0
    %720 = vmatpush1.msra.mxu0 0.0
    %721 = vmatprep.subr.mxu0 0.0
    %722 = vmatpush1.msra.mxu0 0.0
    %723 = vmatprep.subr.mxu0 0.0
    %724 = vmatpush1.msra.mxu0 0.0
    %725 = vmatprep.subr.mxu0 0.0
    %726 = vmatpush1.msra.mxu0 0.0
    %727 = vmatprep.subr.mxu0 0.0
    %728 = vmatpush1.msra.mxu0 0.0
    %729 = vmatprep.subr.mxu0 0.0
    %730 = vmatpush1.msra.mxu0 0.0
    %731 = vmatprep.subr.mxu0 0.0
    %732 = vmatpush1.msra.mxu0 0.0
    %733 = vmatprep.subr.mxu0 0.0
    %734 = vmatpush1.msra.mxu0 0.0
    %735 = vmatprep.subr.mxu0 0.0
    %736 = vmatpush1.msra.mxu0 0.0
    %737 = vmatprep.subr.mxu0 0.0
    %738 = vmatpush1.msra.mxu0 0.0
    %739 = vmatprep.subr.mxu0 0.0
    %740 = vmatpush1.msra.mxu0 0.0
    %741 = vmatprep.subr.mxu0 0.0
    %742 = vmatpush1.msra.mxu0 0.0
    %743 = vmatprep.subr.mxu0 0.0
    %744 = vmatpush1.msra.mxu0 0.0
    %745 = vmatprep.subr.mxu0 0.0
    %746 = vmatpush1.msra.mxu0 0.0
    %747 = vmatprep.subr.mxu0 0.0
    %748 = vmatpush1.msra.mxu0 0.0
    %749 = vmatprep.subr.mxu0 0.0
    %750 = vmatpush1.msra.mxu0 0.0
    %751 = vmatprep.subr.mxu0 0.0
    %752 = vmatpush1.msra.mxu0 0.0
    %753 = vmatprep.subr.mxu0 0.0
    %754 = vmatpush1.msra.mxu0 0.0
    %755 = vmatprep.subr.mxu0 0.0
    %756 = vmatpush1.msra.mxu0 0.0
    %757 = vmatprep.subr.mxu0 0.0
    %758 = vmatpush1.msra.mxu0 0.0
    %759 = vmatprep.subr.mxu0 0.0
    %760 = vmatpush1.msra.mxu0 0.0
    %761 = vmatprep.subr.mxu0 0.0
    %762 = vmatpush1.msra.mxu0 0.0
    %763 = vmatprep.subr.mxu0 0.0
    %764 = vmatpush1.msra.mxu0 0.0
    %765 = vmatprep.subr.mxu0 0.0
    %766 = vmatpush1.msra.mxu0 0.0
    %767 = vmatprep.subr.mxu0 0.0
    %768 = vmatpush1.msra.mxu0 0.0
    %769 = vmatprep.subr.mxu0 0.0
    %770 = vmatpush1.msra.mxu0 0.0
    %771 = vmatprep.subr.mxu0 0.0
    %772 = vmatpush1.msra.mxu0 0.0
    %773 = vmatprep.subr.mxu0 0.0
    %774 = vmatpush1.msra.mxu0 0.0
    %775 = vmatprep.mubr.f32.mxu0 0.0
    %776 = vmatmul.mubr.f32.gmra.mrb[0].mxu0 %v709
    %v777 = vpop.f32.mrb[0].mxu0
    %v778 = vadd.f32 0.0, %v777
    %v779 = vpop.f32.mrb[0].mxu0
    %780 = vdwg.mxu0
    %v782 = vsel %vm380, %v540, 0
    %784 = vmatprep.subr.mxu0 0.0
    %785 = vmatpush1.msra.mxu0 %v365
    %786 = vmatprep.subr.mxu0 0.0
    %787 = vmatpush1.msra.mxu0 %v366
    %788 = vmatprep.subr.mxu0 0.0
    %789 = vmatpush1.msra.mxu0 0.0
    %790 = vmatprep.subr.mxu0 0.0
    %791 = vmatpush1.msra.mxu0 0.0
    %792 = vmatprep.subr.mxu0 0.0
    %793 = vmatpush1.msra.mxu0 0.0
    %794 = vmatprep.subr.mxu0 0.0
    %795 = vmatpush1.msra.mxu0 0.0
    %796 = vmatprep.subr.mxu0 0.0
    %797 = vmatpush1.msra.mxu0 0.0
    %798 = vmatprep.subr.mxu0 0.0
    %799 = vmatpush1.msra.mxu0 0.0
    %800 = vmatprep.subr.mxu0 0.0
    %801 = vmatpush1.msra.mxu0 0.0
    %802 = vmatprep.subr.mxu0 0.0
    %803 = vmatpush1.msra.mxu0 0.0
    %804 = vmatprep.subr.mxu0 0.0
    %805 = vmatpush1.msra.mxu0 0.0
    %806 = vmatprep.subr.mxu0 0.0
    %807 = vmatpush1.msra.mxu0 0.0
    %808 = vmatprep.subr.mxu0 0.0
    %809 = vmatpush1.msra.mxu0 0.0
    %810 = vmatprep.subr.mxu0 0.0
    %811 = vmatpush1.msra.mxu0 0.0
    %812 = vmatprep.subr.mxu0 0.0
    %813 = vmatpush1.msra.mxu0 0.0
    %814 = vmatprep.subr.mxu0 0.0
    %815 = vmatpush1.msra.mxu0 0.0
    %816 = vmatprep.subr.mxu0 0.0
    %817 = vmatpush1.msra.mxu0 0.0
    %818 = vmatprep.subr.mxu0 0.0
    %819 = vmatpush1.msra.mxu0 0.0
    %820 = vmatprep.subr.mxu0 0.0
    %821 = vmatpush1.msra.mxu0 0.0
    %822 = vmatprep.subr.mxu0 0.0
    %823 = vmatpush1.msra.mxu0 0.0
    %824 = vmatprep.subr.mxu0 0.0
    %825 = vmatpush1.msra.mxu0 0.0
    %826 = vmatprep.subr.mxu0 0.0
    %827 = vmatpush1.msra.mxu0 0.0
    %828 = vmatprep.subr.mxu0 0.0
    %829 = vmatpush1.msra.mxu0 0.0
    %830 = vmatprep.subr.mxu0 0.0
    %831 = vmatpush1.msra.mxu0 0.0
    %832 = vmatprep.subr.mxu0 0.0
    %833 = vmatpush1.msra.mxu0 0.0
    %834 = vmatprep.subr.mxu0 0.0
    %835 = vmatpush1.msra.mxu0 0.0
    %836 = vmatprep.subr.mxu0 0.0
    %837 = vmatpush1.msra.mxu0 0.0
    %838 = vmatprep.subr.mxu0 0.0
    %839 = vmatpush1.msra.mxu0 0.0
    %840 = vmatprep.subr.mxu0 0.0
    %841 = vmatpush1.msra.mxu0 0.0
    %842 = vmatprep.subr.mxu0 0.0
    %843 = vmatpush1.msra.mxu0 0.0
    %844 = vmatprep.subr.mxu0 0.0
    %845 = vmatpush1.msra.mxu0 0.0
    %846 = vmatprep.subr.mxu0 0.0
    %847 = vmatpush1.msra.mxu0 0.0
    %848 = vmatprep.mubr.f32.mxu0 0.0
    %849 = vmatmul.mubr.f32.gmra.mrb[0].mxu0 %v782
    %v850 = vpop.f32.mrb[0].mxu0
    %v851 = vadd.f32 %v778, %v850
    %v852 = vpop.f32.mrb[0].mxu0
    %853 = vdwg.mxu0
    %v855 = vlaneseq
    %v856 = vshrl.u32 %v855, 7
    %v857 = vsub.s32 0, %v856
    %v858 = vrot.slane %v369, %v857
    %v860 = vadd.f32 %v851, %v858
    %861 = vst.msk [vmem:[#allocation2] sm:$0xff] %vm229, %v860
    %s862 = scalar_lea.vmem [#allocation3], 1
    %v863 = vld [vmem:[%s862] sm:$0x1]
    %v865 = vlaneseq
    %v866 = vshrl.u32 %v865, 7
    %v867 = vsub.s32 0, %v866
    %v868 = vrot.slane %v863, %v867
    %871 = vrot.lane.b32.xlu0 %v362, 96
    %v872 = vpop.permute.xlu0 %871
    %v873 = vsel %vm380, %v362, 0
    %v875 = vsel %vm380, %v872, 0
    %877 = vmatprep.subr.mxu0 0.0
    %878 = vmatpush1.xpose.msra.mxu0 %v875
    %879 = vmatprep.subr.mxu0 0.0
    %880 = vmatpush1.xpose.msra.mxu0 0.0
    %881 = vmatprep.subr.mxu0 0.0
    %882 = vmatpush1.xpose.msra.mxu0 0.0
    %883 = vmatprep.subr.mxu0 0.0
    %884 = vmatpush1.xpose.msra.mxu0 0.0
    %885 = vmatprep.subr.mxu0 0.0
    %886 = vmatpush1.xpose.msra.mxu0 0.0
    %887 = vmatprep.subr.mxu0 0.0
    %888 = vmatpush1.xpose.msra.mxu0 0.0
    %889 = vmatprep.subr.mxu0 0.0
    %890 = vmatpush1.xpose.msra.mxu0 0.0
    %891 = vmatprep.subr.mxu0 0.0
    %892 = vmatpush1.xpose.msra.mxu0 0.0
    %893 = vmatprep.subr.mxu0 0.0
    %894 = vmatpush1.xpose.msra.mxu0 0.0
    %895 = vmatprep.subr.mxu0 0.0
    %896 = vmatpush1.xpose.msra.mxu0 0.0
    %897 = vmatprep.subr.mxu0 0.0
    %898 = vmatpush1.xpose.msra.mxu0 0.0
    %899 = vmatprep.subr.mxu0 0.0
    %900 = vmatpush1.xpose.msra.mxu0 0.0
    %901 = vmatprep.subr.mxu0 0.0
    %902 = vmatpush1.xpose.msra.mxu0 0.0
    %903 = vmatprep.subr.mxu0 0.0
    %904 = vmatpush1.xpose.msra.mxu0 0.0
    %905 = vmatprep.subr.mxu0 0.0
    %906 = vmatpush1.xpose.msra.mxu0 0.0
    %907 = vmatprep.subr.mxu0 0.0
    %908 = vmatpush1.xpose.msra.mxu0 0.0
    %909 = vmatprep.subr.mxu0 0.0
    %910 = vmatpush1.xpose.msra.mxu0 0.0
    %911 = vmatprep.subr.mxu0 0.0
    %912 = vmatpush1.xpose.msra.mxu0 0.0
    %913 = vmatprep.subr.mxu0 0.0
    %914 = vmatpush1.xpose.msra.mxu0 0.0
    %915 = vmatprep.subr.mxu0 0.0
    %916 = vmatpush1.xpose.msra.mxu0 0.0
    %917 = vmatprep.subr.mxu0 0.0
    %918 = vmatpush1.xpose.msra.mxu0 0.0
    %919 = vmatprep.subr.mxu0 0.0
    %920 = vmatpush1.xpose.msra.mxu0 0.0
    %921 = vmatprep.subr.mxu0 0.0
    %922 = vmatpush1.xpose.msra.mxu0 0.0
    %923 = vmatprep.subr.mxu0 0.0
    %924 = vmatpush1.xpose.msra.mxu0 0.0
    %925 = vmatprep.subr.mxu0 0.0
    %926 = vmatpush1.xpose.msra.mxu0 0.0
    %927 = vmatprep.subr.mxu0 0.0
    %928 = vmatpush1.xpose.msra.mxu0 0.0
    %929 = vmatprep.subr.mxu0 0.0
    %930 = vmatpush1.xpose.msra.mxu0 0.0
    %931 = vmatprep.subr.mxu0 0.0
    %932 = vmatpush1.xpose.msra.mxu0 0.0
    %933 = vmatprep.subr.mxu0 0.0
    %934 = vmatpush1.xpose.msra.mxu0 0.0
    %935 = vmatprep.subr.mxu0 0.0
    %936 = vmatpush1.xpose.msra.mxu0 0.0
    %937 = vmatprep.subr.mxu0 0.0
    %938 = vmatpush1.xpose.msra.mxu0 0.0
    %939 = vmatprep.subr.mxu0 0.0
    %940 = vmatpush1.xpose.msra.mxu0 0.0
    %941 = vmatprep.mubr.f32.mxu0 0.0
    %942 = vmatmul.mubr.f32.gmra.mrb[0].mxu0 %v873
    %v943 = vpop.f32.mrb[0].mxu0
    %v944 = vadd.f32 %v868, %v943
    %v945 = vpop.f32.mrb[0].mxu0
    %946 = vdwg.mxu0
    %v947 = vsel %vm455, %v944, -inf
    %948 = vmax.xlane.f32.xlu0 %v947
    %v949 = vpop.xlane.xlu0 %948
    %v950 = vsub.f32 %v944, %v949
    %v951 = vmul.f32 %v950, 1.442695
    %v952 = vpow.pop %v951
    %v953 = vsel %vm455, %v952, 0.0
    %954 = vadd.xlane.f32.xlu0 %v953
    %v955 = vpop.xlane.xlu0 %954
    %v956 = vrcp.pop %v955
    %v957 = vmul.f32 %v952, %v956
    %958 = vrot.lane.b32.xlu0 %v362, 64
    %v959 = vpop.permute.xlu0 %958
    %v962 = vsel %vm455, %v957, 0
    %964 = vmatprep.subr.mxu0 0.0
    %965 = vmatpush1.msra.mxu0 %v959
    %966 = vmatprep.subr.mxu0 0.0
    %967 = vmatpush1.msra.mxu0 0.0
    %968 = vmatprep.subr.mxu0 0.0
    %969 = vmatpush1.msra.mxu0 0.0
    %970 = vmatprep.subr.mxu0 0.0
    %971 = vmatpush1.msra.mxu0 0.0
    %972 = vmatprep.subr.mxu0 0.0
    %973 = vmatpush1.msra.mxu0 0.0
    %974 = vmatprep.subr.mxu0 0.0
    %975 = vmatpush1.msra.mxu0 0.0
    %976 = vmatprep.subr.mxu0 0.0
    %977 = vmatpush1.msra.mxu0 0.0
    %978 = vmatprep.subr.mxu0 0.0
    %979 = vmatpush1.msra.mxu0 0.0
    %980 = vmatprep.subr.mxu0 0.0
    %981 = vmatpush1.msra.mxu0 0.0
    %982 = vmatprep.subr.mxu0 0.0
    %983 = vmatpush1.msra.mxu0 0.0
    %984 = vmatprep.subr.mxu0 0.0
    %985 = vmatpush1.msra.mxu0 0.0
    %986 = vmatprep.subr.mxu0 0.0
    %987 = vmatpush1.msra.mxu0 0.0
    %988 = vmatprep.subr.mxu0 0.0
    %989 = vmatpush1.msra.mxu0 0.0
    %990 = vmatprep.subr.mxu0 0.0
    %991 = vmatpush1.msra.mxu0 0.0
    %992 = vmatprep.subr.mxu0 0.0
    %993 = vmatpush1.msra.mxu0 0.0
    %994 = vmatprep.subr.mxu0 0.0
    %995 = vmatpush1.msra.mxu0 0.0
    %996 = vmatprep.subr.mxu0 0.0
    %997 = vmatpush1.msra.mxu0 0.0
    %998 = vmatprep.subr.mxu0 0.0
    %999 = vmatpush1.msra.mxu0 0.0
    %1000 = vmatprep.subr.mxu0 0.0
    %1001 = vmatpush1.msra.mxu0 0.0
    %1002 = vmatprep.subr.mxu0 0.0
    %1003 = vmatpush1.msra.mxu0 0.0
    %1004 = vmatprep.subr.mxu0 0.0
    %1005 = vmatpush1.msra.mxu0 0.0
    %1006 = vmatprep.subr.mxu0 0.0
    %1007 = vmatpush1.msra.mxu0 0.0
    %1008 = vmatprep.subr.mxu0 0.0
    %1009 = vmatpush1.msra.mxu0 0.0
    %1010 = vmatprep.subr.mxu0 0.0
    %1011 = vmatpush1.msra.mxu0 0.0
    %1012 = vmatprep.subr.mxu0 0.0
    %1013 = vmatpush1.msra.mxu0 0.0
    %1014 = vmatprep.subr.mxu0 0.0
    %1015 = vmatpush1.msra.mxu0 0.0
    %1016 = vmatprep.subr.mxu0 0.0
    %1017 = vmatpush1.msra.mxu0 0.0
    %1018 = vmatprep.subr.mxu0 0.0
    %1019 = vmatpush1.msra.mxu0 0.0
    %1020 = vmatprep.subr.mxu0 0.0
    %1021 = vmatpush1.msra.mxu0 0.0
    %1022 = vmatprep.subr.mxu0 0.0
    %1023 = vmatpush1.msra.mxu0 0.0
    %1024 = vmatprep.subr.mxu0 0.0
    %1025 = vmatpush1.msra.mxu0 0.0
    %1026 = vmatprep.subr.mxu0 0.0
    %1027 = vmatpush1.msra.mxu0 0.0
    %1028 = vmatprep.mubr.f32.mxu0 0.0
    %1029 = vmatmul.mubr.f32.gmra.mrb[0].mxu0 %v962
    %v1030 = vpop.f32.mrb[0].mxu0
    %v1031 = vadd.f32 0.0, %v1030
    %v1032 = vpop.f32.mrb[0].mxu0
    %1033 = vdwg.mxu0
    %1034 = vrot.lane.b32.xlu0 %v362, 112
    %v1035 = vpop.permute.xlu0 %1034
    %1036 = vrot.lane.b32.xlu0 %v362, 80
    %v1037 = vpop.permute.xlu0 %1036
    %v1038 = vsel %vm380, %v1035, 0
    %v1040 = vsel %vm380, %v1037, 0
    %1042 = vmatprep.subr.mxu0 0.0
    %1043 = vmatpush1.xpose.msra.mxu0 %v1040
    %1044 = vmatprep.subr.mxu0 0.0
    %1045 = vmatpush1.xpose.msra.mxu0 0.0
    %1046 = vmatprep.subr.mxu0 0.0
    %1047 = vmatpush1.xpose.msra.mxu0 0.0
    %1048 = vmatprep.subr.mxu0 0.0
    %1049 = vmatpush1.xpose.msra.mxu0 0.0
    %1050 = vmatprep.subr.mxu0 0.0
    %1051 = vmatpush1.xpose.msra.mxu0 0.0
    %1052 = vmatprep.subr.mxu0 0.0
    %1053 = vmatpush1.xpose.msra.mxu0 0.0
    %1054 = vmatprep.subr.mxu0 0.0
    %1055 = vmatpush1.xpose.msra.mxu0 0.0
    %1056 = vmatprep.subr.mxu0 0.0
    %1057 = vmatpush1.xpose.msra.mxu0 0.0
    %1058 = vmatprep.subr.mxu0 0.0
    %1059 = vmatpush1.xpose.msra.mxu0 0.0
    %1060 = vmatprep.subr.mxu0 0.0
    %1061 = vmatpush1.xpose.msra.mxu0 0.0
    %1062 = vmatprep.subr.mxu0 0.0
    %1063 = vmatpush1.xpose.msra.mxu0 0.0
    %1064 = vmatprep.subr.mxu0 0.0
    %1065 = vmatpush1.xpose.msra.mxu0 0.0
    %1066 = vmatprep.subr.mxu0 0.0
    %1067 = vmatpush1.xpose.msra.mxu0 0.0
    %1068 = vmatprep.subr.mxu0 0.0
    %1069 = vmatpush1.xpose.msra.mxu0 0.0
    %1070 = vmatprep.subr.mxu0 0.0
    %1071 = vmatpush1.xpose.msra.mxu0 0.0
    %1072 = vmatprep.subr.mxu0 0.0
    %1073 = vmatpush1.xpose.msra.mxu0 0.0
    %1074 = vmatprep.subr.mxu0 0.0
    %1075 = vmatpush1.xpose.msra.mxu0 0.0
    %1076 = vmatprep.subr.mxu0 0.0
    %1077 = vmatpush1.xpose.msra.mxu0 0.0
    %1078 = vmatprep.subr.mxu0 0.0
    %1079 = vmatpush1.xpose.msra.mxu0 0.0
    %1080 = vmatprep.subr.mxu0 0.0
    %1081 = vmatpush1.xpose.msra.mxu0 0.0
    %1082 = vmatprep.subr.mxu0 0.0
    %1083 = vmatpush1.xpose.msra.mxu0 0.0
    %1084 = vmatprep.subr.mxu0 0.0
    %1085 = vmatpush1.xpose.msra.mxu0 0.0
    %1086 = vmatprep.subr.mxu0 0.0
    %1087 = vmatpush1.xpose.msra.mxu0 0.0
    %1088 = vmatprep.subr.mxu0 0.0
    %1089 = vmatpush1.xpose.msra.mxu0 0.0
    %1090 = vmatprep.subr.mxu0 0.0
    %1091 = vmatpush1.xpose.msra.mxu0 0.0
    %1092 = vmatprep.subr.mxu0 0.0
    %1093 = vmatpush1.xpose.msra.mxu0 0.0
    %1094 = vmatprep.subr.mxu0 0.0
    %1095 = vmatpush1.xpose.msra.mxu0 0.0
    %1096 = vmatprep.subr.mxu0 0.0
    %1097 = vmatpush1.xpose.msra.mxu0 0.0
    %1098 = vmatprep.subr.mxu0 0.0
    %1099 = vmatpush1.xpose.msra.mxu0 0.0
    %1100 = vmatprep.subr.mxu0 0.0
    %1101 = vmatpush1.xpose.msra.mxu0 0.0
    %1102 = vmatprep.subr.mxu0 0.0
    %1103 = vmatpush1.xpose.msra.mxu0 0.0
    %1104 = vmatprep.subr.mxu0 0.0
    %1105 = vmatpush1.xpose.msra.mxu0 0.0
    %1106 = vmatprep.mubr.f32.mxu0 0.0
    %1107 = vmatmul.mubr.f32.gmra.mrb[0].mxu0 %v1038
    %v1108 = vpop.f32.mrb[0].mxu0
    %v1109 = vadd.f32 %v868, %v1108
    %v1110 = vpop.f32.mrb[0].mxu0
    %1111 = vdwg.mxu0
    %v1112 = vsel %vm455, %v1109, -inf
    %1113 = vmax.xlane.f32.xlu0 %v1112
    %v1114 = vpop.xlane.xlu0 %1113
    %v1115 = vsub.f32 %v1109, %v1114
    %v1116 = vmul.f32 %v1115, 1.442695
    %v1117 = vpow.pop %v1116
    %v1118 = vsel %vm455, %v1117, 0.0
    %1119 = vadd.xlane.f32.xlu0 %v1118
    %v1120 = vpop.xlane.xlu0 %1119
    %v1121 = vrcp.pop %v1120
    %v1122 = vmul.f32 %v1117, %v1121
    %1123 = vrot.lane.b32.xlu0 %v362, 48
    %v1124 = vpop.permute.xlu0 %1123
    %v1127 = vsel %vm455, %v1122, 0
    %1129 = vmatprep.subr.mxu0 0.0
    %1130 = vmatpush1.msra.mxu0 %v1124
    %1131 = vmatprep.subr.mxu0 0.0
    %1132 = vmatpush1.msra.mxu0 0.0
    %1133 = vmatprep.subr.mxu0 0.0
    %1134 = vmatpush1.msra.mxu0 0.0
    %1135 = vmatprep.subr.mxu0 0.0
    %1136 = vmatpush1.msra.mxu0 0.0
    %1137 = vmatprep.subr.mxu0 0.0
    %1138 = vmatpush1.msra.mxu0 0.0
    %1139 = vmatprep.subr.mxu0 0.0
    %1140 = vmatpush1.msra.mxu0 0.0
    %1141 = vmatprep.subr.mxu0 0.0
    %1142 = vmatpush1.msra.mxu0 0.0
    %1143 = vmatprep.subr.mxu0 0.0
    %1144 = vmatpush1.msra.mxu0 0.0
    %1145 = vmatprep.subr.mxu0 0.0
    %1146 = vmatpush1.msra.mxu0 0.0
    %1147 = vmatprep.subr.mxu0 0.0
    %1148 = vmatpush1.msra.mxu0 0.0
    %1149 = vmatprep.subr.mxu0 0.0
    %1150 = vmatpush1.msra.mxu0 0.0
    %1151 = vmatprep.subr.mxu0 0.0
    %1152 = vmatpush1.msra.mxu0 0.0
    %1153 = vmatprep.subr.mxu0 0.0
    %1154 = vmatpush1.msra.mxu0 0.0
    %1155 = vmatprep.subr.mxu0 0.0
    %1156 = vmatpush1.msra.mxu0 0.0
    %1157 = vmatprep.subr.mxu0 0.0
    %1158 = vmatpush1.msra.mxu0 0.0
    %1159 = vmatprep.subr.mxu0 0.0
    %1160 = vmatpush1.msra.mxu0 0.0
    %1161 = vmatprep.subr.mxu0 0.0
    %1162 = vmatpush1.msra.mxu0 0.0
    %1163 = vmatprep.subr.mxu0 0.0
    %1164 = vmatpush1.msra.mxu0 0.0
    %1165 = vmatprep.subr.mxu0 0.0
    %1166 = vmatpush1.msra.mxu0 0.0
    %1167 = vmatprep.subr.mxu0 0.0
    %1168 = vmatpush1.msra.mxu0 0.0
    %1169 = vmatprep.subr.mxu0 0.0
    %1170 = vmatpush1.msra.mxu0 0.0
    %1171 = vmatprep.subr.mxu0 0.0
    %1172 = vmatpush1.msra.mxu0 0.0
    %1173 = vmatprep.subr.mxu0 0.0
    %1174 = vmatpush1.msra.mxu0 0.0
    %1175 = vmatprep.subr.mxu0 0.0
    %1176 = vmatpush1.msra.mxu0 0.0
    %1177 = vmatprep.subr.mxu0 0.0
    %1178 = vmatpush1.msra.mxu0 0.0
    %1179 = vmatprep.subr.mxu0 0.0
    %1180 = vmatpush1.msra.mxu0 0.0
    %1181 = vmatprep.subr.mxu0 0.0
    %1182 = vmatpush1.msra.mxu0 0.0
    %1183 = vmatprep.subr.mxu0 0.0
    %1184 = vmatpush1.msra.mxu0 0.0
    %1185 = vmatprep.subr.mxu0 0.0
    %1186 = vmatpush1.msra.mxu0 0.0
    %1187 = vmatprep.subr.mxu0 0.0
    %1188 = vmatpush1.msra.mxu0 0.0
    %1189 = vmatprep.subr.mxu0 0.0
    %1190 = vmatpush1.msra.mxu0 0.0
    %1191 = vmatprep.subr.mxu0 0.0
    %1192 = vmatpush1.msra.mxu0 0.0
    %1193 = vmatprep.mubr.f32.mxu0 0.0
    %1194 = vmatmul.mubr.f32.gmra.mrb[0].mxu0 %v1127
    %v1195 = vpop.f32.mrb[0].mxu0
    %v1196 = vadd.f32 0.0, %v1195
    %v1197 = vpop.f32.mrb[0].mxu0
    %1198 = vdwg.mxu0
    %v1200 = vsel %vm380, %v1196, 0
    %1202 = vmatprep.subr.mxu0 0.0
    %1203 = vmatpush1.msra.mxu0 %v367
    %1204 = vmatprep.subr.mxu0 0.0
    %1205 = vmatpush1.msra.mxu0 %v368
    %1206 = vmatprep.subr.mxu0 0.0
    %1207 = vmatpush1.msra.mxu0 0.0
    %1208 = vmatprep.subr.mxu0 0.0
    %1209 = vmatpush1.msra.mxu0 0.0
    %1210 = vmatprep.subr.mxu0 0.0
    %1211 = vmatpush1.msra.mxu0 0.0
    %1212 = vmatprep.subr.mxu0 0.0
    %1213 = vmatpush1.msra.mxu0 0.0
    %1214 = vmatprep.subr.mxu0 0.0
    %1215 = vmatpush1.msra.mxu0 0.0
    %1216 = vmatprep.subr.mxu0 0.0
    %1217 = vmatpush1.msra.mxu0 0.0
    %1218 = vmatprep.subr.mxu0 0.0
    %1219 = vmatpush1.msra.mxu0 0.0
    %1220 = vmatprep.subr.mxu0 0.0
    %1221 = vmatpush1.msra.mxu0 0.0
    %1222 = vmatprep.subr.mxu0 0.0
    %1223 = vmatpush1.msra.mxu0 0.0
    %1224 = vmatprep.subr.mxu0 0.0
    %1225 = vmatpush1.msra.mxu0 0.0
    %1226 = vmatprep.subr.mxu0 0.0
    %1227 = vmatpush1.msra.mxu0 0.0
    %1228 = vmatprep.subr.mxu0 0.0
    %1229 = vmatpush1.msra.mxu0 0.0
    %1230 = vmatprep.subr.mxu0 0.0
    %1231 = vmatpush1.msra.mxu0 0.0
    %1232 = vmatprep.subr.mxu0 0.0
    %1233 = vmatpush1.msra.mxu0 0.0
    %1234 = vmatprep.subr.mxu0 0.0
    %1235 = vmatpush1.msra.mxu0 0.0
    %1236 = vmatprep.subr.mxu0 0.0
    %1237 = vmatpush1.msra.mxu0 0.0
    %1238 = vmatprep.subr.mxu0 0.0
    %1239 = vmatpush1.msra.mxu0 0.0
    %1240 = vmatprep.subr.mxu0 0.0
    %1241 = vmatpush1.msra.mxu0 0.0
    %1242 = vmatprep.subr.mxu0 0.0
    %1243 = vmatpush1.msra.mxu0 0.0
    %1244 = vmatprep.subr.mxu0 0.0
    %1245 = vmatpush1.msra.mxu0 0.0
    %1246 = vmatprep.subr.mxu0 0.0
    %1247 = vmatpush1.msra.mxu0 0.0
    %1248 = vmatprep.subr.mxu0 0.0
    %1249 = vmatpush1.msra.mxu0 0.0
    %1250 = vmatprep.subr.mxu0 0.0
    %1251 = vmatpush1.msra.mxu0 0.0
    %1252 = vmatprep.subr.mxu0 0.0
    %1253 = vmatpush1.msra.mxu0 0.0
    %1254 = vmatprep.subr.mxu0 0.0
    %1255 = vmatpush1.msra.mxu0 0.0
    %1256 = vmatprep.subr.mxu0 0.0
    %1257 = vmatpush1.msra.mxu0 0.0
    %1258 = vmatprep.subr.mxu0 0.0
    %1259 = vmatpush1.msra.mxu0 0.0
    %1260 = vmatprep.subr.mxu0 0.0
    %1261 = vmatpush1.msra.mxu0 0.0
    %1262 = vmatprep.subr.mxu0 0.0
    %1263 = vmatpush1.msra.mxu0 0.0
    %1264 = vmatprep.subr.mxu0 0.0
    %1265 = vmatpush1.msra.mxu0 0.0
    %1266 = vmatprep.mubr.f32.mxu0 0.0
    %1267 = vmatmul.mubr.f32.gmra.mrb[0].mxu0 %v1200
    %v1268 = vpop.f32.mrb[0].mxu0
    %v1269 = vadd.f32 0.0, %v1268
    %v1270 = vpop.f32.mrb[0].mxu0
    %1271 = vdwg.mxu0
    %v1273 = vsel %vm380, %v1031, 0
    %1275 = vmatprep.subr.mxu0 0.0
    %1276 = vmatpush1.msra.mxu0 %v365
    %1277 = vmatprep.subr.mxu0 0.0
    %1278 = vmatpush1.msra.mxu0 %v366
    %1279 = vmatprep.subr.mxu0 0.0
    %1280 = vmatpush1.msra.mxu0 0.0
    %1281 = vmatprep.subr.mxu0 0.0
    %1282 = vmatpush1.msra.mxu0 0.0
    %1283 = vmatprep.subr.mxu0 0.0
    %1284 = vmatpush1.msra.mxu0 0.0
    %1285 = vmatprep.subr.mxu0 0.0
    %1286 = vmatpush1.msra.mxu0 0.0
    %1287 = vmatprep.subr.mxu0 0.0
    %1288 = vmatpush1.msra.mxu0 0.0
    %1289 = vmatprep.subr.mxu0 0.0
    %1290 = vmatpush1.msra.mxu0 0.0
    %1291 = vmatprep.subr.mxu0 0.0
    %1292 = vmatpush1.msra.mxu0 0.0
    %1293 = vmatprep.subr.mxu0 0.0
    %1294 = vmatpush1.msra.mxu0 0.0
    %1295 = vmatprep.subr.mxu0 0.0
    %1296 = vmatpush1.msra.mxu0 0.0
    %1297 = vmatprep.subr.mxu0 0.0
    %1298 = vmatpush1.msra.mxu0 0.0
    %1299 = vmatprep.subr.mxu0 0.0
    %1300 = vmatpush1.msra.mxu0 0.0
    %1301 = vmatprep.subr.mxu0 0.0
    %1302 = vmatpush1.msra.mxu0 0.0
    %1303 = vmatprep.subr.mxu0 0.0
    %1304 = vmatpush1.msra.mxu0 0.0
    %1305 = vmatprep.subr.mxu0 0.0
    %1306 = vmatpush1.msra.mxu0 0.0
    %1307 = vmatprep.subr.mxu0 0.0
    %1308 = vmatpush1.msra.mxu0 0.0
    %1309 = vmatprep.subr.mxu0 0.0
    %1310 = vmatpush1.msra.mxu0 0.0
    %1311 = vmatprep.subr.mxu0 0.0
    %1312 = vmatpush1.msra.mxu0 0.0
    %1313 = vmatprep.subr.mxu0 0.0
    %1314 = vmatpush1.msra.mxu0 0.0
    %1315 = vmatprep.subr.mxu0 0.0
    %1316 = vmatpush1.msra.mxu0 0.0
    %1317 = vmatprep.subr.mxu0 0.0
    %1318 = vmatpush1.msra.mxu0 0.0
    %1319 = vmatprep.subr.mxu0 0.0
    %1320 = vmatpush1.msra.mxu0 0.0
    %1321 = vmatprep.subr.mxu0 0.0
    %1322 = vmatpush1.msra.mxu0 0.0
    %1323 = vmatprep.subr.mxu0 0.0
    %1324 = vmatpush1.msra.mxu0 0.0
    %1325 = vmatprep.subr.mxu0 0.0
    %1326 = vmatpush1.msra.mxu0 0.0
    %1327 = vmatprep.subr.mxu0 0.0
    %1328 = vmatpush1.msra.mxu0 0.0
    %1329 = vmatprep.subr.mxu0 0.0
    %1330 = vmatpush1.msra.mxu0 0.0
    %1331 = vmatprep.subr.mxu0 0.0
    %1332 = vmatpush1.msra.mxu0 0.0
    %1333 = vmatprep.subr.mxu0 0.0
    %1334 = vmatpush1.msra.mxu0 0.0
    %1335 = vmatprep.subr.mxu0 0.0
    %1336 = vmatpush1.msra.mxu0 0.0
    %1337 = vmatprep.subr.mxu0 0.0
    %1338 = vmatpush1.msra.mxu0 0.0
    %1339 = vmatprep.mubr.f32.mxu0 0.0
    %1340 = vmatmul.mubr.f32.gmra.mrb[0].mxu0 %v1273
    %v1341 = vpop.f32.mrb[0].mxu0
    %v1342 = vadd.f32 %v1269, %v1341
    %v1343 = vpop.f32.mrb[0].mxu0
    %1344 = vdwg.mxu0
    %v1345 = vadd.f32 %v1342, %v858
    %1346 = vst.msk [vmem:[#allocation2 + $0x8] sm:$0xff] %vm229, %v1345
    %v1347 = vld [vmem:[#allocation2] sm:$0xff]
    %v1348 = vld [vmem:[#allocation2 + $0x8] sm:$0xff]
    %v1349 = vadd.f32 %v1347, %v271
    %v1350 = vadd.f32 %v1348, %v272
    %v1351 = vld [vmem:[#allocation12] sm:$0x1]
    %v1352 = vld [vmem:[#allocation14] sm:$0x1]
    %v1353 = vsel %vm229, %v1349, 0.0
    %1354 = vadd.xlane.f32.xlu0 %v1353
    %v1355 = vpop.xlane.xlu0 %1354
    %v1356 = vsel %vm229, %v1350, 0.0
    %1357 = vadd.xlane.f32.xlu0 %v1356
    %v1358 = vpop.xlane.xlu0 %1357
    %v1359 = vmul.f32 %v1355, %v236
    %v1360 = vmul.f32 %v1358, %v236
    %v1361 = vsub.f32 %v1349, %v1359
    %v1362 = vsub.f32 %v1350, %v1360
    %v1363 = vmul.f32 %v1361, %v1361
    %v1364 = vmul.f32 %v1362, %v1362
    %v1365 = vsel %vm229, %v1363, 0.0
    %1366 = vadd.xlane.f32.xlu0 %v1365
    %v1367 = vpop.xlane.xlu0 %1366
    %v1368 = vsel %vm229, %v1364, 0.0
    %1369 = vadd.xlane.f32.xlu0 %v1368
    %v1370 = vpop.xlane.xlu0 %1369
    %v1371 = vmul.f32 %v1367, %v236
    %v1372 = vmul.f32 %v1370, %v236
    %v1373 = vadd.f32 %v1371, 1e-12
    %v1374 = vadd.f32 %v1372, 1e-12
    %v1375 = vrsqrt.pop %v1373
    %v1376 = vrsqrt.pop %v1374
    %v1377 = vmul.f32 %v1361, %v1375
    %v1378 = vmul.f32 %v1362, %v1376
    %v1380 = vlaneseq
    %v1381 = vshrl.u32 %v1380, 7
    %v1382 = vsub.s32 0, %v1381
    %v1383 = vrot.slane %v1351, %v1382
    %v1385 = vmul.f32 %v1377, %v1383
    %v1386 = vmul.f32 %v1378, %v1383
    %v1388 = vlaneseq
    %v1389 = vshrl.u32 %v1388, 7
    %v1390 = vsub.s32 0, %v1389
    %v1391 = vrot.slane %v1352, %v1390
    %v1393 = vadd.f32 %v1385, %v1391
    %v1394 = vadd.f32 %v1386, %v1391
    %v1395 = vld [vmem:[%s10] sm:$0xff]
    %v1396 = vld [vmem:[%s10 + $0x8] sm:$0xff]
    %v1397 = vld [vmem:[%s10 + $0x10] sm:$0xff]
    %v1398 = vld [vmem:[%s10 + $0x18] sm:$0xff]
    %v1399 = vld [vmem:[#allocation15] sm:$0x1]
    %v1401 = vlaneseq
    %v1402 = vshrl.u32 %v1401, 7
    %v1403 = vsub.s32 0, %v1402
    %v1404 = vrot.slane %v1399, %v1403
    %v1407 = vsel %vm229, %v1393, 0
    %v1410 = vsel %vm229, %v1394, 0
    %1412 = vmatprep.subr.mxu0 0.0
    %1413 = vmatpush1.msra.mxu0 %v1395
    %1414 = vmatprep.subr.mxu0 0.0
    %1415 = vmatpush1.msra.mxu0 %v1396
    %1416 = vmatprep.subr.mxu0 0.0
    %1417 = vmatpush1.msra.mxu0 %v1397
    %1418 = vmatprep.subr.mxu0 0.0
    %1419 = vmatpush1.msra.mxu0 %v1398
    %1420 = vmatprep.subr.mxu0 0.0
    %1421 = vmatpush1.msra.mxu0 0.0
    %1422 = vmatprep.subr.mxu0 0.0
    %1423 = vmatpush1.msra.mxu0 0.0
    %1424 = vmatprep.subr.mxu0 0.0
    %1425 = vmatpush1.msra.mxu0 0.0
    %1426 = vmatprep.subr.mxu0 0.0
    %1427 = vmatpush1.msra.mxu0 0.0
    %1428 = vmatprep.subr.mxu0 0.0
    %1429 = vmatpush1.msra.mxu0 0.0
    %1430 = vmatprep.subr.mxu0 0.0
    %1431 = vmatpush1.msra.mxu0 0.0
    %1432 = vmatprep.subr.mxu0 0.0
    %1433 = vmatpush1.msra.mxu0 0.0
    %1434 = vmatprep.subr.mxu0 0.0
    %1435 = vmatpush1.msra.mxu0 0.0
    %1436 = vmatprep.subr.mxu0 0.0
    %1437 = vmatpush1.msra.mxu0 0.0
    %1438 = vmatprep.subr.mxu0 0.0
    %1439 = vmatpush1.msra.mxu0 0.0
    %1440 = vmatprep.subr.mxu0 0.0
    %1441 = vmatpush1.msra.mxu0 0.0
    %1442 = vmatprep.subr.mxu0 0.0
    %1443 = vmatpush1.msra.mxu0 0.0
    %1444 = vmatprep.subr.mxu0 0.0
    %1445 = vmatpush1.msra.mxu0 0.0
    %1446 = vmatprep.subr.mxu0 0.0
    %1447 = vmatpush1.msra.mxu0 0.0
    %1448 = vmatprep.subr.mxu0 0.0
    %1449 = vmatpush1.msra.mxu0 0.0
    %1450 = vmatprep.subr.mxu0 0.0
    %1451 = vmatpush1.msra.mxu0 0.0
    %1452 = vmatprep.subr.mxu0 0.0
    %1453 = vmatpush1.msra.mxu0 0.0
    %1454 = vmatprep.subr.mxu0 0.0
    %1455 = vmatpush1.msra.mxu0 0.0
    %1456 = vmatprep.subr.mxu0 0.0
    %1457 = vmatpush1.msra.mxu0 0.0
    %1458 = vmatprep.subr.mxu0 0.0
    %1459 = vmatpush1.msra.mxu0 0.0
    %1460 = vmatprep.subr.mxu0 0.0
    %1461 = vmatpush1.msra.mxu0 0.0
    %1462 = vmatprep.subr.mxu0 0.0
    %1463 = vmatpush1.msra.mxu0 0.0
    %1464 = vmatprep.subr.mxu0 0.0
    %1465 = vmatpush1.msra.mxu0 0.0
    %1466 = vmatprep.subr.mxu0 0.0
    %1467 = vmatpush1.msra.mxu0 0.0
    %1468 = vmatprep.subr.mxu0 0.0
    %1469 = vmatpush1.msra.mxu0 0.0
    %1470 = vmatprep.subr.mxu0 0.0
    %1471 = vmatpush1.msra.mxu0 0.0
    %1472 = vmatprep.subr.mxu0 0.0
    %1473 = vmatpush1.msra.mxu0 0.0
    %1474 = vmatprep.subr.mxu0 0.0
    %1475 = vmatpush1.msra.mxu0 0.0
    %1476 = vmatprep.mubr.f32.mxu0 0.0
    %1477 = vmatmul.mubr.f32.gmra.mrb[0].mxu0 %v1407
    %v1478 = vpop.f32.mrb[0].mxu0
    %v1479 = vadd.f32 %v1404, %v1478
    %v1480 = vpop.f32.mrb[0].mxu0
    %1481 = vmatprep.mubr.f32.mxu0 0.0
    %1482 = vmatmul.mubr.f32.gmra.mrb[0].mxu0 %v1410
    %v1483 = vpop.f32.mrb[0].mxu0
    %v1484 = vadd.f32 %v1404, %v1483
    %v1485 = vpop.f32.mrb[0].mxu0
    %1486 = vdwg.mxu0
    %v1487 = vmul.f32 %v1479, 0.5
    %v1488 = vmul.f32 %v1484, 0.5
    %v1489 = vmul.f32 %v1479, 0.70710677
    %v1490 = vmul.f32 %v1484, 0.70710677
    %v1491 = verf.f32.pop %v1489
    %v1492 = verf.f32.pop %v1490
    %v1493 = vadd.f32 %v1491, 1.0
    %v1494 = vadd.f32 %v1492, 1.0
    %v1495 = vmul.f32 %v1487, %v1493
    %v1496 = vmul.f32 %v1488, %v1494
    %v1497 = vld [vmem:[%s12] sm:$0xff]
    %v1498 = vld [vmem:[%s12 + $0x8] sm:$0xff]
    %v1499 = vld [vmem:[%s12 + $0x10] sm:$0xff]
    %v1500 = vld [vmem:[%s12 + $0x18] sm:$0xff]
    %v1501 = vld [vmem:[%s12 + $0x20] sm:$0xff]
    %v1502 = vld [vmem:[%s12 + $0x28] sm:$0xff]
    %v1503 = vld [vmem:[%s12 + $0x30] sm:$0xff]
    %v1504 = vld [vmem:[%s12 + $0x38] sm:$0xff]
    %v1505 = vld [vmem:[#allocation17] sm:$0x1]
    %v1507 = vlaneseq
    %v1508 = vshrl.u32 %v1507, 7
    %v1509 = vsub.s32 0, %v1508
    %v1510 = vrot.slane %v1505, %v1509
    %vm1512 = vcmask 523264
    %v1514 = vsel %vm1512, %v1495, 0
    %v1517 = vsel %vm1512, %v1496, 0
    %1519 = vmatprep.subr.mxu0 0.0
    %1520 = vmatpush1.msra.mxu0 %v1497
    %1521 = vmatprep.subr.mxu0 0.0
    %1522 = vmatpush1.msra.mxu0 %v1498
    %1523 = vmatprep.subr.mxu0 0.0
    %1524 = vmatpush1.msra.mxu0 %v1499
    %1525 = vmatprep.subr.mxu0 0.0
    %1526 = vmatpush1.msra.mxu0 %v1500
    %1527 = vmatprep.subr.mxu0 0.0
    %1528 = vmatpush1.msra.mxu0 %v1501
    %1529 = vmatprep.subr.mxu0 0.0
    %1530 = vmatpush1.msra.mxu0 %v1502
    %1531 = vmatprep.subr.mxu0 0.0
    %1532 = vmatpush1.msra.mxu0 %v1503
    %1533 = vmatprep.subr.mxu0 0.0
    %1534 = vmatpush1.msra.mxu0 %v1504
    %1535 = vmatprep.subr.mxu0 0.0
    %1536 = vmatpush1.msra.mxu0 0.0
    %1537 = vmatprep.subr.mxu0 0.0
    %1538 = vmatpush1.msra.mxu0 0.0
    %1539 = vmatprep.subr.mxu0 0.0
    %1540 = vmatpush1.msra.mxu0 0.0
    %1541 = vmatprep.subr.mxu0 0.0
    %1542 = vmatpush1.msra.mxu0 0.0
    %1543 = vmatprep.subr.mxu0 0.0
    %1544 = vmatpush1.msra.mxu0 0.0
    %1545 = vmatprep.subr.mxu0 0.0
    %1546 = vmatpush1.msra.mxu0 0.0
    %1547 = vmatprep.subr.mxu0 0.0
    %1548 = vmatpush1.msra.mxu0 0.0
    %1549 = vmatprep.subr.mxu0 0.0
    %1550 = vmatpush1.msra.mxu0 0.0
    %1551 = vmatprep.subr.mxu0 0.0
    %1552 = vmatpush1.msra.mxu0 0.0
    %1553 = vmatprep.subr.mxu0 0.0
    %1554 = vmatpush1.msra.mxu0 0.0
    %1555 = vmatprep.subr.mxu0 0.0
    %1556 = vmatpush1.msra.mxu0 0.0
    %1557 = vmatprep.subr.mxu0 0.0
    %1558 = vmatpush1.msra.mxu0 0.0
    %1559 = vmatprep.subr.mxu0 0.0
    %1560 = vmatpush1.msra.mxu0 0.0
    %1561 = vmatprep.subr.mxu0 0.0
    %1562 = vmatpush1.msra.mxu0 0.0
    %1563 = vmatprep.subr.mxu0 0.0
    %1564 = vmatpush1.msra.mxu0 0.0
    %1565 = vmatprep.subr.mxu0 0.0
    %1566 = vmatpush1.msra.mxu0 0.0
    %1567 = vmatprep.subr.mxu0 0.0
    %1568 = vmatpush1.msra.mxu0 0.0
    %1569 = vmatprep.subr.mxu0 0.0
    %1570 = vmatpush1.msra.mxu0 0.0
    %1571 = vmatprep.subr.mxu0 0.0
    %1572 = vmatpush1.msra.mxu0 0.0
    %1573 = vmatprep.subr.mxu0 0.0
    %1574 = vmatpush1.msra.mxu0 0.0
    %1575 = vmatprep.subr.mxu0 0.0
    %1576 = vmatpush1.msra.mxu0 0.0
    %1577 = vmatprep.subr.mxu0 0.0
    %1578 = vmatpush1.msra.mxu0 0.0
    %1579 = vmatprep.subr.mxu0 0.0
    %1580 = vmatpush1.msra.mxu0 0.0
    %1581 = vmatprep.subr.mxu0 0.0
    %1582 = vmatpush1.msra.mxu0 0.0
    %1583 = vmatprep.mubr.f32.mxu0 0.0
    %1584 = vmatmul.mubr.f32.gmra.mrb[0].mxu0 %v1514
    %v1585 = vpop.f32.mrb[0].mxu0
    %v1586 = vadd.f32 %v1510, %v1585
    %v1587 = vpop.f32.mrb[0].mxu0
    %1588 = vmatprep.mubr.f32.mxu0 0.0
    %1589 = vmatmul.mubr.f32.gmra.mrb[0].mxu0 %v1517
    %v1590 = vpop.f32.mrb[0].mxu0
    %v1591 = vadd.f32 %v1510, %v1590
    %v1592 = vpop.f32.mrb[0].mxu0
    %1593 = vdwg.mxu0
    %v1594 = vadd.f32 %v1586, %v1393
    %v1595 = vadd.f32 %v1591, %v1394
    %v1596 = vld [vmem:[#allocation18] sm:$0x1]
    %v1597 = vld [vmem:[#allocation20] sm:$0x1]
    %v1598 = vsel %vm229, %v1594, 0.0
    %1599 = vadd.xlane.f32.xlu0 %v1598
    %v1600 = vpop.xlane.xlu0 %1599
    %v1601 = vsel %vm229, %v1595, 0.0
    %1602 = vadd.xlane.f32.xlu0 %v1601
    %v1603 = vpop.xlane.xlu0 %1602
    %v1604 = vmul.f32 %v1600, %v236
    %v1605 = vmul.f32 %v1603, %v236
    %v1606 = vsub.f32 %v1594, %v1604
    %v1607 = vsub.f32 %v1595, %v1605
    %v1608 = vmul.f32 %v1606, %v1606
    %v1609 = vmul.f32 %v1607, %v1607
    %v1610 = vsel %vm229, %v1608, 0.0
    %1611 = vadd.xlane.f32.xlu0 %v1610
    %v1612 = vpop.xlane.xlu0 %1611
    %v1613 = vsel %vm229, %v1609, 0.0
    %1614 = vadd.xlane.f32.xlu0 %v1613
    %v1615 = vpop.xlane.xlu0 %1614
    %v1616 = vmul.f32 %v1612, %v236
    %v1617 = vmul.f32 %v1615, %v236
    %v1618 = vadd.f32 %v1616, 1e-12
    %v1619 = vadd.f32 %v1617, 1e-12
    %v1620 = vrsqrt.pop %v1618
    %v1621 = vrsqrt.pop %v1619
    %v1622 = vmul.f32 %v1606, %v1620
    %v1623 = vmul.f32 %v1607, %v1621
    %v1625 = vlaneseq
    %v1626 = vshrl.u32 %v1625, 7
    %v1627 = vsub.s32 0, %v1626
    %v1628 = vrot.slane %v1596, %v1627
    %v1630 = vmul.f32 %v1622, %v1628
    %v1631 = vmul.f32 %v1623, %v1628
    %v1633 = vlaneseq
    %v1634 = vshrl.u32 %v1633, 7
    %v1635 = vsub.s32 0, %v1634
    %v1636 = vrot.slane %v1597, %v1635
    %v1638 = vadd.f32 %v1630, %v1636
    %v1639 = vadd.f32 %v1631, %v1636
    %s1640 = scalar_lea.vmem %s4, 32
    %v1641 = vld [vmem:[%s1640] sm:$0xff]
    %v1642 = vld [vmem:[%s1640 + $0x8] sm:$0xff]
    %v1643 = vld [vmem:[%s1640 + $0x10] sm:$0xff]
    %v1644 = vld [vmem:[%s1640 + $0x18] sm:$0xff]
    %s1645 = scalar_lea.vmem [#allocation9], 1
    %v1646 = vld [vmem:[%s1645] sm:$0x1]
    %v1648 = vlaneseq
    %v1649 = vshrl.u32 %v1648, 7
    %v1650 = vsub.s32 0, %v1649
    %v1651 = vrot.slane %v1646, %v1650
    %v1654 = vsel %vm229, %v1638, 0
    %v1657 = vsel %vm229, %v1639, 0
    %1659 = vmatprep.subr.mxu0 0.0
    %1660 = vmatpush1.msra.mxu0 %v1641
    %1661 = vmatprep.subr.mxu0 0.0
    %1662 = vmatpush1.msra.mxu0 %v1642
    %1663 = vmatprep.subr.mxu0 0.0
    %1664 = vmatpush1.msra.mxu0 %v1643
    %1665 = vmatprep.subr.mxu0 0.0
    %1666 = vmatpush1.msra.mxu0 %v1644
    %1667 = vmatprep.subr.mxu0 0.0
    %1668 = vmatpush1.msra.mxu0 0.0
    %1669 = vmatprep.subr.mxu0 0.0
    %1670 = vmatpush1.msra.mxu0 0.0
    %1671 = vmatprep.subr.mxu0 0.0
    %1672 = vmatpush1.msra.mxu0 0.0
    %1673 = vmatprep.subr.mxu0 0.0
    %1674 = vmatpush1.msra.mxu0 0.0
    %1675 = vmatprep.subr.mxu0 0.0
    %1676 = vmatpush1.msra.mxu0 0.0
    %1677 = vmatprep.subr.mxu0 0.0
    %1678 = vmatpush1.msra.mxu0 0.0
    %1679 = vmatprep.subr.mxu0 0.0
    %1680 = vmatpush1.msra.mxu0 0.0
    %1681 = vmatprep.subr.mxu0 0.0
    %1682 = vmatpush1.msra.mxu0 0.0
    %1683 = vmatprep.subr.mxu0 0.0
    %1684 = vmatpush1.msra.mxu0 0.0
    %1685 = vmatprep.subr.mxu0 0.0
    %1686 = vmatpush1.msra.mxu0 0.0
    %1687 = vmatprep.subr.mxu0 0.0
    %1688 = vmatpush1.msra.mxu0 0.0
    %1689 = vmatprep.subr.mxu0 0.0
    %1690 = vmatpush1.msra.mxu0 0.0
    %1691 = vmatprep.subr.mxu0 0.0
    %1692 = vmatpush1.msra.mxu0 0.0
    %1693 = vmatprep.subr.mxu0 0.0
    %1694 = vmatpush1.msra.mxu0 0.0
    %1695 = vmatprep.subr.mxu0 0.0
    %1696 = vmatpush1.msra.mxu0 0.0
    %1697 = vmatprep.subr.mxu0 0.0
    %1698 = vmatpush1.msra.mxu0 0.0
    %1699 = vmatprep.subr.mxu0 0.0
    %1700 = vmatpush1.msra.mxu0 0.0
    %1701 = vmatprep.subr.mxu0 0.0
    %1702 = vmatpush1.msra.mxu0 0.0
    %1703 = vmatprep.subr.mxu0 0.0
    %1704 = vmatpush1.msra.mxu0 0.0
    %1705 = vmatprep.subr.mxu0 0.0
    %1706 = vmatpush1.msra.mxu0 0.0
    %1707 = vmatprep.subr.mxu0 0.0
    %1708 = vmatpush1.msra.mxu0 0.0
    %1709 = vmatprep.subr.mxu0 0.0
    %1710 = vmatpush1.msra.mxu0 0.0
    %1711 = vmatprep.subr.mxu0 0.0
    %1712 = vmatpush1.msra.mxu0 0.0
    %1713 = vmatprep.subr.mxu0 0.0
    %1714 = vmatpush1.msra.mxu0 0.0
    %1715 = vmatprep.subr.mxu0 0.0
    %1716 = vmatpush1.msra.mxu0 0.0
    %1717 = vmatprep.subr.mxu0 0.0
    %1718 = vmatpush1.msra.mxu0 0.0
    %1719 = vmatprep.subr.mxu0 0.0
    %1720 = vmatpush1.msra.mxu0 0.0
    %1721 = vmatprep.subr.mxu0 0.0
    %1722 = vmatpush1.msra.mxu0 0.0
    %1723 = vmatprep.mubr.f32.mxu0 0.0
    %1724 = vmatmul.mubr.f32.gmra.mrb[0].mxu0 %v1654
    %v1725 = vpop.f32.mrb[0].mxu0
    %v1726 = vadd.f32 %v1651, %v1725
    %v1727 = vpop.f32.mrb[0].mxu0
    %1728 = vmatprep.mubr.f32.mxu0 0.0
    %1729 = vmatmul.mubr.f32.gmra.mrb[0].mxu0 %v1657
    %v1730 = vpop.f32.mrb[0].mxu0
    %v1731 = vadd.f32 %v1651, %v1730
    %v1732 = vpop.f32.mrb[0].mxu0
    %1733 = vdwg.mxu0
    %s1734 = scalar_lea.vmem %s6, 32
    %v1735 = vld [vmem:[%s1734] sm:$0xff]
    %v1736 = vld [vmem:[%s1734 + $0x8] sm:$0xff]
    %v1737 = vld [vmem:[%s1734 + $0x10] sm:$0xff]
    %v1738 = vld [vmem:[%s1734 + $0x18] sm:$0xff]
    %s1739 = scalar_lea.vmem [#allocation11], 1
    %v1740 = vld [vmem:[%s1739] sm:$0x1]
    %v1741 = vld [vmem:[#allocation3] sm:$0x1]
    %v1743 = vlaneseq
    %v1744 = vshrl.u32 %v1743, 7
    %v1745 = vsub.s32 0, %v1744
    %v1746 = vrot.slane %v1741, %v1745
    %1749 = vrot.lane.b32.xlu0 %v1726, 96
    %v1750 = vpop.permute.xlu0 %1749
    %v1751 = vsel %vm380, %v1726, 0
    %v1753 = vsel %vm380, %v1750, 0
    %1755 = vmatprep.subr.mxu0 0.0
    %1756 = vmatpush1.xpose.msra.mxu0 %v1753
    %1757 = vmatprep.subr.mxu0 0.0
    %1758 = vmatpush1.xpose.msra.mxu0 0.0
    %1759 = vmatprep.subr.mxu0 0.0
    %1760 = vmatpush1.xpose.msra.mxu0 0.0
    %1761 = vmatprep.subr.mxu0 0.0
    %1762 = vmatpush1.xpose.msra.mxu0 0.0
    %1763 = vmatprep.subr.mxu0 0.0
    %1764 = vmatpush1.xpose.msra.mxu0 0.0
    %1765 = vmatprep.subr.mxu0 0.0
    %1766 = vmatpush1.xpose.msra.mxu0 0.0
    %1767 = vmatprep.subr.mxu0 0.0
    %1768 = vmatpush1.xpose.msra.mxu0 0.0
    %1769 = vmatprep.subr.mxu0 0.0
    %1770 = vmatpush1.xpose.msra.mxu0 0.0
    %1771 = vmatprep.subr.mxu0 0.0
    %1772 = vmatpush1.xpose.msra.mxu0 0.0
    %1773 = vmatprep.subr.mxu0 0.0
    %1774 = vmatpush1.xpose.msra.mxu0 0.0
    %1775 = vmatprep.subr.mxu0 0.0
    %1776 = vmatpush1.xpose.msra.mxu0 0.0
    %1777 = vmatprep.subr.mxu0 0.0
    %1778 = vmatpush1.xpose.msra.mxu0 0.0
    %1779 = vmatprep.subr.mxu0 0.0
    %1780 = vmatpush1.xpose.msra.mxu0 0.0
    %1781 = vmatprep.subr.mxu0 0.0
    %1782 = vmatpush1.xpose.msra.mxu0 0.0
    %1783 = vmatprep.subr.mxu0 0.0
    %1784 = vmatpush1.xpose.msra.mxu0 0.0
    %1785 = vmatprep.subr.mxu0 0.0
    %1786 = vmatpush1.xpose.msra.mxu0 0.0
    %1787 = vmatprep.subr.mxu0 0.0
    %1788 = vmatpush1.xpose.msra.mxu0 0.0
    %1789 = vmatprep.subr.mxu0 0.0
    %1790 = vmatpush1.xpose.msra.mxu0 0.0
    %1791 = vmatprep.subr.mxu0 0.0
    %1792 = vmatpush1.xpose.msra.mxu0 0.0
    %1793 = vmatprep.subr.mxu0 0.0
    %1794 = vmatpush1.xpose.msra.mxu0 0.0
    %1795 = vmatprep.subr.mxu0 0.0
    %1796 = vmatpush1.xpose.msra.mxu0 0.0
    %1797 = vmatprep.subr.mxu0 0.0
    %1798 = vmatpush1.xpose.msra.mxu0 0.0
    %1799 = vmatprep.subr.mxu0 0.0
    %1800 = vmatpush1.xpose.msra.mxu0 0.0
    %1801 = vmatprep.subr.mxu0 0.0
    %1802 = vmatpush1.xpose.msra.mxu0 0.0
    %1803 = vmatprep.subr.mxu0 0.0
    %1804 = vmatpush1.xpose.msra.mxu0 0.0
    %1805 = vmatprep.subr.mxu0 0.0
    %1806 = vmatpush1.xpose.msra.mxu0 0.0
    %1807 = vmatprep.subr.mxu0 0.0
    %1808 = vmatpush1.xpose.msra.mxu0 0.0
    %1809 = vmatprep.subr.mxu0 0.0
    %1810 = vmatpush1.xpose.msra.mxu0 0.0
    %1811 = vmatprep.subr.mxu0 0.0
    %1812 = vmatpush1.xpose.msra.mxu0 0.0
    %1813 = vmatprep.subr.mxu0 0.0
    %1814 = vmatpush1.xpose.msra.mxu0 0.0
    %1815 = vmatprep.subr.mxu0 0.0
    %1816 = vmatpush1.xpose.msra.mxu0 0.0
    %1817 = vmatprep.subr.mxu0 0.0
    %1818 = vmatpush1.xpose.msra.mxu0 0.0
    %1819 = vmatprep.mubr.f32.mxu0 0.0
    %1820 = vmatmul.mubr.f32.gmra.mrb[0].mxu0 %v1751
    %v1821 = vpop.f32.mrb[0].mxu0
    %v1822 = vadd.f32 %v1746, %v1821
    %v1823 = vpop.f32.mrb[0].mxu0
    %1824 = vdwg.mxu0
    %v1825 = vsel %vm455, %v1822, -inf
    %1826 = vmax.xlane.f32.xlu0 %v1825
    %v1827 = vpop.xlane.xlu0 %1826
    %v1828 = vsub.f32 %v1822, %v1827
    %v1829 = vmul.f32 %v1828, 1.442695
    %v1830 = vpow.pop %v1829
    %v1831 = vsel %vm455, %v1830, 0.0
    %1832 = vadd.xlane.f32.xlu0 %v1831
    %v1833 = vpop.xlane.xlu0 %1832
    %v1834 = vrcp.pop %v1833
    %v1835 = vmul.f32 %v1830, %v1834
    %1836 = vrot.lane.b32.xlu0 %v1726, 64
    %v1837 = vpop.permute.xlu0 %1836
    %v1840 = vsel %vm455, %v1835, 0
    %1842 = vmatprep.subr.mxu0 0.0
    %1843 = vmatpush1.msra.mxu0 %v1837
    %1844 = vmatprep.subr.mxu0 0.0
    %1845 = vmatpush1.msra.mxu0 0.0
    %1846 = vmatprep.subr.mxu0 0.0
    %1847 = vmatpush1.msra.mxu0 0.0
    %1848 = vmatprep.subr.mxu0 0.0
    %1849 = vmatpush1.msra.mxu0 0.0
    %1850 = vmatprep.subr.mxu0 0.0
    %1851 = vmatpush1.msra.mxu0 0.0
    %1852 = vmatprep.subr.mxu0 0.0
    %1853 = vmatpush1.msra.mxu0 0.0
    %1854 = vmatprep.subr.mxu0 0.0
    %1855 = vmatpush1.msra.mxu0 0.0
    %1856 = vmatprep.subr.mxu0 0.0
    %1857 = vmatpush1.msra.mxu0 0.0
    %1858 = vmatprep.subr.mxu0 0.0
    %1859 = vmatpush1.msra.mxu0 0.0
    %1860 = vmatprep.subr.mxu0 0.0
    %1861 = vmatpush1.msra.mxu0 0.0
    %1862 = vmatprep.subr.mxu0 0.0
    %1863 = vmatpush1.msra.mxu0 0.0
    %1864 = vmatprep.subr.mxu0 0.0
    %1865 = vmatpush1.msra.mxu0 0.0
    %1866 = vmatprep.subr.mxu0 0.0
    %1867 = vmatpush1.msra.mxu0 0.0
    %1868 = vmatprep.subr.mxu0 0.0
    %1869 = vmatpush1.msra.mxu0 0.0
    %1870 = vmatprep.subr.mxu0 0.0
    %1871 = vmatpush1.msra.mxu0 0.0
    %1872 = vmatprep.subr.mxu0 0.0
    %1873 = vmatpush1.msra.mxu0 0.0
    %1874 = vmatprep.subr.mxu0 0.0
    %1875 = vmatpush1.msra.mxu0 0.0
    %1876 = vmatprep.subr.mxu0 0.0
    %1877 = vmatpush1.msra.mxu0 0.0
    %1878 = vmatprep.subr.mxu0 0.0
    %1879 = vmatpush1.msra.mxu0 0.0
    %1880 = vmatprep.subr.mxu0 0.0
    %1881 = vmatpush1.msra.mxu0 0.0
    %1882 = vmatprep.subr.mxu0 0.0
    %1883 = vmatpush1.msra.mxu0 0.0
    %1884 = vmatprep.subr.mxu0 0.0
    %1885 = vmatpush1.msra.mxu0 0.0
    %1886 = vmatprep.subr.mxu0 0.0
    %1887 = vmatpush1.msra.mxu0 0.0
    %1888 = vmatprep.subr.mxu0 0.0
    %1889 = vmatpush1.msra.mxu0 0.0
    %1890 = vmatprep.subr.mxu0 0.0
    %1891 = vmatpush1.msra.mxu0 0.0
    %1892 = vmatprep.subr.mxu0 0.0
    %1893 = vmatpush1.msra.mxu0 0.0
    %1894 = vmatprep.subr.mxu0 0.0
    %1895 = vmatpush1.msra.mxu0 0.0
    %1896 = vmatprep.subr.mxu0 0.0
    %1897 = vmatpush1.msra.mxu0 0.0
    %1898 = vmatprep.subr.mxu0 0.0
    %1899 = vmatpush1.msra.mxu0 0.0
    %1900 = vmatprep.subr.mxu0 0.0
    %1901 = vmatpush1.msra.mxu0 0.0
    %1902 = vmatprep.subr.mxu0 0.0
    %1903 = vmatpush1.msra.mxu0 0.0
    %1904 = vmatprep.subr.mxu0 0.0
    %1905 = vmatpush1.msra.mxu0 0.0
    %1906 = vmatprep.mubr.f32.mxu0 0.0
    %1907 = vmatmul.mubr.f32.gmra.mrb[0].mxu0 %v1840
    %v1908 = vpop.f32.mrb[0].mxu0
    %v1909 = vadd.f32 0.0, %v1908
    %v1910 = vpop.f32.mrb[0].mxu0
    %1911 = vdwg.mxu0
    %1912 = vrot.lane.b32.xlu0 %v1726, 112
    %v1913 = vpop.permute.xlu0 %1912
    %1914 = vrot.lane.b32.xlu0 %v1726, 80
    %v1915 = vpop.permute.xlu0 %1914
    %v1916 = vsel %vm380, %v1913, 0
    %v1918 = vsel %vm380, %v1915, 0
    %1920 = vmatprep.subr.mxu0 0.0
    %1921 = vmatpush1.xpose.msra.mxu0 %v1918
    %1922 = vmatprep.subr.mxu0 0.0
    %1923 = vmatpush1.xpose.msra.mxu0 0.0
    %1924 = vmatprep.subr.mxu0 0.0
    %1925 = vmatpush1.xpose.msra.mxu0 0.0
    %1926 = vmatprep.subr.mxu0 0.0
    %1927 = vmatpush1.xpose.msra.mxu0 0.0
    %1928 = vmatprep.subr.mxu0 0.0
    %1929 = vmatpush1.xpose.msra.mxu0 0.0
    %1930 = vmatprep.subr.mxu0 0.0
    %1931 = vmatpush1.xpose.msra.mxu0 0.0
    %1932 = vmatprep.subr.mxu0 0.0
    %1933 = vmatpush1.xpose.msra.mxu0 0.0
    %1934 = vmatprep.subr.mxu0 0.0
    %1935 = vmatpush1.xpose.msra.mxu0 0.0
    %1936 = vmatprep.subr.mxu0 0.0
    %1937 = vmatpush1.xpose.msra.mxu0 0.0
    %1938 = vmatprep.subr.mxu0 0.0
    %1939 = vmatpush1.xpose.msra.mxu0 0.0
    %1940 = vmatprep.subr.mxu0 0.0
    %1941 = vmatpush1.xpose.msra.mxu0 0.0
    %1942 = vmatprep.subr.mxu0 0.0
    %1943 = vmatpush1.xpose.msra.mxu0 0.0
    %1944 = vmatprep.subr.mxu0 0.0
    %1945 = vmatpush1.xpose.msra.mxu0 0.0
    %1946 = vmatprep.subr.mxu0 0.0
    %1947 = vmatpush1.xpose.msra.mxu0 0.0
    %1948 = vmatprep.subr.mxu0 0.0
    %1949 = vmatpush1.xpose.msra.mxu0 0.0
    %1950 = vmatprep.subr.mxu0 0.0
    %1951 = vmatpush1.xpose.msra.mxu0 0.0
    %1952 = vmatprep.subr.mxu0 0.0
    %1953 = vmatpush1.xpose.msra.mxu0 0.0
    %1954 = vmatprep.subr.mxu0 0.0
    %1955 = vmatpush1.xpose.msra.mxu0 0.0
    %1956 = vmatprep.subr.mxu0 0.0
    %1957 = vmatpush1.xpose.msra.mxu0 0.0
    %1958 = vmatprep.subr.mxu0 0.0
    %1959 = vmatpush1.xpose.msra.mxu0 0.0
    %1960 = vmatprep.subr.mxu0 0.0
    %1961 = vmatpush1.xpose.msra.mxu0 0.0
    %1962 = vmatprep.subr.mxu0 0.0
    %1963 = vmatpush1.xpose.msra.mxu0 0.0
    %1964 = vmatprep.subr.mxu0 0.0
    %1965 = vmatpush1.xpose.msra.mxu0 0.0
    %1966 = vmatprep.subr.mxu0 0.0
    %1967 = vmatpush1.xpose.msra.mxu0 0.0
    %1968 = vmatprep.subr.mxu0 0.0
    %1969 = vmatpush1.xpose.msra.mxu0 0.0
    %1970 = vmatprep.subr.mxu0 0.0
    %1971 = vmatpush1.xpose.msra.mxu0 0.0
    %1972 = vmatprep.subr.mxu0 0.0
    %1973 = vmatpush1.xpose.msra.mxu0 0.0
    %1974 = vmatprep.subr.mxu0 0.0
    %1975 = vmatpush1.xpose.msra.mxu0 0.0
    %1976 = vmatprep.subr.mxu0 0.0
    %1977 = vmatpush1.xpose.msra.mxu0 0.0
    %1978 = vmatprep.subr.mxu0 0.0
    %1979 = vmatpush1.xpose.msra.mxu0 0.0
    %1980 = vmatprep.subr.mxu0 0.0
    %1981 = vmatpush1.xpose.msra.mxu0 0.0
    %1982 = vmatprep.subr.mxu0 0.0
    %1983 = vmatpush1.xpose.msra.mxu0 0.0
    %1984 = vmatprep.mubr.f32.mxu0 0.0
    %1985 = vmatmul.mubr.f32.gmra.mrb[0].mxu0 %v1916
    %v1986 = vpop.f32.mrb[0].mxu0
    %v1987 = vadd.f32 %v1746, %v1986
    %v1988 = vpop.f32.mrb[0].mxu0
    %1989 = vdwg.mxu0
    %v1990 = vsel %vm455, %v1987, -inf
    %1991 = vmax.xlane.f32.xlu0 %v1990
    %v1992 = vpop.xlane.xlu0 %1991
    %v1993 = vsub.f32 %v1987, %v1992
    %v1994 = vmul.f32 %v1993, 1.442695
    %v1995 = vpow.pop %v1994
    %v1996 = vsel %vm455, %v1995, 0.0
    %1997 = vadd.xlane.f32.xlu0 %v1996
    %v1998 = vpop.xlane.xlu0 %1997
    %v1999 = vrcp.pop %v1998
    %v2000 = vmul.f32 %v1995, %v1999
    %2001 = vrot.lane.b32.xlu0 %v1726, 48
    %v2002 = vpop.permute.xlu0 %2001
    %v2005 = vsel %vm455, %v2000, 0
    %2007 = vmatprep.subr.mxu0 0.0
    %2008 = vmatpush1.msra.mxu0 %v2002
    %2009 = vmatprep.subr.mxu0 0.0
    %2010 = vmatpush1.msra.mxu0 0.0
    %2011 = vmatprep.subr.mxu0 0.0
    %2012 = vmatpush1.msra.mxu0 0.0
    %2013 = vmatprep.subr.mxu0 0.0
    %2014 = vmatpush1.msra.mxu0 0.0
    %2015 = vmatprep.subr.mxu0 0.0
    %2016 = vmatpush1.msra.mxu0 0.0
    %2017 = vmatprep.subr.mxu0 0.0
    %2018 = vmatpush1.msra.mxu0 0.0
    %2019 = vmatprep.subr.mxu0 0.0
    %2020 = vmatpush1.msra.mxu0 0.0
    %2021 = vmatprep.subr.mxu0 0.0
    %2022 = vmatpush1.msra.mxu0 0.0
    %2023 = vmatprep.subr.mxu0 0.0
    %2024 = vmatpush1.msra.mxu0 0.0
    %2025 = vmatprep.subr.mxu0 0.0
    %2026 = vmatpush1.msra.mxu0 0.0
    %2027 = vmatprep.subr.mxu0 0.0
    %2028 = vmatpush1.msra.mxu0 0.0
    %2029 = vmatprep.subr.mxu0 0.0
    %2030 = vmatpush1.msra.mxu0 0.0
    %2031 = vmatprep.subr.mxu0 0.0
    %2032 = vmatpush1.msra.mxu0 0.0
    %2033 = vmatprep.subr.mxu0 0.0
    %2034 = vmatpush1.msra.mxu0 0.0
    %2035 = vmatprep.subr.mxu0 0.0
    %2036 = vmatpush1.msra.mxu0 0.0
    %2037 = vmatprep.subr.mxu0 0.0
    %2038 = vmatpush1.msra.mxu0 0.0
    %2039 = vmatprep.subr.mxu0 0.0
    %2040 = vmatpush1.msra.mxu0 0.0
    %2041 = vmatprep.subr.mxu0 0.0
    %2042 = vmatpush1.msra.mxu0 0.0
    %2043 = vmatprep.subr.mxu0 0.0
    %2044 = vmatpush1.msra.mxu0 0.0
    %2045 = vmatprep.subr.mxu0 0.0
    %2046 = vmatpush1.msra.mxu0 0.0
    %2047 = vmatprep.subr.mxu0 0.0
    %2048 = vmatpush1.msra.mxu0 0.0
    %2049 = vmatprep.subr.mxu0 0.0
    %2050 = vmatpush1.msra.mxu0 0.0
    %2051 = vmatprep.subr.mxu0 0.0
    %2052 = vmatpush1.msra.mxu0 0.0
    %2053 = vmatprep.subr.mxu0 0.0
    %2054 = vmatpush1.msra.mxu0 0.0
    %2055 = vmatprep.subr.mxu0 0.0
    %2056 = vmatpush1.msra.mxu0 0.0
    %2057 = vmatprep.subr.mxu0 0.0
    %2058 = vmatpush1.msra.mxu0 0.0
    %2059 = vmatprep.subr.mxu0 0.0
    %2060 = vmatpush1.msra.mxu0 0.0
    %2061 = vmatprep.subr.mxu0 0.0
    %2062 = vmatpush1.msra.mxu0 0.0
    %2063 = vmatprep.subr.mxu0 0.0
    %2064 = vmatpush1.msra.mxu0 0.0
    %2065 = vmatprep.subr.mxu0 0.0
    %2066 = vmatpush1.msra.mxu0 0.0
    %2067 = vmatprep.subr.mxu0 0.0
    %2068 = vmatpush1.msra.mxu0 0.0
    %2069 = vmatprep.subr.mxu0 0.0
    %2070 = vmatpush1.msra.mxu0 0.0
    %2071 = vmatprep.mubr.f32.mxu0 0.0
    %2072 = vmatmul.mubr.f32.gmra.mrb[0].mxu0 %v2005
    %v2073 = vpop.f32.mrb[0].mxu0
    %v2074 = vadd.f32 0.0, %v2073
    %v2075 = vpop.f32.mrb[0].mxu0
    %2076 = vdwg.mxu0
    %v2078 = vsel %vm380, %v2074, 0
    %2080 = vmatprep.subr.mxu0 0.0
    %2081 = vmatpush1.msra.mxu0 %v1737
    %2082 = vmatprep.subr.mxu0 0.0
    %2083 = vmatpush1.msra.mxu0 %v1738
    %2084 = vmatprep.subr.mxu0 0.0
    %2085 = vmatpush1.msra.mxu0 0.0
    %2086 = vmatprep.subr.mxu0 0.0
    %2087 = vmatpush1.msra.mxu0 0.0
    %2088 = vmatprep.subr.mxu0 0.0
    %2089 = vmatpush1.msra.mxu0 0.0
    %2090 = vmatprep.subr.mxu0 0.0
    %2091 = vmatpush1.msra.mxu0 0.0
    %2092 = vmatprep.subr.mxu0 0.0
    %2093 = vmatpush1.msra.mxu0 0.0
    %2094 = vmatprep.subr.mxu0 0.0
    %2095 = vmatpush1.msra.mxu0 0.0
    %2096 = vmatprep.subr.mxu0 0.0
    %2097 = vmatpush1.msra.mxu0 0.0
    %2098 = vmatprep.subr.mxu0 0.0
    %2099 = vmatpush1.msra.mxu0 0.0
    %2100 = vmatprep.subr.mxu0 0.0
    %2101 = vmatpush1.msra.mxu0 0.0
    %2102 = vmatprep.subr.mxu0 0.0
    %2103 = vmatpush1.msra.mxu0 0.0
    %2104 = vmatprep.subr.mxu0 0.0
    %2105 = vmatpush1.msra.mxu0 0.0
    %2106 = vmatprep.subr.mxu0 0.0
    %2107 = vmatpush1.msra.mxu0 0.0
    %2108 = vmatprep.subr.mxu0 0.0
    %2109 = vmatpush1.msra.mxu0 0.0
    %2110 = vmatprep.subr.mxu0 0.0
    %2111 = vmatpush1.msra.mxu0 0.0
    %2112 = vmatprep.subr.mxu0 0.0
    %2113 = vmatpush1.msra.mxu0 0.0
    %2114 = vmatprep.subr.mxu0 0.0
    %2115 = vmatpush1.msra.mxu0 0.0
    %2116 = vmatprep.subr.mxu0 0.0
    %2117 = vmatpush1.msra.mxu0 0.0
    %2118 = vmatprep.subr.mxu0 0.0
    %2119 = vmatpush1.msra.mxu0 0.0
    %2120 = vmatprep.subr.mxu0 0.0
    %2121 = vmatpush1.msra.mxu0 0.0
    %2122 = vmatprep.subr.mxu0 0.0
    %2123 = vmatpush1.msra.mxu0 0.0
    %2124 = vmatprep.subr.mxu0 0.0
    %2125 = vmatpush1.msra.mxu0 0.0
    %2126 = vmatprep.subr.mxu0 0.0
    %2127 = vmatpush1.msra.mxu0 0.0
    %2128 = vmatprep.subr.mxu0 0.0
    %2129 = vmatpush1.msra.mxu0 0.0
    %2130 = vmatprep.subr.mxu0 0.0
    %2131 = vmatpush1.msra.mxu0 0.0
    %2132 = vmatprep.subr.mxu0 0.0
    %2133 = vmatpush1.msra.mxu0 0.0
    %2134 = vmatprep.subr.mxu0 0.0
    %2135 = vmatpush1.msra.mxu0 0.0
    %2136 = vmatprep.subr.mxu0 0.0
    %2137 = vmatpush1.msra.mxu0 0.0
    %2138 = vmatprep.subr.mxu0 0.0
    %2139 = vmatpush1.msra.mxu0 0.0
    %2140 = vmatprep.subr.mxu0 0.0
    %2141 = vmatpush1.msra.mxu0 0.0
    %2142 = vmatprep.subr.mxu0 0.0
    %2143 = vmatpush1.msra.mxu0 0.0
    %2144 = vmatprep.mubr.f32.mxu0 0.0
    %2145 = vmatmul.mubr.f32.gmra.mrb[0].mxu0 %v2078
    %v2146 = vpop.f32.mrb[0].mxu0
    %v2147 = vadd.f32 0.0, %v2146
    %v2148 = vpop.f32.mrb[0].mxu0
    %2149 = vdwg.mxu0
    %v2151 = vsel %vm380, %v1909, 0
    %2153 = vmatprep.subr.mxu0 0.0
    %2154 = vmatpush1.msra.mxu0 %v1735
    %2155 = vmatprep.subr.mxu0 0.0
    %2156 = vmatpush1.msra.mxu0 %v1736
    %2157 = vmatprep.subr.mxu0 0.0
    %2158 = vmatpush1.msra.mxu0 0.0
    %2159 = vmatprep.subr.mxu0 0.0
    %2160 = vmatpush1.msra.mxu0 0.0
    %2161 = vmatprep.subr.mxu0 0.0
    %2162 = vmatpush1.msra.mxu0 0.0
    %2163 = vmatprep.subr.mxu0 0.0
    %2164 = vmatpush1.msra.mxu0 0.0
    %2165 = vmatprep.subr.mxu0 0.0
    %2166 = vmatpush1.msra.mxu0 0.0
    %2167 = vmatprep.subr.mxu0 0.0
    %2168 = vmatpush1.msra.mxu0 0.0
    %2169 = vmatprep.subr.mxu0 0.0
    %2170 = vmatpush1.msra.mxu0 0.0
    %2171 = vmatprep.subr.mxu0 0.0
    %2172 = vmatpush1.msra.mxu0 0.0
    %2173 = vmatprep.subr.mxu0 0.0
    %2174 = vmatpush1.msra.mxu0 0.0
    %2175 = vmatprep.subr.mxu0 0.0
    %2176 = vmatpush1.msra.mxu0 0.0
    %2177 = vmatprep.subr.mxu0 0.0
    %2178 = vmatpush1.msra.mxu0 0.0
    %2179 = vmatprep.subr.mxu0 0.0
    %2180 = vmatpush1.msra.mxu0 0.0
    %2181 = vmatprep.subr.mxu0 0.0
    %2182 = vmatpush1.msra.mxu0 0.0
    %2183 = vmatprep.subr.mxu0 0.0
    %2184 = vmatpush1.msra.mxu0 0.0
    %2185 = vmatprep.subr.mxu0 0.0
    %2186 = vmatpush1.msra.mxu0 0.0
    %2187 = vmatprep.subr.mxu0 0.0
    %2188 = vmatpush1.msra.mxu0 0.0
    %2189 = vmatprep.subr.mxu0 0.0
    %2190 = vmatpush1.msra.mxu0 0.0
    %2191 = vmatprep.subr.mxu0 0.0
    %2192 = vmatpush1.msra.mxu0 0.0
    %2193 = vmatprep.subr.mxu0 0.0
    %2194 = vmatpush1.msra.mxu0 0.0
    %2195 = vmatprep.subr.mxu0 0.0
    %2196 = vmatpush1.msra.mxu0 0.0
    %2197 = vmatprep.subr.mxu0 0.0
    %2198 = vmatpush1.msra.mxu0 0.0
    %2199 = vmatprep.subr.mxu0 0.0
    %2200 = vmatpush1.msra.mxu0 0.0
    %2201 = vmatprep.subr.mxu0 0.0
    %2202 = vmatpush1.msra.mxu0 0.0
    %2203 = vmatprep.subr.mxu0 0.0
    %2204 = vmatpush1.msra.mxu0 0.0
    %2205 = vmatprep.subr.mxu0 0.0
    %2206 = vmatpush1.msra.mxu0 0.0
    %2207 = vmatprep.subr.mxu0 0.0
    %2208 = vmatpush1.msra.mxu0 0.0
    %2209 = vmatprep.subr.mxu0 0.0
    %2210 = vmatpush1.msra.mxu0 0.0
    %2211 = vmatprep.subr.mxu0 0.0
    %2212 = vmatpush1.msra.mxu0 0.0
    %2213 = vmatprep.subr.mxu0 0.0
    %2214 = vmatpush1.msra.mxu0 0.0
    %2215 = vmatprep.subr.mxu0 0.0
    %2216 = vmatpush1.msra.mxu0 0.0
    %2217 = vmatprep.mubr.f32.mxu0 0.0
    %2218 = vmatmul.mubr.f32.gmra.mrb[0].mxu0 %v2151
    %v2219 = vpop.f32.mrb[0].mxu0
    %v2220 = vadd.f32 %v2147, %v2219
    %v2221 = vpop.f32.mrb[0].mxu0
    %2222 = vdwg.mxu0
    %v2224 = vlaneseq
    %v2225 = vshrl.u32 %v2224, 7
    %v2226 = vsub.s32 0, %v2225
    %v2227 = vrot.slane %v1740, %v2226
    %v2229 = vadd.f32 %v2220, %v2227
    %2230 = vst.msk [vmem:[#allocation2] sm:$0xff] %vm229, %v2229
    %v2231 = vld [vmem:[%s862] sm:$0x1]
    %v2233 = vlaneseq
    %v2234 = vshrl.u32 %v2233, 7
    %v2235 = vsub.s32 0, %v2234
    %v2236 = vrot.slane %v2231, %v2235
    %2239 = vrot.lane.b32.xlu0 %v1731, 96
    %v2240 = vpop.permute.xlu0 %2239
    %v2241 = vsel %vm380, %v1731, 0
    %v2243 = vsel %vm380, %v2240, 0
    %2245 = vmatprep.subr.mxu0 0.0
    %2246 = vmatpush1.xpose.msra.mxu0 %v2243
    %2247 = vmatprep.subr.mxu0 0.0
    %2248 = vmatpush1.xpose.msra.mxu0 0.0
    %2249 = vmatprep.subr.mxu0 0.0
    %2250 = vmatpush1.xpose.msra.mxu0 0.0
    %2251 = vmatprep.subr.mxu0 0.0
    %2252 = vmatpush1.xpose.msra.mxu0 0.0
    %2253 = vmatprep.subr.mxu0 0.0
    %2254 = vmatpush1.xpose.msra.mxu0 0.0
    %2255 = vmatprep.subr.mxu0 0.0
    %2256 = vmatpush1.xpose.msra.mxu0 0.0
    %2257 = vmatprep.subr.mxu0 0.0
    %2258 = vmatpush1.xpose.msra.mxu0 0.0
    %2259 = vmatprep.subr.mxu0 0.0
    %2260 = vmatpush1.xpose.msra.mxu0 0.0
    %2261 = vmatprep.subr.mxu0 0.0
    %2262 = vmatpush1.xpose.msra.mxu0 0.0
    %2263 = vmatprep.subr.mxu0 0.0
    %2264 = vmatpush1.xpose.msra.mxu0 0.0
    %2265 = vmatprep.subr.mxu0 0.0
    %2266 = vmatpush1.xpose.msra.mxu0 0.0
    %2267 = vmatprep.subr.mxu0 0.0
    %2268 = vmatpush1.xpose.msra.mxu0 0.0
    %2269 = vmatprep.subr.mxu0 0.0
    %2270 = vmatpush1.xpose.msra.mxu0 0.0
    %2271 = vmatprep.subr.mxu0 0.0
    %2272 = vmatpush1.xpose.msra.mxu0 0.0
    %2273 = vmatprep.subr.mxu0 0.0
    %2274 = vmatpush1.xpose.msra.mxu0 0.0
    %2275 = vmatprep.subr.mxu0 0.0
    %2276 = vmatpush1.xpose.msra.mxu0 0.0
    %2277 = vmatprep.subr.mxu0 0.0
    %2278 = vmatpush1.xpose.msra.mxu0 0.0
    %2279 = vmatprep.subr.mxu0 0.0
    %2280 = vmatpush1.xpose.msra.mxu0 0.0
    %2281 = vmatprep.subr.mxu0 0.0
    %2282 = vmatpush1.xpose.msra.mxu0 0.0
    %2283 = vmatprep.subr.mxu0 0.0
    %2284 = vmatpush1.xpose.msra.mxu0 0.0
    %2285 = vmatprep.subr.mxu0 0.0
    %2286 = vmatpush1.xpose.msra.mxu0 0.0
    %2287 = vmatprep.subr.mxu0 0.0
    %2288 = vmatpush1.xpose.msra.mxu0 0.0
    %2289 = vmatprep.subr.mxu0 0.0
    %2290 = vmatpush1.xpose.msra.mxu0 0.0
    %2291 = vmatprep.subr.mxu0 0.0
    %2292 = vmatpush1.xpose.msra.mxu0 0.0
    %2293 = vmatprep.subr.mxu0 0.0
    %2294 = vmatpush1.xpose.msra.mxu0 0.0
    %2295 = vmatprep.subr.mxu0 0.0
    %2296 = vmatpush1.xpose.msra.mxu0 0.0
    %2297 = vmatprep.subr.mxu0 0.0
    %2298 = vmatpush1.xpose.msra.mxu0 0.0
    %2299 = vmatprep.subr.mxu0 0.0
    %2300 = vmatpush1.xpose.msra.mxu0 0.0
    %2301 = vmatprep.subr.mxu0 0.0
    %2302 = vmatpush1.xpose.msra.mxu0 0.0
    %2303 = vmatprep.subr.mxu0 0.0
    %2304 = vmatpush1.xpose.msra.mxu0 0.0
    %2305 = vmatprep.subr.mxu0 0.0
    %2306 = vmatpush1.xpose.msra.mxu0 0.0
    %2307 = vmatprep.subr.mxu0 0.0
    %2308 = vmatpush1.xpose.msra.mxu0 0.0
    %2309 = vmatprep.mubr.f32.mxu0 0.0
    %2310 = vmatmul.mubr.f32.gmra.mrb[0].mxu0 %v2241
    %v2311 = vpop.f32.mrb[0].mxu0
    %v2312 = vadd.f32 %v2236, %v2311
    %v2313 = vpop.f32.mrb[0].mxu0
    %2314 = vdwg.mxu0
    %v2315 = vsel %vm455, %v2312, -inf
    %2316 = vmax.xlane.f32.xlu0 %v2315
    %v2317 = vpop.xlane.xlu0 %2316
    %v2318 = vsub.f32 %v2312, %v2317
    %v2319 = vmul.f32 %v2318, 1.442695
    %v2320 = vpow.pop %v2319
    %v2321 = vsel %vm455, %v2320, 0.0
    %2322 = vadd.xlane.f32.xlu0 %v2321
    %v2323 = vpop.xlane.xlu0 %2322
    %v2324 = vrcp.pop %v2323
    %v2325 = vmul.f32 %v2320, %v2324
    %2326 = vrot.lane.b32.xlu0 %v1731, 64
    %v2327 = vpop.permute.xlu0 %2326
    %v2330 = vsel %vm455, %v2325, 0
    %2332 = vmatprep.subr.mxu0 0.0
    %2333 = vmatpush1.msra.mxu0 %v2327
    %2334 = vmatprep.subr.mxu0 0.0
    %2335 = vmatpush1.msra.mxu0 0.0
    %2336 = vmatprep.subr.mxu0 0.0
    %2337 = vmatpush1.msra.mxu0 0.0
    %2338 = vmatprep.subr.mxu0 0.0
    %2339 = vmatpush1.msra.mxu0 0.0
    %2340 = vmatprep.subr.mxu0 0.0
    %2341 = vmatpush1.msra.mxu0 0.0
    %2342 = vmatprep.subr.mxu0 0.0
    %2343 = vmatpush1.msra.mxu0 0.0
    %2344 = vmatprep.subr.mxu0 0.0
    %2345 = vmatpush1.msra.mxu0 0.0
    %2346 = vmatprep.subr.mxu0 0.0
    %2347 = vmatpush1.msra.mxu0 0.0
    %2348 = vmatprep.subr.mxu0 0.0
    %2349 = vmatpush1.msra.mxu0 0.0
    %2350 = vmatprep.subr.mxu0 0.0
    %2351 = vmatpush1.msra.mxu0 0.0
    %2352 = vmatprep.subr.mxu0 0.0
    %2353 = vmatpush1.msra.mxu0 0.0
    %2354 = vmatprep.subr.mxu0 0.0
    %2355 = vmatpush1.msra.mxu0 0.0
    %2356 = vmatprep.subr.mxu0 0.0
    %2357 = vmatpush1.msra.mxu0 0.0
    %2358 = vmatprep.subr.mxu0 0.0
    %2359 = vmatpush1.msra.mxu0 0.0
    %2360 = vmatprep.subr.mxu0 0.0
    %2361 = vmatpush1.msra.mxu0 0.0
    %2362 = vmatprep.subr.mxu0 0.0
    %2363 = vmatpush1.msra.mxu0 0.0
    %2364 = vmatprep.subr.mxu0 0.0
    %2365 = vmatpush1.msra.mxu0 0.0
    %2366 = vmatprep.subr.mxu0 0.0
    %2367 = vmatpush1.msra.mxu0 0.0
    %2368 = vmatprep.subr.mxu0 0.0
    %2369 = vmatpush1.msra.mxu0 0.0
    %2370 = vmatprep.subr.mxu0 0.0
    %2371 = vmatpush1.msra.mxu0 0.0
    %2372 = vmatprep.subr.mxu0 0.0
    %2373 = vmatpush1.msra.mxu0 0.0
    %2374 = vmatprep.subr.mxu0 0.0
    %2375 = vmatpush1.msra.mxu0 0.0
    %2376 = vmatprep.subr.mxu0 0.0
    %2377 = vmatpush1.msra.mxu0 0.0
    %2378 = vmatprep.subr.mxu0 0.0
    %2379 = vmatpush1.msra.mxu0 0.0
    %2380 = vmatprep.subr.mxu0 0.0
    %2381 = vmatpush1.msra.mxu0 0.0
    %2382 = vmatprep.subr.mxu0 0.0
    %2383 = vmatpush1.msra.mxu0 0.0
    %2384 = vmatprep.subr.mxu0 0.0
    %2385 = vmatpush1.msra.mxu0 0.0
    %2386 = vmatprep.subr.mxu0 0.0
    %2387 = vmatpush1.msra.mxu0 0.0
    %2388 = vmatprep.subr.mxu0 0.0
    %2389 = vmatpush1.msra.mxu0 0.0
    %2390 = vmatprep.subr.mxu0 0.0
    %2391 = vmatpush1.msra.mxu0 0.0
    %2392 = vmatprep.subr.mxu0 0.0
    %2393 = vmatpush1.msra.mxu0 0.0
    %2394 = vmatprep.subr.mxu0 0.0
    %2395 = vmatpush1.msra.mxu0 0.0
    %2396 = vmatprep.mubr.f32.mxu0 0.0
    %2397 = vmatmul.mubr.f32.gmra.mrb[0].mxu0 %v2330
    %v2398 = vpop.f32.mrb[0].mxu0
    %v2399 = vadd.f32 0.0, %v2398
    %v2400 = vpop.f32.mrb[0].mxu0
    %2401 = vdwg.mxu0
    %2402 = vrot.lane.b32.xlu0 %v1731, 112
    %v2403 = vpop.permute.xlu0 %2402
    %2404 = vrot.lane.b32.xlu0 %v1731, 80
    %v2405 = vpop.permute.xlu0 %2404
    %v2406 = vsel %vm380, %v2403, 0
    %v2408 = vsel %vm380, %v2405, 0
    %2410 = vmatprep.subr.mxu0 0.0
    %2411 = vmatpush1.xpose.msra.mxu0 %v2408
    %2412 = vmatprep.subr.mxu0 0.0
    %2413 = vmatpush1.xpose.msra.mxu0 0.0
    %2414 = vmatprep.subr.mxu0 0.0
    %2415 = vmatpush1.xpose.msra.mxu0 0.0
    %2416 = vmatprep.subr.mxu0 0.0
    %2417 = vmatpush1.xpose.msra.mxu0 0.0
    %2418 = vmatprep.subr.mxu0 0.0
    %2419 = vmatpush1.xpose.msra.mxu0 0.0
    %2420 = vmatprep.subr.mxu0 0.0
    %2421 = vmatpush1.xpose.msra.mxu0 0.0
    %2422 = vmatprep.subr.mxu0 0.0
    %2423 = vmatpush1.xpose.msra.mxu0 0.0
    %2424 = vmatprep.subr.mxu0 0.0
    %2425 = vmatpush1.xpose.msra.mxu0 0.0
    %2426 = vmatprep.subr.mxu0 0.0
    %2427 = vmatpush1.xpose.msra.mxu0 0.0
    %2428 = vmatprep.subr.mxu0 0.0
    %2429 = vmatpush1.xpose.msra.mxu0 0.0
    %2430 = vmatprep.subr.mxu0 0.0
    %2431 = vmatpush1.xpose.msra.mxu0 0.0
    %2432 = vmatprep.subr.mxu0 0.0
    %2433 = vmatpush1.xpose.msra.mxu0 0.0
    %2434 = vmatprep.subr.mxu0 0.0
    %2435 = vmatpush1.xpose.msra.mxu0 0.0
    %2436 = vmatprep.subr.mxu0 0.0
    %2437 = vmatpush1.xpose.msra.mxu0 0.0
    %2438 = vmatprep.subr.mxu0 0.0
    %2439 = vmatpush1.xpose.msra.mxu0 0.0
    %2440 = vmatprep.subr.mxu0 0.0
    %2441 = vmatpush1.xpose.msra.mxu0 0.0
    %2442 = vmatprep.subr.mxu0 0.0
    %2443 = vmatpush1.xpose.msra.mxu0 0.0
    %2444 = vmatprep.subr.mxu0 0.0
    %2445 = vmatpush1.xpose.msra.mxu0 0.0
    %2446 = vmatprep.subr.mxu0 0.0
    %2447 = vmatpush1.xpose.msra.mxu0 0.0
    %2448 = vmatprep.subr.mxu0 0.0
    %2449 = vmatpush1.xpose.msra.mxu0 0.0
    %2450 = vmatprep.subr.mxu0 0.0
    %2451 = vmatpush1.xpose.msra.mxu0 0.0
    %2452 = vmatprep.subr.mxu0 0.0
    %2453 = vmatpush1.xpose.msra.mxu0 0.0
    %2454 = vmatprep.subr.mxu0 0.0
    %2455 = vmatpush1.xpose.msra.mxu0 0.0
    %2456 = vmatprep.subr.mxu0 0.0
    %2457 = vmatpush1.xpose.msra.mxu0 0.0
    %2458 = vmatprep.subr.mxu0 0.0
    %2459 = vmatpush1.xpose.msra.mxu0 0.0
    %2460 = vmatprep.subr.mxu0 0.0
    %2461 = vmatpush1.xpose.msra.mxu0 0.0
    %2462 = vmatprep.subr.mxu0 0.0
    %2463 = vmatpush1.xpose.msra.mxu0 0.0
    %2464 = vmatprep.subr.mxu0 0.0
    %2465 = vmatpush1.xpose.msra.mxu0 0.0
    %2466 = vmatprep.subr.mxu0 0.0
    %2467 = vmatpush1.xpose.msra.mxu0 0.0
    %2468 = vmatprep.subr.mxu0 0.0
    %2469 = vmatpush1.xpose.msra.mxu0 0.0
    %2470 = vmatprep.subr.mxu0 0.0
    %2471 = vmatpush1.xpose.msra.mxu0 0.0
    %2472 = vmatprep.subr.mxu0 0.0
    %2473 = vmatpush1.xpose.msra.mxu0 0.0
    %2474 = vmatprep.mubr.f32.mxu0 0.0
    %2475 = vmatmul.mubr.f32.gmra.mrb[0].mxu0 %v2406
    %v2476 = vpop.f32.mrb[0].mxu0
    %v2477 = vadd.f32 %v2236, %v2476
    %v2478 = vpop.f32.mrb[0].mxu0
    %2479 = vdwg.mxu0
    %v2480 = vsel %vm455, %v2477, -inf
    %2481 = vmax.xlane.f32.xlu0 %v2480
    %v2482 = vpop.xlane.xlu0 %2481
    %v2483 = vsub.f32 %v2477, %v2482
    %v2484 = vmul.f32 %v2483, 1.442695
    %v2485 = vpow.pop %v2484
    %v2486 = vsel %vm455, %v2485, 0.0
    %2487 = vadd.xlane.f32.xlu0 %v2486
    %v2488 = vpop.xlane.xlu0 %2487
    %v2489 = vrcp.pop %v2488
    %v2490 = vmul.f32 %v2485, %v2489
    %2491 = vrot.lane.b32.xlu0 %v1731, 48
    %v2492 = vpop.permute.xlu0 %2491
    %v2495 = vsel %vm455, %v2490, 0
    %2497 = vmatprep.subr.mxu0 0.0
    %2498 = vmatpush1.msra.mxu0 %v2492
    %2499 = vmatprep.subr.mxu0 0.0
    %2500 = vmatpush1.msra.mxu0 0.0
    %2501 = vmatprep.subr.mxu0 0.0
    %2502 = vmatpush1.msra.mxu0 0.0
    %2503 = vmatprep.subr.mxu0 0.0
    %2504 = vmatpush1.msra.mxu0 0.0
    %2505 = vmatprep.subr.mxu0 0.0
    %2506 = vmatpush1.msra.mxu0 0.0
    %2507 = vmatprep.subr.mxu0 0.0
    %2508 = vmatpush1.msra.mxu0 0.0
    %2509 = vmatprep.subr.mxu0 0.0
    %2510 = vmatpush1.msra.mxu0 0.0
    %2511 = vmatprep.subr.mxu0 0.0
    %2512 = vmatpush1.msra.mxu0 0.0
    %2513 = vmatprep.subr.mxu0 0.0
    %2514 = vmatpush1.msra.mxu0 0.0
    %2515 = vmatprep.subr.mxu0 0.0
    %2516 = vmatpush1.msra.mxu0 0.0
    %2517 = vmatprep.subr.mxu0 0.0
    %2518 = vmatpush1.msra.mxu0 0.0
    %2519 = vmatprep.subr.mxu0 0.0
    %2520 = vmatpush1.msra.mxu0 0.0
    %2521 = vmatprep.subr.mxu0 0.0
    %2522 = vmatpush1.msra.mxu0 0.0
    %2523 = vmatprep.subr.mxu0 0.0
    %2524 = vmatpush1.msra.mxu0 0.0
    %2525 = vmatprep.subr.mxu0 0.0
    %2526 = vmatpush1.msra.mxu0 0.0
    %2527 = vmatprep.subr.mxu0 0.0
    %2528 = vmatpush1.msra.mxu0 0.0
    %2529 = vmatprep.subr.mxu0 0.0
    %2530 = vmatpush1.msra.mxu0 0.0
    %2531 = vmatprep.subr.mxu0 0.0
    %2532 = vmatpush1.msra.mxu0 0.0
    %2533 = vmatprep.subr.mxu0 0.0
    %2534 = vmatpush1.msra.mxu0 0.0
    %2535 = vmatprep.subr.mxu0 0.0
    %2536 = vmatpush1.msra.mxu0 0.0
    %2537 = vmatprep.subr.mxu0 0.0
    %2538 = vmatpush1.msra.mxu0 0.0
    %2539 = vmatprep.subr.mxu0 0.0
    %2540 = vmatpush1.msra.mxu0 0.0
    %2541 = vmatprep.subr.mxu0 0.0
    %2542 = vmatpush1.msra.mxu0 0.0
    %2543 = vmatprep.subr.mxu0 0.0
    %2544 = vmatpush1.msra.mxu0 0.0
    %2545 = vmatprep.subr.mxu0 0.0
    %2546 = vmatpush1.msra.mxu0 0.0
    %2547 = vmatprep.subr.mxu0 0.0
    %2548 = vmatpush1.msra.mxu0 0.0
    %2549 = vmatprep.subr.mxu0 0.0
    %2550 = vmatpush1.msra.mxu0 0.0
    %2551 = vmatprep.subr.mxu0 0.0
    %2552 = vmatpush1.msra.mxu0 0.0
    %2553 = vmatprep.subr.mxu0 0.0
    %2554 = vmatpush1.msra.mxu0 0.0
    %2555 = vmatprep.subr.mxu0 0.0
    %2556 = vmatpush1.msra.mxu0 0.0
    %2557 = vmatprep.subr.mxu0 0.0
    %2558 = vmatpush1.msra.mxu0 0.0
    %2559 = vmatprep.subr.mxu0 0.0
    %2560 = vmatpush1.msra.mxu0 0.0
    %2561 = vmatprep.mubr.f32.mxu0 0.0
    %2562 = vmatmul.mubr.f32.gmra.mrb[0].mxu0 %v2495
    %v2563 = vpop.f32.mrb[0].mxu0
    %v2564 = vadd.f32 0.0, %v2563
    %v2565 = vpop.f32.mrb[0].mxu0
    %2566 = vdwg.mxu0
    %v2568 = vsel %vm380, %v2564, 0
    %2570 = vmatprep.subr.mxu0 0.0
    %2571 = vmatpush1.msra.mxu0 %v1737
    %2572 = vmatprep.subr.mxu0 0.0
    %2573 = vmatpush1.msra.mxu0 %v1738
    %2574 = vmatprep.subr.mxu0 0.0
    %2575 = vmatpush1.msra.mxu0 0.0
    %2576 = vmatprep.subr.mxu0 0.0
    %2577 = vmatpush1.msra.mxu0 0.0
    %2578 = vmatprep.subr.mxu0 0.0
    %2579 = vmatpush1.msra.mxu0 0.0
    %2580 = vmatprep.subr.mxu0 0.0
    %2581 = vmatpush1.msra.mxu0 0.0
    %2582 = vmatprep.subr.mxu0 0.0
    %2583 = vmatpush1.msra.mxu0 0.0
    %2584 = vmatprep.subr.mxu0 0.0
    %2585 = vmatpush1.msra.mxu0 0.0
    %2586 = vmatprep.subr.mxu0 0.0
    %2587 = vmatpush1.msra.mxu0 0.0
    %2588 = vmatprep.subr.mxu0 0.0
    %2589 = vmatpush1.msra.mxu0 0.0
    %2590 = vmatprep.subr.mxu0 0.0
    %2591 = vmatpush1.msra.mxu0 0.0
    %2592 = vmatprep.subr.mxu0 0.0
    %2593 = vmatpush1.msra.mxu0 0.0
    %2594 = vmatprep.subr.mxu0 0.0
    %2595 = vmatpush1.msra.mxu0 0.0
    %2596 = vmatprep.subr.mxu0 0.0
    %2597 = vmatpush1.msra.mxu0 0.0
    %2598 = vmatprep.subr.mxu0 0.0
    %2599 = vmatpush1.msra.mxu0 0.0
    %2600 = vmatprep.subr.mxu0 0.0
    %2601 = vmatpush1.msra.mxu0 0.0
    %2602 = vmatprep.subr.mxu0 0.0
    %2603 = vmatpush1.msra.mxu0 0.0
    %2604 = vmatprep.subr.mxu0 0.0
    %2605 = vmatpush1.msra.mxu0 0.0
    %2606 = vmatprep.subr.mxu0 0.0
    %2607 = vmatpush1.msra.mxu0 0.0
    %2608 = vmatprep.subr.mxu0 0.0
    %2609 = vmatpush1.msra.mxu0 0.0
    %2610 = vmatprep.subr.mxu0 0.0
    %2611 = vmatpush1.msra.mxu0 0.0
    %2612 = vmatprep.subr.mxu0 0.0
    %2613 = vmatpush1.msra.mxu0 0.0
    %2614 = vmatprep.subr.mxu0 0.0
    %2615 = vmatpush1.msra.mxu0 0.0
    %2616 = vmatprep.subr.mxu0 0.0
    %2617 = vmatpush1.msra.mxu0 0.0
    %2618 = vmatprep.subr.mxu0 0.0
    %2619 = vmatpush1.msra.mxu0 0.0
    %2620 = vmatprep.subr.mxu0 0.0
    %2621 = vmatpush1.msra.mxu0 0.0
    %2622 = vmatprep.subr.mxu0 0.0
    %2623 = vmatpush1.msra.mxu0 0.0
    %2624 = vmatprep.subr.mxu0 0.0
    %2625 = vmatpush1.msra.mxu0 0.0
    %2626 = vmatprep.subr.mxu0 0.0
    %2627 = vmatpush1.msra.mxu0 0.0
    %2628 = vmatprep.subr.mxu0 0.0
    %2629 = vmatpush1.msra.mxu0 0.0
    %2630 = vmatprep.subr.mxu0 0.0
    %2631 = vmatpush1.msra.mxu0 0.0
    %2632 = vmatprep.subr.mxu0 0.0
    %2633 = vmatpush1.msra.mxu0 0.0
    %2634 = vmatprep.mubr.f32.mxu0 0.0
    %2635 = vmatmul.mubr.f32.gmra.mrb[0].mxu0 %v2568
    %v2636 = vpop.f32.mrb[0].mxu0
    %v2637 = vadd.f32 0.0, %v2636
    %v2638 = vpop.f32.mrb[0].mxu0
    %2639 = vdwg.mxu0
    %v2641 = vsel %vm380, %v2399, 0
    %2643 = vmatprep.subr.mxu0 0.0
    %2644 = vmatpush1.msra.mxu0 %v1735
    %2645 = vmatprep.subr.mxu0 0.0
    %2646 = vmatpush1.msra.mxu0 %v1736
    %2647 = vmatprep.subr.mxu0 0.0
    %2648 = vmatpush1.msra.mxu0 0.0
    %2649 = vmatprep.subr.mxu0 0.0
    %2650 = vmatpush1.msra.mxu0 0.0
    %2651 = vmatprep.subr.mxu0 0.0
    %2652 = vmatpush1.msra.mxu0 0.0
    %2653 = vmatprep.subr.mxu0 0.0
    %2654 = vmatpush1.msra.mxu0 0.0
    %2655 = vmatprep.subr.mxu0 0.0
    %2656 = vmatpush1.msra.mxu0 0.0
    %2657 = vmatprep.subr.mxu0 0.0
    %2658 = vmatpush1.msra.mxu0 0.0
    %2659 = vmatprep.subr.mxu0 0.0
    %2660 = vmatpush1.msra.mxu0 0.0
    %2661 = vmatprep.subr.mxu0 0.0
    %2662 = vmatpush1.msra.mxu0 0.0
    %2663 = vmatprep.subr.mxu0 0.0
    %2664 = vmatpush1.msra.mxu0 0.0
    %2665 = vmatprep.subr.mxu0 0.0
    %2666 = vmatpush1.msra.mxu0 0.0
    %2667 = vmatprep.subr.mxu0 0.0
    %2668 = vmatpush1.msra.mxu0 0.0
    %2669 = vmatprep.subr.mxu0 0.0
    %2670 = vmatpush1.msra.mxu0 0.0
    %2671 = vmatprep.subr.mxu0 0.0
    %2672 = vmatpush1.msra.mxu0 0.0
    %2673 = vmatprep.subr.mxu0 0.0
    %2674 = vmatpush1.msra.mxu0 0.0
    %2675 = vmatprep.subr.mxu0 0.0
    %2676 = vmatpush1.msra.mxu0 0.0
    %2677 = vmatprep.subr.mxu0 0.0
    %2678 = vmatpush1.msra.mxu0 0.0
    %2679 = vmatprep.subr.mxu0 0.0
    %2680 = vmatpush1.msra.mxu0 0.0
    %2681 = vmatprep.subr.mxu0 0.0
    %2682 = vmatpush1.msra.mxu0 0.0
    %2683 = vmatprep.subr.mxu0 0.0
    %2684 = vmatpush1.msra.mxu0 0.0
    %2685 = vmatprep.subr.mxu0 0.0
    %2686 = vmatpush1.msra.mxu0 0.0
    %2687 = vmatprep.subr.mxu0 0.0
    %2688 = vmatpush1.msra.mxu0 0.0
    %2689 = vmatprep.subr.mxu0 0.0
    %2690 = vmatpush1.msra.mxu0 0.0
    %2691 = vmatprep.subr.mxu0 0.0
    %2692 = vmatpush1.msra.mxu0 0.0
    %2693 = vmatprep.subr.mxu0 0.0
    %2694 = vmatpush1.msra.mxu0 0.0
    %2695 = vmatprep.subr.mxu0 0.0
    %2696 = vmatpush1.msra.mxu0 0.0
    %2697 = vmatprep.subr.mxu0 0.0
    %2698 = vmatpush1.msra.mxu0 0.0
    %2699 = vmatprep.subr.mxu0 0.0
    %2700 = vmatpush1.msra.mxu0 0.0
    %2701 = vmatprep.subr.mxu0 0.0
    %2702 = vmatpush1.msra.mxu0 0.0
    %2703 = vmatprep.subr.mxu0 0.0
    %2704 = vmatpush1.msra.mxu0 0.0
    %2705 = vmatprep.subr.mxu0 0.0
    %2706 = vmatpush1.msra.mxu0 0.0
    %2707 = vmatprep.mubr.f32.mxu0 0.0
    %2708 = vmatmul.mubr.f32.gmra.mrb[0].mxu0 %v2641
    %v2709 = vpop.f32.mrb[0].mxu0
    %v2710 = vadd.f32 %v2637, %v2709
    %v2711 = vpop.f32.mrb[0].mxu0
    %2712 = vdwg.mxu0
    %v2713 = vadd.f32 %v2710, %v2227
    %2714 = vst.msk [vmem:[#allocation2 + $0x8] sm:$0xff] %vm229, %v2713
    %v2715 = vld [vmem:[#allocation2] sm:$0xff]
    %v2716 = vld [vmem:[#allocation2 + $0x8] sm:$0xff]
    %v2717 = vadd.f32 %v2715, %v1638
    %v2718 = vadd.f32 %v2716, %v1639
    %s2719 = scalar_lea.vmem [#allocation12], 1
    %v2720 = vld [vmem:[%s2719] sm:$0x1]
    %s2721 = scalar_lea.vmem [#allocation14], 1
    %v2722 = vld [vmem:[%s2721] sm:$0x1]
    %v2723 = vsel %vm229, %v2717, 0.0
    %2724 = vadd.xlane.f32.xlu0 %v2723
    %v2725 = vpop.xlane.xlu0 %2724
    %v2726 = vsel %vm229, %v2718, 0.0
    %2727 = vadd.xlane.f32.xlu0 %v2726
    %v2728 = vpop.xlane.xlu0 %2727
    %v2729 = vmul.f32 %v2725, %v236
    %v2730 = vmul.f32 %v2728, %v236
    %v2731 = vsub.f32 %v2717, %v2729
    %v2732 = vsub.f32 %v2718, %v2730
    %v2733 = vmul.f32 %v2731, %v2731
    %v2734 = vmul.f32 %v2732, %v2732
    %v2735 = vsel %vm229, %v2733, 0.0
    %2736 = vadd.xlane.f32.xlu0 %v2735
    %v2737 = vpop.xlane.xlu0 %2736
    %v2738 = vsel %vm229, %v2734, 0.0
    %2739 = vadd.xlane.f32.xlu0 %v2738
    %v2740 = vpop.xlane.xlu0 %2739
    %v2741 = vmul.f32 %v2737, %v236
    %v2742 = vmul.f32 %v2740, %v236
    %v2743 = vadd.f32 %v2741, 1e-12
    %v2744 = vadd.f32 %v2742, 1e-12
    %v2745 = vrsqrt.pop %v2743
    %v2746 = vrsqrt.pop %v2744
    %v2747 = vmul.f32 %v2731, %v2745
    %v2748 = vmul.f32 %v2732, %v2746
    %v2750 = vlaneseq
    %v2751 = vshrl.u32 %v2750, 7
    %v2752 = vsub.s32 0, %v2751
    %v2753 = vrot.slane %v2720, %v2752
    %v2755 = vmul.f32 %v2747, %v2753
    %v2756 = vmul.f32 %v2748, %v2753
    %v2758 = vlaneseq
    %v2759 = vshrl.u32 %v2758, 7
    %v2760 = vsub.s32 0, %v2759
    %v2761 = vrot.slane %v2722, %v2760
    %v2763 = vadd.f32 %v2755, %v2761
    %v2764 = vadd.f32 %v2756, %v2761
    %s2765 = scalar_lea.vmem %s10, 32
    %v2766 = vld [vmem:[%s2765] sm:$0xff]
    %v2767 = vld [vmem:[%s2765 + $0x8] sm:$0xff]
    %v2768 = vld [vmem:[%s2765 + $0x10] sm:$0xff]
    %v2769 = vld [vmem:[%s2765 + $0x18] sm:$0xff]
    %s2770 = scalar_lea.vmem [#allocation15], 1
    %v2771 = vld [vmem:[%s2770] sm:$0x1]
    %v2773 = vlaneseq
    %v2774 = vshrl.u32 %v2773, 7
    %v2775 = vsub.s32 0, %v2774
    %v2776 = vrot.slane %v2771, %v2775
    %v2779 = vsel %vm229, %v2763, 0
    %v2782 = vsel %vm229, %v2764, 0
    %2784 = vmatprep.subr.mxu0 0.0
    %2785 = vmatpush1.msra.mxu0 %v2766
    %2786 = vmatprep.subr.mxu0 0.0
    %2787 = vmatpush1.msra.mxu0 %v2767
    %2788 = vmatprep.subr.mxu0 0.0
    %2789 = vmatpush1.msra.mxu0 %v2768
    %2790 = vmatprep.subr.mxu0 0.0
    %2791 = vmatpush1.msra.mxu0 %v2769
    %2792 = vmatprep.subr.mxu0 0.0
    %2793 = vmatpush1.msra.mxu0 0.0
    %2794 = vmatprep.subr.mxu0 0.0
    %2795 = vmatpush1.msra.mxu0 0.0
    %2796 = vmatprep.subr.mxu0 0.0
    %2797 = vmatpush1.msra.mxu0 0.0
    %2798 = vmatprep.subr.mxu0 0.0
    %2799 = vmatpush1.msra.mxu0 0.0
    %2800 = vmatprep.subr.mxu0 0.0
    %2801 = vmatpush1.msra.mxu0 0.0
    %2802 = vmatprep.subr.mxu0 0.0
    %2803 = vmatpush1.msra.mxu0 0.0
    %2804 = vmatprep.subr.mxu0 0.0
    %2805 = vmatpush1.msra.mxu0 0.0
    %2806 = vmatprep.subr.mxu0 0.0
    %2807 = vmatpush1.msra.mxu0 0.0
    %2808 = vmatprep.subr.mxu0 0.0
    %2809 = vmatpush1.msra.mxu0 0.0
    %2810 = vmatprep.subr.mxu0 0.0
    %2811 = vmatpush1.msra.mxu0 0.0
    %2812 = vmatprep.subr.mxu0 0.0
    %2813 = vmatpush1.msra.mxu0 0.0
    %2814 = vmatprep.subr.mxu0 0.0
    %2815 = vmatpush1.msra.mxu0 0.0
    %2816 = vmatprep.subr.mxu0 0.0
    %2817 = vmatpush1.msra.mxu0 0.0
    %2818 = vmatprep.subr.mxu0 0.0
    %2819 = vmatpush1.msra.mxu0 0.0
    %2820 = vmatprep.subr.mxu0 0.0
    %2821 = vmatpush1.msra.mxu0 0.0
    %2822 = vmatprep.subr.mxu0 0.0
    %2823 = vmatpush1.msra.mxu0 0.0
    %2824 = vmatprep.subr.mxu0 0.0
    %2825 = vmatpush1.msra.mxu0 0.0
    %2826 = vmatprep.subr.mxu0 0.0
    %2827 = vmatpush1.msra.mxu0 0.0
    %2828 = vmatprep.subr.mxu0 0.0
    %2829 = vmatpush1.msra.mxu0 0.0
    %2830 = vmatprep.subr.mxu0 0.0
    %2831 = vmatpush1.msra.mxu0 0.0
    %2832 = vmatprep.subr.mxu0 0.0
    %2833 = vmatpush1.msra.mxu0 0.0
    %2834 = vmatprep.subr.mxu0 0.0
    %2835 = vmatpush1.msra.mxu0 0.0
    %2836 = vmatprep.subr.mxu0 0.0
    %2837 = vmatpush1.msra.mxu0 0.0
    %2838 = vmatprep.subr.mxu0 0.0
    %2839 = vmatpush1.msra.mxu0 0.0
    %2840 = vmatprep.subr.mxu0 0.0
    %2841 = vmatpush1.msra.mxu0 0.0
    %2842 = vmatprep.subr.mxu0 0.0
    %2843 = vmatpush1.msra.mxu0 0.0
    %2844 = vmatprep.subr.mxu0 0.0
    %2845 = vmatpush1.msra.mxu0 0.0
    %2846 = vmatprep.subr.mxu0 0.0
    %2847 = vmatpush1.msra.mxu0 0.0
    %2848 = vmatprep.mubr.f32.mxu0 0.0
    %2849 = vmatmul.mubr.f32.gmra.mrb[0].mxu0 %v2779
    %v2850 = vpop.f32.mrb[0].mxu0
    %v2851 = vadd.f32 %v2776, %v2850
    %v2852 = vpop.f32.mrb[0].mxu0
    %2853 = vmatprep.mubr.f32.mxu0 0.0
    %2854 = vmatmul.mubr.f32.gmra.mrb[0].mxu0 %v2782
    %v2855 = vpop.f32.mrb[0].mxu0
    %v2856 = vadd.f32 %v2776, %v2855
    %v2857 = vpop.f32.mrb[0].mxu0
    %2858 = vdwg.mxu0
    %v2859 = vmul.f32 %v2851, 0.5
    %v2860 = vmul.f32 %v2856, 0.5
    %v2861 = vmul.f32 %v2851, 0.70710677
    %v2862 = vmul.f32 %v2856, 0.70710677
    %v2863 = verf.f32.pop %v2861
    %v2864 = verf.f32.pop %v2862
    %v2865 = vadd.f32 %v2863, 1.0
    %v2866 = vadd.f32 %v2864, 1.0
    %v2867 = vmul.f32 %v2859, %v2865
    %v2868 = vmul.f32 %v2860, %v2866
    %s2869 = scalar_lea.vmem %s12, 64
    %v2870 = vld [vmem:[%s2869] sm:$0xff]
    %v2871 = vld [vmem:[%s2869 + $0x8] sm:$0xff]
    %v2872 = vld [vmem:[%s2869 + $0x10] sm:$0xff]
    %v2873 = vld [vmem:[%s2869 + $0x18] sm:$0xff]
    %v2874 = vld [vmem:[%s2869 + $0x20] sm:$0xff]
    %v2875 = vld [vmem:[%s2869 + $0x28] sm:$0xff]
    %v2876 = vld [vmem:[%s2869 + $0x30] sm:$0xff]
    %v2877 = vld [vmem:[%s2869 + $0x38] sm:$0xff]
    %s2878 = scalar_lea.vmem [#allocation17], 1
    %v2879 = vld [vmem:[%s2878] sm:$0x1]
    %v2881 = vlaneseq
    %v2882 = vshrl.u32 %v2881, 7
    %v2883 = vsub.s32 0, %v2882
    %v2884 = vrot.slane %v2879, %v2883
    %v2887 = vsel %vm1512, %v2867, 0
    %v2890 = vsel %vm1512, %v2868, 0
    %2892 = vmatprep.subr.mxu0 0.0
    %2893 = vmatpush1.msra.mxu0 %v2870
    %2894 = vmatprep.subr.mxu0 0.0
    %2895 = vmatpush1.msra.mxu0 %v2871
    %2896 = vmatprep.subr.mxu0 0.0
    %2897 = vmatpush1.msra.mxu0 %v2872
    %2898 = vmatprep.subr.mxu0 0.0
    %2899 = vmatpush1.msra.mxu0 %v2873
    %2900 = vmatprep.subr.mxu0 0.0
    %2901 = vmatpush1.msra.mxu0 %v2874
    %2902 = vmatprep.subr.mxu0 0.0
    %2903 = vmatpush1.msra.mxu0 %v2875
    %2904 = vmatprep.subr.mxu0 0.0
    %2905 = vmatpush1.msra.mxu0 %v2876
    %2906 = vmatprep.subr.mxu0 0.0
    %2907 = vmatpush1.msra.mxu0 %v2877
    %2908 = vmatprep.subr.mxu0 0.0
    %2909 = vmatpush1.msra.mxu0 0.0
    %2910 = vmatprep.subr.mxu0 0.0
    %2911 = vmatpush1.msra.mxu0 0.0
    %2912 = vmatprep.subr.mxu0 0.0
    %2913 = vmatpush1.msra.mxu0 0.0
    %2914 = vmatprep.subr.mxu0 0.0
    %2915 = vmatpush1.msra.mxu0 0.0
    %2916 = vmatprep.subr.mxu0 0.0
    %2917 = vmatpush1.msra.mxu0 0.0
    %2918 = vmatprep.subr.mxu0 0.0
    %2919 = vmatpush1.msra.mxu0 0.0
    %2920 = vmatprep.subr.mxu0 0.0
    %2921 = vmatpush1.msra.mxu0 0.0
    %2922 = vmatprep.subr.mxu0 0.0
    %2923 = vmatpush1.msra.mxu0 0.0
    %2924 = vmatprep.subr.mxu0 0.0
    %2925 = vmatpush1.msra.mxu0 0.0
    %2926 = vmatprep.subr.mxu0 0.0
    %2927 = vmatpush1.msra.mxu0 0.0
    %2928 = vmatprep.subr.mxu0 0.0
    %2929 = vmatpush1.msra.mxu0 0.0
    %2930 = vmatprep.subr.mxu0 0.0
    %2931 = vmatpush1.msra.mxu0 0.0
    %2932 = vmatprep.subr.mxu0 0.0
    %2933 = vmatpush1.msra.mxu0 0.0
    %2934 = vmatprep.subr.mxu0 0.0
    %2935 = vmatpush1.msra.mxu0 0.0
    %2936 = vmatprep.subr.mxu0 0.0
    %2937 = vmatpush1.msra.mxu0 0.0
    %2938 = vmatprep.subr.mxu0 0.0
    %2939 = vmatpush1.msra.mxu0 0.0
    %2940 = vmatprep.subr.mxu0 0.0
    %2941 = vmatpush1.msra.mxu0 0.0
    %2942 = vmatprep.subr.mxu0 0.0
    %2943 = vmatpush1.msra.mxu0 0.0
    %2944 = vmatprep.subr.mxu0 0.0
    %2945 = vmatpush1.msra.mxu0 0.0
    %2946 = vmatprep.subr.mxu0 0.0
    %2947 = vmatpush1.msra.mxu0 0.0
    %2948 = vmatprep.subr.mxu0 0.0
    %2949 = vmatpush1.msra.mxu0 0.0
    %2950 = vmatprep.subr.mxu0 0.0
    %2951 = vmatpush1.msra.mxu0 0.0
    %2952 = vmatprep.subr.mxu0 0.0
    %2953 = vmatpush1.msra.mxu0 0.0
    %2954 = vmatprep.subr.mxu0 0.0
    %2955 = vmatpush1.msra.mxu0 0.0
    %2956 = vmatprep.mubr.f32.mxu0 0.0
    %2957 = vmatmul.mubr.f32.gmra.mrb[0].mxu0 %v2887
    %v2958 = vpop.f32.mrb[0].mxu0
    %v2959 = vadd.f32 %v2884, %v2958
    %v2960 = vpop.f32.mrb[0].mxu0
    %2961 = vmatprep.mubr.f32.mxu0 0.0
    %2962 = vmatmul.mubr.f32.gmra.mrb[0].mxu0 %v2890
    %v2963 = vpop.f32.mrb[0].mxu0
    %v2964 = vadd.f32 %v2884, %v2963
    %v2965 = vpop.f32.mrb[0].mxu0
    %2966 = vdwg.mxu0
    %v2967 = vadd.f32 %v2959, %v2763
    %v2968 = vadd.f32 %v2964, %v2764
    %s2969 = scalar_lea.vmem [#allocation18], 1
    %v2970 = vld [vmem:[%s2969] sm:$0x1]
    %s2971 = scalar_lea.vmem [#allocation20], 1
    %v2972 = vld [vmem:[%s2971] sm:$0x1]
    %v2973 = vsel %vm229, %v2967, 0.0
    %2974 = vadd.xlane.f32.xlu0 %v2973
    %v2975 = vpop.xlane.xlu0 %2974
    %v2976 = vsel %vm229, %v2968, 0.0
    %2977 = vadd.xlane.f32.xlu0 %v2976
    %v2978 = vpop.xlane.xlu0 %2977
    %v2979 = vmul.f32 %v2975, %v236
    %v2980 = vmul.f32 %v2978, %v236
    %v2981 = vsub.f32 %v2967, %v2979
    %v2982 = vsub.f32 %v2968, %v2980
    %v2983 = vmul.f32 %v2981, %v2981
    %v2984 = vmul.f32 %v2982, %v2982
    %v2985 = vsel %vm229, %v2983, 0.0
    %2986 = vadd.xlane.f32.xlu0 %v2985
    %v2987 = vpop.xlane.xlu0 %2986
    %v2988 = vsel %vm229, %v2984, 0.0
    %2989 = vadd.xlane.f32.xlu0 %v2988
    %v2990 = vpop.xlane.xlu0 %2989
    %v2991 = vmul.f32 %v2987, %v236
    %v2992 = vmul.f32 %v2990, %v236
    %v2993 = vadd.f32 %v2991, 1e-12
    %v2994 = vadd.f32 %v2992, 1e-12
    %v2995 = vrsqrt.pop %v2993
    %v2996 = vrsqrt.pop %v2994
    %v2997 = vmul.f32 %v2981, %v2995
    %v2998 = vmul.f32 %v2982, %v2996
    %v3000 = vlaneseq
    %v3001 = vshrl.u32 %v3000, 7
    %v3002 = vsub.s32 0, %v3001
    %v3003 = vrot.slane %v2970, %v3002
    %v3005 = vmul.f32 %v2997, %v3003
    %v3006 = vmul.f32 %v2998, %v3003
    %v3008 = vlaneseq
    %v3009 = vshrl.u32 %v3008, 7
    %v3010 = vsub.s32 0, %v3009
    %v3011 = vrot.slane %v2972, %v3010
    %v3013 = vadd.f32 %v3005, %v3011
    %v3014 = vadd.f32 %v3006, %v3011
    %v3015 = vld [vmem:[%s16] sm:$0x3]
    %v3017 = vsel %vm380, %v3015, 0
    %3019 = vmatprep.subr.mxu0 0.0
    %3020 = vmatpush1.msra.mxu0 %v3013
    %3021 = vmatprep.subr.mxu0 0.0
    %3022 = vmatpush1.msra.mxu0 %v3014
    %3023 = vmatprep.subr.mxu0 0.0
    %3024 = vmatpush1.msra.mxu0 0.0
    %3025 = vmatprep.subr.mxu0 0.0
    %3026 = vmatpush1.msra.mxu0 0.0
    %3027 = vmatprep.subr.mxu0 0.0
    %3028 = vmatpush1.msra.mxu0 0.0
    %3029 = vmatprep.subr.mxu0 0.0
    %3030 = vmatpush1.msra.mxu0 0.0
    %3031 = vmatprep.subr.mxu0 0.0
    %3032 = vmatpush1.msra.mxu0 0.0
    %3033 = vmatprep.subr.mxu0 0.0
    %3034 = vmatpush1.msra.mxu0 0.0
    %3035 = vmatprep.subr.mxu0 0.0
    %3036 = vmatpush1.msra.mxu0 0.0
    %3037 = vmatprep.subr.mxu0 0.0
    %3038 = vmatpush1.msra.mxu0 0.0
    %3039 = vmatprep.subr.mxu0 0.0
    %3040 = vmatpush1.msra.mxu0 0.0
    %3041 = vmatprep.subr.mxu0 0.0
    %3042 = vmatpush1.msra.mxu0 0.0
    %3043 = vmatprep.subr.mxu0 0.0
    %3044 = vmatpush1.msra.mxu0 0.0
    %3045 = vmatprep.subr.mxu0 0.0
    %3046 = vmatpush1.msra.mxu0 0.0
    %3047 = vmatprep.subr.mxu0 0.0
    %3048 = vmatpush1.msra.mxu0 0.0
    %3049 = vmatprep.subr.mxu0 0.0
    %3050 = vmatpush1.msra.mxu0 0.0
    %3051 = vmatprep.subr.mxu0 0.0
    %3052 = vmatpush1.msra.mxu0 0.0
    %3053 = vmatprep.subr.mxu0 0.0
    %3054 = vmatpush1.msra.mxu0 0.0
    %3055 = vmatprep.subr.mxu0 0.0
    %3056 = vmatpush1.msra.mxu0 0.0
    %3057 = vmatprep.subr.mxu0 0.0
    %3058 = vmatpush1.msra.mxu0 0.0
    %3059 = vmatprep.subr.mxu0 0.0
    %3060 = vmatpush1.msra.mxu0 0.0
    %3061 = vmatprep.subr.mxu0 0.0
    %3062 = vmatpush1.msra.mxu0 0.0
    %3063 = vmatprep.subr.mxu0 0.0
    %3064 = vmatpush1.msra.mxu0 0.0
    %3065 = vmatprep.subr.mxu0 0.0
    %3066 = vmatpush1.msra.mxu0 0.0
    %3067 = vmatprep.subr.mxu0 0.0
    %3068 = vmatpush1.msra.mxu0 0.0
    %3069 = vmatprep.subr.mxu0 0.0
    %3070 = vmatpush1.msra.mxu0 0.0
    %3071 = vmatprep.subr.mxu0 0.0
    %3072 = vmatpush1.msra.mxu0 0.0
    %3073 = vmatprep.subr.mxu0 0.0
    %3074 = vmatpush1.msra.mxu0 0.0
    %3075 = vmatprep.subr.mxu0 0.0
    %3076 = vmatpush1.msra.mxu0 0.0
    %3077 = vmatprep.subr.mxu0 0.0
    %3078 = vmatpush1.msra.mxu0 0.0
    %3079 = vmatprep.subr.mxu0 0.0
    %3080 = vmatpush1.msra.mxu0 0.0
    %3081 = vmatprep.subr.mxu0 0.0
    %3082 = vmatpush1.msra.mxu0 0.0
    %3083 = vmatprep.mubr.f32.mxu0 0.0
    %3084 = vmatmul.mubr.f32.gmra.mrb[0].mxu0 %v3017
    %v3085 = vpop.f32.mrb[0].mxu0
    %v3086 = vadd.f32 0.0, %v3085
    %v3087 = vpop.f32.mrb[0].mxu0
    %3088 = vdwg.mxu0
    %v3089 = vld [vmem:[%s17] sm:$0xff]
    %v3090 = vld [vmem:[%s17 + $0x8] sm:$0xff]
    %v3091 = vld [vmem:[%s17 + $0x10] sm:$0xff]
    %v3092 = vld [vmem:[%s17 + $0x18] sm:$0xff]
    %v3093 = vld [vmem:[%s18] sm:$0x1]
    %v3095 = vlaneseq
    %v3096 = vshrl.u32 %v3095, 7
    %v3097 = vsub.s32 0, %v3096
    %v3098 = vrot.slane %v3093, %v3097
    %v3101 = vsel %vm229, %v3086, 0
    %3103 = vmatprep.subr.mxu0 0.0
    %3104 = vmatpush1.msra.mxu0 %v3089
    %3105 = vmatprep.subr.mxu0 0.0
    %3106 = vmatpush1.msra.mxu0 %v3090
    %3107 = vmatprep.subr.mxu0 0.0
    %3108 = vmatpush1.msra.mxu0 %v3091
    %3109 = vmatprep.subr.mxu0 0.0
    %3110 = vmatpush1.msra.mxu0 %v3092
    %3111 = vmatprep.subr.mxu0 0.0
    %3112 = vmatpush1.msra.mxu0 0.0
    %3113 = vmatprep.subr.mxu0 0.0
    %3114 = vmatpush1.msra.mxu0 0.0
    %3115 = vmatprep.subr.mxu0 0.0
    %3116 = vmatpush1.msra.mxu0 0.0
    %3117 = vmatprep.subr.mxu0 0.0
    %3118 = vmatpush1.msra.mxu0 0.0
    %3119 = vmatprep.subr.mxu0 0.0
    %3120 = vmatpush1.msra.mxu0 0.0
    %3121 = vmatprep.subr.mxu0 0.0
    %3122 = vmatpush1.msra.mxu0 0.0
    %3123 = vmatprep.subr.mxu0 0.0
    %3124 = vmatpush1.msra.mxu0 0.0
    %3125 = vmatprep.subr.mxu0 0.0
    %3126 = vmatpush1.msra.mxu0 0.0
    %3127 = vmatprep.subr.mxu0 0.0
    %3128 = vmatpush1.msra.mxu0 0.0
    %3129 = vmatprep.subr.mxu0 0.0
    %3130 = vmatpush1.msra.mxu0 0.0
    %3131 = vmatprep.subr.mxu0 0.0
    %3132 = vmatpush1.msra.mxu0 0.0
    %3133 = vmatprep.subr.mxu0 0.0
    %3134 = vmatpush1.msra.mxu0 0.0
    %3135 = vmatprep.subr.mxu0 0.0
    %3136 = vmatpush1.msra.mxu0 0.0
    %3137 = vmatprep.subr.mxu0 0.0
    %3138 = vmatpush1.msra.mxu0 0.0
    %3139 = vmatprep.subr.mxu0 0.0
    %3140 = vmatpush1.msra.mxu0 0.0
    %3141 = vmatprep.subr.mxu0 0.0
    %3142 = vmatpush1.msra.mxu0 0.0
    %3143 = vmatprep.subr.mxu0 0.0
    %3144 = vmatpush1.msra.mxu0 0.0
    %3145 = vmatprep.subr.mxu0 0.0
    %3146 = vmatpush1.msra.mxu0 0.0
    %3147 = vmatprep.subr.mxu0 0.0
    %3148 = vmatpush1.msra.mxu0 0.0
    %3149 = vmatprep.subr.mxu0 0.0
    %3150 = vmatpush1.msra.mxu0 0.0
    %3151 = vmatprep.subr.mxu0 0.0
    %3152 = vmatpush1.msra.mxu0 0.0
    %3153 = vmatprep.subr.mxu0 0.0
    %3154 = vmatpush1.msra.mxu0 0.0
    %3155 = vmatprep.subr.mxu0 0.0
    %3156 = vmatpush1.msra.mxu0 0.0
    %3157 = vmatprep.subr.mxu0 0.0
    %3158 = vmatpush1.msra.mxu0 0.0
    %3159 = vmatprep.subr.mxu0 0.0
    %3160 = vmatpush1.msra.mxu0 0.0
    %3161 = vmatprep.subr.mxu0 0.0
    %3162 = vmatpush1.msra.mxu0 0.0
    %3163 = vmatprep.subr.mxu0 0.0
    %3164 = vmatpush1.msra.mxu0 0.0
    %3165 = vmatprep.subr.mxu0 0.0
    %3166 = vmatpush1.msra.mxu0 0.0
    %3167 = vmatprep.mubr.f32.mxu0 0.0
    %3168 = vmatmul.mubr.f32.gmra.mrb[0].mxu0 %v3101
    %v3169 = vpop.f32.mrb[0].mxu0
    %v3170 = vadd.f32 %v3098, %v3169
    %v3171 = vpop.f32.mrb[0].mxu0
    %3172 = vdwg.mxu0
    %v3173 = vtanh.pop %v3170
    %v3174 = vld [vmem:[%s19] sm:$0xff]
    %v3175 = vld [vmem:[%s19 + $0x8] sm:$0xff]
    %v3176 = vld [vmem:[%s19 + $0x10] sm:$0xff]
    %v3177 = vld [vmem:[%s19 + $0x18] sm:$0xff]
    %v3178 = vld [vmem:[%s20] sm:$0x1]
    %v3180 = vlaneseq
    %v3181 = vshrl.u32 %v3180, 7
    %v3182 = vsub.s32 0, %v3181
    %v3183 = vrot.slane %v3178, %v3182
    %v3186 = vsel %vm229, %v3173, 0
    %3188 = vmatprep.subr.mxu0 0.0
    %3189 = vmatpush1.msra.mxu0 %v3174
    %3190 = vmatprep.subr.mxu0 0.0
    %3191 = vmatpush1.msra.mxu0 %v3175
    %3192 = vmatprep.subr.mxu0 0.0
    %3193 = vmatpush1.msra.mxu0 %v3176
    %3194 = vmatprep.subr.mxu0 0.0
    %3195 = vmatpush1.msra.mxu0 %v3177
    %3196 = vmatprep.subr.mxu0 0.0
    %3197 = vmatpush1.msra.mxu0 0.0
    %3198 = vmatprep.subr.mxu0 0.0
    %3199 = vmatpush1.msra.mxu0 0.0
    %3200 = vmatprep.subr.mxu0 0.0
    %3201 = vmatpush1.msra.mxu0 0.0
    %3202 = vmatprep.subr.mxu0 0.0
    %3203 = vmatpush1.msra.mxu0 0.0
    %3204 = vmatprep.subr.mxu0 0.0
    %3205 = vmatpush1.msra.mxu0 0.0
    %3206 = vmatprep.subr.mxu0 0.0
    %3207 = vmatpush1.msra.mxu0 0.0
    %3208 = vmatprep.subr.mxu0 0.0
    %3209 = vmatpush1.msra.mxu0 0.0
    %3210 = vmatprep.subr.mxu0 0.0
    %3211 = vmatpush1.msra.mxu0 0.0
    %3212 = vmatprep.subr.mxu0 0.0
    %3213 = vmatpush1.msra.mxu0 0.0
    %3214 = vmatprep.subr.mxu0 0.0
    %3215 = vmatpush1.msra.mxu0 0.0
    %3216 = vmatprep.subr.mxu0 0.0
    %3217 = vmatpush1.msra.mxu0 0.0
    %3218 = vmatprep.subr.mxu0 0.0
    %3219 = vmatpush1.msra.mxu0 0.0
    %3220 = vmatprep.subr.mxu0 0.0
    %3221 = vmatpush1.msra.mxu0 0.0
    %3222 = vmatprep.subr.mxu0 0.0
    %3223 = vmatpush1.msra.mxu0 0.0
    %3224 = vmatprep.subr.mxu0 0.0
    %3225 = vmatpush1.msra.mxu0 0.0
    %3226 = vmatprep.subr.mxu0 0.0
    %3227 = vmatpush1.msra.mxu0 0.0
    %3228 = vmatprep.subr.mxu0 0.0
    %3229 = vmatpush1.msra.mxu0 0.0
    %3230 = vmatprep.subr.mxu0 0.0
    %3231 = vmatpush1.msra.mxu0 0.0
    %3232 = vmatprep.subr.mxu0 0.0
    %3233 = vmatpush1.msra.mxu0 0.0
    %3234 = vmatprep.subr.mxu0 0.0
    %3235 = vmatpush1.msra.mxu0 0.0
    %3236 = vmatprep.subr.mxu0 0.0
    %3237 = vmatpush1.msra.mxu0 0.0
    %3238 = vmatprep.subr.mxu0 0.0
    %3239 = vmatpush1.msra.mxu0 0.0
    %3240 = vmatprep.subr.mxu0 0.0
    %3241 = vmatpush1.msra.mxu0 0.0
    %3242 = vmatprep.subr.mxu0 0.0
    %3243 = vmatpush1.msra.mxu0 0.0
    %3244 = vmatprep.subr.mxu0 0.0
    %3245 = vmatpush1.msra.mxu0 0.0
    %3246 = vmatprep.subr.mxu0 0.0
    %3247 = vmatpush1.msra.mxu0 0.0
    %3248 = vmatprep.subr.mxu0 0.0
    %3249 = vmatpush1.msra.mxu0 0.0
    %3250 = vmatprep.subr.mxu0 0.0
    %3251 = vmatpush1.msra.mxu0 0.0
    %3252 = vmatprep.mubr.f32.mxu0 0.0
    %3253 = vmatmul.mubr.f32.gmra.mrb[0].mxu0 %v3186
    %v3254 = vpop.f32.mrb[0].mxu0
    %v3255 = vadd.f32 %v3183, %v3254
    %v3256 = vpop.f32.mrb[0].mxu0
    %3257 = vdwg.mxu0
    %vm3258 = vcmask 17408
    %3259 = vst.msk [vmem:[#allocation21] sm:$0x3] %vm3258, %v3255
    %v3260 = vld [vmem:[%s23] sm:$0xff]
    %v3262 = vsel %vm380, %v3260, 0
    %3264 = vmatprep.subr.mxu0 0.0
    %3265 = vmatpush1.msra.mxu0 %v3013
    %3266 = vmatprep.subr.mxu0 0.0
    %3267 = vmatpush1.msra.mxu0 %v3014
    %3268 = vmatprep.subr.mxu0 0.0
    %3269 = vmatpush1.msra.mxu0 0.0
    %3270 = vmatprep.subr.mxu0 0.0
    %3271 = vmatpush1.msra.mxu0 0.0
    %3272 = vmatprep.subr.mxu0 0.0
    %3273 = vmatpush1.msra.mxu0 0.0
    %3274 = vmatprep.subr.mxu0 0.0
    %3275 = vmatpush1.msra.mxu0 0.0
    %3276 = vmatprep.subr.mxu0 0.0
    %3277 = vmatpush1.msra.mxu0 0.0
    %3278 = vmatprep.subr.mxu0 0.0
    %3279 = vmatpush1.msra.mxu0 0.0
    %3280 = vmatprep.subr.mxu0 0.0
    %3281 = vmatpush1.msra.mxu0 0.0
    %3282 = vmatprep.subr.mxu0 0.0
    %3283 = vmatpush1.msra.mxu0 0.0
    %3284 = vmatprep.subr.mxu0 0.0
    %3285 = vmatpush1.msra.mxu0 0.0
    %3286 = vmatprep.subr.mxu0 0.0
    %3287 = vmatpush1.msra.mxu0 0.0
    %3288 = vmatprep.subr.mxu0 0.0
    %3289 = vmatpush1.msra.mxu0 0.0
    %3290 = vmatprep.subr.mxu0 0.0
    %3291 = vmatpush1.msra.mxu0 0.0
    %3292 = vmatprep.subr.mxu0 0.0
    %3293 = vmatpush1.msra.mxu0 0.0
    %3294 = vmatprep.subr.mxu0 0.0
    %3295 = vmatpush1.msra.mxu0 0.0
    %3296 = vmatprep.subr.mxu0 0.0
    %3297 = vmatpush1.msra.mxu0 0.0
    %3298 = vmatprep.subr.mxu0 0.0
    %3299 = vmatpush1.msra.mxu0 0.0
    %3300 = vmatprep.subr.mxu0 0.0
    %3301 = vmatpush1.msra.mxu0 0.0
    %3302 = vmatprep.subr.mxu0 0.0
    %3303 = vmatpush1.msra.mxu0 0.0
    %3304 = vmatprep.subr.mxu0 0.0
    %3305 = vmatpush1.msra.mxu0 0.0
    %3306 = vmatprep.subr.mxu0 0.0
    %3307 = vmatpush1.msra.mxu0 0.0
    %3308 = vmatprep.subr.mxu0 0.0
    %3309 = vmatpush1.msra.mxu0 0.0
    %3310 = vmatprep.subr.mxu0 0.0
    %3311 = vmatpush1.msra.mxu0 0.0
    %3312 = vmatprep.subr.mxu0 0.0
    %3313 = vmatpush1.msra.mxu0 0.0
    %3314 = vmatprep.subr.mxu0 0.0
    %3315 = vmatpush1.msra.mxu0 0.0
    %3316 = vmatprep.subr.mxu0 0.0
    %3317 = vmatpush1.msra.mxu0 0.0
    %3318 = vmatprep.subr.mxu0 0.0
    %3319 = vmatpush1.msra.mxu0 0.0
    %3320 = vmatprep.subr.mxu0 0.0
    %3321 = vmatpush1.msra.mxu0 0.0
    %3322 = vmatprep.subr.mxu0 0.0
    %3323 = vmatpush1.msra.mxu0 0.0
    %3324 = vmatprep.subr.mxu0 0.0
    %3325 = vmatpush1.msra.mxu0 0.0
    %3326 = vmatprep.subr.mxu0 0.0
    %3327 = vmatpush1.msra.mxu0 0.0
    %3328 = vmatprep.mubr.f32.mxu0 0.0
    %3329 = vmatmul.mubr.f32.gmra.mrb[0].mxu0 %v3262
    %v3330 = vpop.f32.mrb[0].mxu0
    %v3331 = vadd.f32 0.0, %v3330
    %v3332 = vpop.f32.mrb[0].mxu0
    %3333 = vdwg.mxu0
    %v3334 = vld [vmem:[%s21] sm:$0xff]
    %v3335 = vld [vmem:[%s21 + $0x8] sm:$0xff]
    %v3336 = vld [vmem:[%s21 + $0x10] sm:$0xff]
    %v3337 = vld [vmem:[%s21 + $0x18] sm:$0xff]
    %v3338 = vld [vmem:[%s22] sm:$0x1]
    %v3340 = vlaneseq
    %v3341 = vshrl.u32 %v3340, 7
    %v3342 = vsub.s32 0, %v3341
    %v3343 = vrot.slane %v3338, %v3342
    %v3346 = vsel %vm229, %v3331, 0
    %3348 = vmatprep.subr.mxu0 0.0
    %3349 = vmatpush1.msra.mxu0 %v3334
    %3350 = vmatprep.subr.mxu0 0.0
    %3351 = vmatpush1.msra.mxu0 %v3335
    %3352 = vmatprep.subr.mxu0 0.0
    %3353 = vmatpush1.msra.mxu0 %v3336
    %3354 = vmatprep.subr.mxu0 0.0
    %3355 = vmatpush1.msra.mxu0 %v3337
    %3356 = vmatprep.subr.mxu0 0.0
    %3357 = vmatpush1.msra.mxu0 0.0
    %3358 = vmatprep.subr.mxu0 0.0
    %3359 = vmatpush1.msra.mxu0 0.0
    %3360 = vmatprep.subr.mxu0 0.0
    %3361 = vmatpush1.msra.mxu0 0.0
    %3362 = vmatprep.subr.mxu0 0.0
    %3363 = vmatpush1.msra.mxu0 0.0
    %3364 = vmatprep.subr.mxu0 0.0
    %3365 = vmatpush1.msra.mxu0 0.0
    %3366 = vmatprep.subr.mxu0 0.0
    %3367 = vmatpush1.msra.mxu0 0.0
    %3368 = vmatprep.subr.mxu0 0.0
    %3369 = vmatpush1.msra.mxu0 0.0
    %3370 = vmatprep.subr.mxu0 0.0
    %3371 = vmatpush1.msra.mxu0 0.0
    %3372 = vmatprep.subr.mxu0 0.0
    %3373 = vmatpush1.msra.mxu0 0.0
    %3374 = vmatprep.subr.mxu0 0.0
    %3375 = vmatpush1.msra.mxu0 0.0
    %3376 = vmatprep.subr.mxu0 0.0
    %3377 = vmatpush1.msra.mxu0 0.0
    %3378 = vmatprep.subr.mxu0 0.0
    %3379 = vmatpush1.msra.mxu0 0.0
    %3380 = vmatprep.subr.mxu0 0.0
    %3381 = vmatpush1.msra.mxu0 0.0
    %3382 = vmatprep.subr.mxu0 0.0
    %3383 = vmatpush1.msra.mxu0 0.0
    %3384 = vmatprep.subr.mxu0 0.0
    %3385 = vmatpush1.msra.mxu0 0.0
    %3386 = vmatprep.subr.mxu0 0.0
    %3387 = vmatpush1.msra.mxu0 0.0
    %3388 = vmatprep.subr.mxu0 0.0
    %3389 = vmatpush1.msra.mxu0 0.0
    %3390 = vmatprep.subr.mxu0 0.0
    %3391 = vmatpush1.msra.mxu0 0.0
    %3392 = vmatprep.subr.mxu0 0.0
    %3393 = vmatpush1.msra.mxu0 0.0
    %3394 = vmatprep.subr.mxu0 0.0
    %3395 = vmatpush1.msra.mxu0 0.0
    %3396 = vmatprep.subr.mxu0 0.0
    %3397 = vmatpush1.msra.mxu0 0.0
    %3398 = vmatprep.subr.mxu0 0.0
    %3399 = vmatpush1.msra.mxu0 0.0
    %3400 = vmatprep.subr.mxu0 0.0
    %3401 = vmatpush1.msra.mxu0 0.0
    %3402 = vmatprep.subr.mxu0 0.0
    %3403 = vmatpush1.msra.mxu0 0.0
    %3404 = vmatprep.subr.mxu0 0.0
    %3405 = vmatpush1.msra.mxu0 0.0
    %3406 = vmatprep.subr.mxu0 0.0
    %3407 = vmatpush1.msra.mxu0 0.0
    %3408 = vmatprep.subr.mxu0 0.0
    %3409 = vmatpush1.msra.mxu0 0.0
    %3410 = vmatprep.subr.mxu0 0.0
    %3411 = vmatpush1.msra.mxu0 0.0
    %3412 = vmatprep.mubr.f32.mxu0 0.0
    %3413 = vmatmul.mubr.f32.gmra.mrb[0].mxu0 %v3346
    %v3414 = vpop.f32.mrb[0].mxu0
    %v3415 = vadd.f32 %v3343, %v3414
    %v3416 = vpop.f32.mrb[0].mxu0
    %3417 = vdwg.mxu0
    %vm3418 = vcmask 31744
    %3419 = vst.msk [vmem:[%s25] sm:$0xff] %vm3418, %v3415
    // Predicated region
    $region142: #{tpu_custom_call.1} parent=1 // pred_check
      _
    $region143: #{tpu_custom_call.1} parent=1 // pred_check_branch
      %3421 = sbr.rel (0) target = $region145
    $region144: #{tpu_custom_call.1} parent=1 // pred_region
      %s3423 = ssub.s32 32, 32
      %3424 = vsyncadd [#allocation5], %s3423
      %s3426 = sshll.u32 [#allocation21], 4
      %s3427 = int_to_ptr.vmem [resolvable:$true] %s3426
      %3429 = dma.vmem_to_hbm [thread:$0]  %s3427, 32, %s24, [#allocation5]
    $region145: #{tpu_custom_call.1} parent=1 // pred_fallthru
      _
    // Predicated region
    $region146: #{tpu_custom_call.1} parent=1 // pred_check
      _
    $region147: #{tpu_custom_call.1} parent=1 // pred_check_branch
      %3431 = sbr.rel (0) target = $region149
    $region148: #{tpu_custom_call.1} parent=1 // pred_region
      _
    $region149: #{tpu_custom_call.1} parent=1 // pred_fallthru
      _
    // Predicated region
    $region150: #{tpu_custom_call.1} parent=1 // pred_check
      _
    $region151: #{tpu_custom_call.1} parent=1 // pred_check_branch
      %3433 = sbr.rel (0) target = $region153
    $region152: #{tpu_custom_call.1} parent=1 // pred_region
      %3434 = dma.done [#allocation5], 32
    $region153: #{tpu_custom_call.1} parent=1 // pred_fallthru
      _
    // Predicated region
    $region154: #{tpu_custom_call.1} parent=1 // pred_check
      _
    $region155: #{tpu_custom_call.1} parent=1 // pred_check_branch
      %3436 = sbr.rel (0) target = $region157
    $region156: #{tpu_custom_call.1} parent=1 // pred_region
      _
    $region157: #{tpu_custom_call.1} parent=1 // pred_fallthru
      _
    %3437 = vsyncpa [#allocation4], 1
    %3438 = vsyncpa [#allocation7], 1
    %3439 = vsyncpa [#allocation10], 1
    %3440 = vsyncpa [#allocation13], 1
    %3441 = vsyncpa [#allocation16], 1
    %3442 = vsyncpa [#allocation19], 1
    %3443 = vsyncpa [#allocation5], 1

</llo_original>
